<compile_context>
chip_gen: v6e
topology: v6e:2x2x1
jax: 0.10.0
libtpu: 0.0.40
codegen_flags: <defaults>
</compile_context>

<pallas_src>
import functools

import numpy as np

import jax
import jax.numpy as jnp
from jax.experimental import pallas as pl
from jax.experimental.pallas import tpu as pltpu


def _round_up(x, m):
    return ((x + m - 1) // m) * m


def _gelu(x):
    # matches torch.nn.GELU() default (erf-based, exact)
    return jax.nn.gelu(x, approximate=False)


# ----------------------------------------------------------------------------
# Kernel 1: pointwise (1x1x1) conv  ==  matmul + bias (+ fused channel softmax)
# ----------------------------------------------------------------------------
def _pointwise_kernel(x_ref, w_ref, b_ref, o_ref, *, act):
    y = jnp.dot(x_ref[...], w_ref[...], preferred_element_type=jnp.float32)
    y = y + b_ref[...]
    if act == "softmax":
        y = y - jnp.max(y, axis=-1, keepdims=True)
        e = jnp.exp(y)
        y = e / jnp.sum(e, axis=-1, keepdims=True)
    o_ref[...] = y


@functools.lru_cache(maxsize=None)
def _pointwise_call(p_pad, tile, cin, cout, act):
    kernel = functools.partial(_pointwise_kernel, act=act)
    return jax.jit(pl.pallas_call(
        kernel,
        out_shape=jax.ShapeDtypeStruct((p_pad, cout), jnp.float32),
        grid=(p_pad // tile,),
        in_specs=[
            pl.BlockSpec((tile, cin), lambda i: (i, 0)),
            pl.BlockSpec((cin, cout), lambda i: (0, 0)),
            pl.BlockSpec((1, cout), lambda i: (0, 0)),
        ],
        out_specs=pl.BlockSpec((tile, cout), lambda i: (i, 0)),
        compiler_params=pltpu.CompilerParams(dimension_semantics=("parallel",)),
    ))


def pointwise_conv(x, w, b, act="none"):
    """x: [..., Cin] -> [..., Cout];  w: [Cin, Cout];  b: [Cout]."""
    lead = x.shape[:-1]
    cin = x.shape[-1]
    cout = w.shape[1]
    xf = x.reshape(-1, cin).astype(jnp.float32)
    P = xf.shape[0]
    # big tiles: the matmul is tiny/memory-bound, so amortize per-step overhead
    tile = min(8192, _round_up(P, 8))
    p_pad = _round_up(P, tile)
    if p_pad != P:
        xf = jnp.pad(xf, ((0, p_pad - P), (0, 0)))
    y = _pointwise_call(p_pad, tile, cin, cout, act)(xf, w, b.reshape(1, cout))
    return y[:P].reshape(lead + (cout,))


# ----------------------------------------------------------------------------
# Kernel 2a: depthwise 7x7x7, stride 1, channels-last (C on lanes)
# ----------------------------------------------------------------------------
def _dw7_kernel(x_ref, w_ref, b_ref, o_ref, *, H, W, fuse_gelu):
    # x_ref: (1, D+6, H+6, W+6, C) padded volume of one sample
    # w_ref: (7, 7, 7, C) correlation weights
    # b_ref: (1, C)
    # o_ref: (1, 1, H, W, C) one output depth slab
    d = pl.program_id(1)
    C = o_ref.shape[-1]

    def kz_body(kz, acc):
        wz = w_ref[kz]                         # (7, 7, C)
        dz = d + kz
        for ky in range(7):
            for kx in range(7):
                sub = x_ref[0, dz, ky:ky + H, kx:kx + W, :]      # (H, W, C)
                acc = acc + sub * wz[ky, kx:kx + 1, :]           # (1, C) bcast
        return acc

    acc = jax.lax.fori_loop(0, 7, kz_body, jnp.zeros((H, W, C), jnp.float32))
    acc = acc + b_ref[...]
    if fuse_gelu:
        acc = _gelu(acc)
    o_ref[0, 0] = acc


@functools.lru_cache(maxsize=None)
def _dw7_call(N, C, D, H, W, fuse_gelu):
    kernel = functools.partial(_dw7_kernel, H=H, W=W, fuse_gelu=fuse_gelu)
    return jax.jit(pl.pallas_call(
        kernel,
        out_shape=jax.ShapeDtypeStruct((N, D, H, W, C), jnp.float32),
        grid=(N, D),
        in_specs=[
            pl.BlockSpec((1, D + 6, H + 6, W + 6, C), lambda n, d: (n, 0, 0, 0, 0)),
            pl.BlockSpec((7, 7, 7, C), lambda n, d: (0, 0, 0, 0)),
            pl.BlockSpec((1, C), lambda n, d: (0, 0)),
        ],
        out_specs=pl.BlockSpec((1, 1, H, W, C), lambda n, d: (n, d, 0, 0, 0)),
        compiler_params=pltpu.CompilerParams(
            dimension_semantics=("parallel", "parallel")),
    ))


def depthwise_conv7(x, w, b, fuse_gelu):
    """Depthwise 3D conv, kernel 7, stride 1, padding 3.
    x: [N, D, H, W, C];  w: [7, 7, 7, C] (correlation);  b: [C]."""
    N, D, H, W_, C = x.shape
    xp = jnp.pad(x, ((0, 0), (3, 3), (3, 3), (3, 3), (0, 0)))
    return _dw7_call(N, C, D, H, W_, fuse_gelu)(
        xp.astype(jnp.float32), w.astype(jnp.float32),
        b.reshape(1, C).astype(jnp.float32))


# ----------------------------------------------------------------------------
# Kernel 2b: depthwise 7x7x7, stride 2, computed directly at output positions
#   depth stride handled by the grid, H/W stride by an (even/odd) parity split
#   of the padded volume done once in the wrapper (polyphase in H/W).
# ----------------------------------------------------------------------------
def _dw7_s2_kernel(x_ref, w_ref, b_ref, o_ref, *, Ho, Wo, fuse_gelu):
    # x_ref: (1, (D+6)*4, Hh, Wh, C) parity-split padded volume, dim1 = dz*4+ph*2+pw
    # o_ref: (1, 1, Ho, Wo, C)
    d = pl.program_id(1)
    C = o_ref.shape[-1]

    def kz_body(kz, acc):
        wz = w_ref[kz]                         # (7, 7, C)
        base = (2 * d + kz) * 4
        for ky in range(7):
            ph, ay = ky % 2, ky // 2
            for kx in range(7):
                pw, ax = kx % 2, kx // 2
                sub = x_ref[0, base + (ph * 2 + pw),
                            ay:ay + Ho, ax:ax + Wo, :]           # (Ho, Wo, C)
                acc = acc + sub * wz[ky, kx:kx + 1, :]
        return acc

    acc = jax.lax.fori_loop(0, 7, kz_body, jnp.zeros((Ho, Wo, C), jnp.float32))
    acc = acc + b_ref[...]
    if fuse_gelu:
        acc = _gelu(acc)
    o_ref[0, 0] = acc


@functools.lru_cache(maxsize=None)
def _dw7_s2_call(N, C, D, H, W, fuse_gelu):
    Do, Ho, Wo = D // 2, H // 2, W // 2
    Hh, Wh = (H + 6) // 2, (W + 6) // 2
    kernel = functools.partial(_dw7_s2_kernel, Ho=Ho, Wo=Wo, fuse_gelu=fuse_gelu)
    return jax.jit(pl.pallas_call(
        kernel,
        out_shape=jax.ShapeDtypeStruct((N, Do, Ho, Wo, C), jnp.float32),
        grid=(N, Do),
        in_specs=[
            pl.BlockSpec((1, (D + 6) * 4, Hh, Wh, C), lambda n, d: (n, 0, 0, 0, 0)),
            pl.BlockSpec((7, 7, 7, C), lambda n, d: (0, 0, 0, 0)),
            pl.BlockSpec((1, C), lambda n, d: (0, 0)),
        ],
        out_specs=pl.BlockSpec((1, 1, Ho, Wo, C), lambda n, d: (n, d, 0, 0, 0)),
        compiler_params=pltpu.CompilerParams(
            dimension_semantics=("parallel", "parallel")),
    ))


def depthwise_conv7_stride2(x, w, b, fuse_gelu):
    """Depthwise 3D conv, kernel 7, stride 2, padding 3 (even D/H/W)."""
    N, D, H, W_, C = x.shape
    xp = jnp.pad(x, ((0, 0), (3, 3), (3, 3), (3, 3), (0, 0)))
    Hh, Wh = (H + 6) // 2, (W_ + 6) // 2
    # parity split on H and W:  xs[n, dz*4+ph*2+pw, i, j, c] = xp[n, dz, 2i+ph, 2j+pw, c]
    xs = xp.reshape(N, D + 6, Hh, 2, Wh, 2, C)
    xs = xs.transpose(0, 1, 3, 5, 2, 4, 6).reshape(N, (D + 6) * 4, Hh, Wh, C)
    return _dw7_s2_call(N, C, D, H, W_, fuse_gelu)(
        xs.astype(jnp.float32), w.astype(jnp.float32),
        b.reshape(1, C).astype(jnp.float32))


def depthwise_convtranspose7_stride2(x, w_corr, b, fuse_gelu):
    # ConvTranspose3d(k=7, s=2, p=3, groups=C)  ==  zero-dilate input by 2, then
    # stride-1 correlation with the spatially flipped kernel and padding k-1-p = 3.
    # TODO(synk): replace with an 8-parity polyphase decomposition (skips the 7/8
    #             taps that currently hit interleaved zeros).
    zero = jnp.zeros((), x.dtype)
    xd = jax.lax.pad(x, zero,
                     ((0, 0, 0), (0, 0, 1), (0, 0, 1), (0, 0, 1), (0, 0, 0)))
    return depthwise_conv7(xd, w_corr, b, fuse_gelu)


# ----------------------------------------------------------------------------
# Kernel 3: fused  pointwise-expand -> GroupNorm -> GELU -> pointwise-contract
#   (the expanded activation stays in VMEM; group statistics via a block-diagonal
#    group-indicator matmul so no in-kernel reshapes/transposes are needed)
# ----------------------------------------------------------------------------
def _fused_block_kernel(x_ref, w2_ref, b2_ref, g_ref, beta_ref, mmt_ref,
                        w3_ref, b3_ref, o_ref, *, eps, inv_count):
    x = x_ref[0]                                                         # (P, C)
    t = jnp.dot(x, w2_ref[...], preferred_element_type=jnp.float32) + b2_ref[...]  # (P, E)
    # per-group statistics (biased variance, matches torch GroupNorm)
    s = jnp.sum(t, axis=0, keepdims=True)                                # (1, E)
    ss = jnp.sum(t * t, axis=0, keepdims=True)                           # (1, E)
    mean = jnp.dot(s, mmt_ref[...], preferred_element_type=jnp.float32) * inv_count
    ex2 = jnp.dot(ss, mmt_ref[...], preferred_element_type=jnp.float32) * inv_count
    var = ex2 - mean * mean
    tn = (t - mean) * jax.lax.rsqrt(var + eps)
    tn = _gelu(tn * g_ref[...] + beta_ref[...])
    o_ref[0] = jnp.dot(tn, w3_ref[...], preferred_element_type=jnp.float32) + b3_ref[...]


@functools.lru_cache(maxsize=None)
def _fused_block_call(N, P, C, E, Co, eps, inv_count):
    kernel = functools.partial(_fused_block_kernel, eps=eps, inv_count=inv_count)
    return jax.jit(pl.pallas_call(
        kernel,
        out_shape=jax.ShapeDtypeStruct((N, P, Co), jnp.float32),
        grid=(N,),
        in_specs=[
            pl.BlockSpec((1, P, C), lambda n: (n, 0, 0)),
            pl.BlockSpec((C, E), lambda n: (0, 0)),
            pl.BlockSpec((1, E), lambda n: (0, 0)),
            pl.BlockSpec((1, E), lambda n: (0, 0)),
            pl.BlockSpec((1, E), lambda n: (0, 0)),
            pl.BlockSpec((E, E), lambda n: (0, 0)),
            pl.BlockSpec((E, Co), lambda n: (0, 0)),
            pl.BlockSpec((1, Co), lambda n: (0, 0)),
        ],
        out_specs=pl.BlockSpec((1, P, Co), lambda n: (n, 0, 0)),
        compiler_params=pltpu.CompilerParams(dimension_semantics=("parallel",)),
    ))


@functools.lru_cache(maxsize=None)
def _group_mask_arr(E, G):
    Cg = E // G
    m = np.kron(np.eye(G, dtype=np.float32), np.ones((Cg, Cg), np.float32))
    return jnp.asarray(m)


def fused_expand_gn_contract(x, p2, pn, p3, groups, eps=1e-5):
    """x: [N, D, H, W, C] -> conv2(1x1) -> GroupNorm -> GELU -> conv3(1x1)."""
    N, D, H, W_, C = x.shape
    P = D * H * W_
    E = p2["w"].shape[1]
    Co = p3["w"].shape[1]
    Cg = E // groups
    xr = x.reshape(N, P, C).astype(jnp.float32)
    mmt = _group_mask_arr(E, groups)
    inv_count = 1.0 / float(P * Cg)
    y = _fused_block_call(N, P, C, E, Co, float(eps), inv_count)(
        xr, p2["w"], p2["b"].reshape(1, E),
        pn["g"].reshape(1, E), pn["b"].reshape(1, E),
        mmt, p3["w"], p3["b"].reshape(1, Co))
    return y.reshape(N, D, H, W_, Co)


# ----------------------------------------------------------------------------
# Module forwards (MedNext / MedDownSample / MedUpSample / Med_Final2)
# ----------------------------------------------------------------------------
def mednext_forward(p, x):
    y = depthwise_conv7(x, p["conv1"]["w"], p["conv1"]["b"], fuse_gelu=True)
    return fused_expand_gn_contract(y, p["conv2"], p["norm"], p["conv3"], p["groups"])


def downsample_forward(p, x):
    y = depthwise_conv7_stride2(x, p["conv1"]["w"], p["conv1"]["b"], fuse_gelu=True)
    y = fused_expand_gn_contract(y, p["conv2"], p["norm"], p["conv3"], p["groups"])
    # residual: Conv3d(C, 2C, kernel 1, stride 2)
    res = pointwise_conv(x[:, ::2, ::2, ::2, :], p["res"]["w"], p["res"]["b"])
    return y + res


def upsample_forward(p, x):
    y = depthwise_convtranspose7_stride2(x, p["conv1"]["w"], p["conv1"]["b"], fuse_gelu=True)
    y = fused_expand_gn_contract(y, p["conv2"], p["norm"], p["conv3"], p["groups"])
    # residual: ConvTranspose3d(C, C//2, kernel 1, stride 2) = pointwise -> zero-dilate -> +bias
    r = pointwise_conv(x, p["res"]["w"], jnp.zeros_like(p["res"]["b"]))
    zero = jnp.zeros((), r.dtype)
    r = jax.lax.pad(r, zero, ((0, 0, 0), (0, 0, 1), (0, 0, 1), (0, 0, 1), (0, 0, 0)))
    r = r + p["res"]["b"]
    out = y + r
    # F.pad(x, (1,0,1,0,1,0)): one zero at the front of W, H, D
    out = jnp.pad(out, ((0, 0), (1, 0), (1, 0), (1, 0), (0, 0)))
    return out


def med_final2_forward(params, x):
    x1 = pointwise_conv(x, params["semm"]["w"], params["semm"]["b"])
    x2 = x1
    for bp in params["med_1"]:
        x2 = mednext_forward(bp, x2)
    x3 = downsample_forward(params["down1"], x2)
    x4 = x3
    for bp in params["med_2"]:
        x4 = mednext_forward(bp, x4)
    x5 = downsample_forward(params["down2"], x4)
    x6 = x5
    for bp in params["med_3"]:
        x6 = mednext_forward(bp, x6)
    x7 = downsample_forward(params["down3"], x6)
    x8 = x7
    for bp in params["med_4"]:
        x8 = mednext_forward(bp, x8)
    x9 = downsample_forward(params["down4"], x8)
    x10 = x9
    for bp in params["med_5"]:
        x10 = mednext_forward(bp, x10)
    x11 = upsample_forward(params["up1"], x10)
    x12 = x11 + x8
    for bp in params["med_6"]:
        x12 = mednext_forward(bp, x12)
    x13 = upsample_forward(params["up2"], x12)
    x14 = x13 + x6
    for bp in params["med_7"]:
        x14 = mednext_forward(bp, x14)
    x15 = upsample_forward(params["up3"], x14)
    x16 = x15 + x4
    for bp in params["med_8"]:
        x16 = mednext_forward(bp, x16)
    x17 = upsample_forward(params["up4"], x16)
    x18 = x17 + x2
    for bp in params["med_9"]:
        x18 = mednext_forward(bp, x18)
    # out = ConvTranspose3d(cin, cout, 1) == pointwise; F.softmax(5D) -> dim=1 (channels)
    x19 = pointwise_conv(x18, params["out"]["w"], params["out"]["b"], act="softmax")
    return x19


# ----------------------------------------------------------------------------
# Deterministic parameter initialization (synthetic; no checkpoint load)
# ----------------------------------------------------------------------------
class KeyGen:
    def __init__(self, key):
        self.key = key

    def __call__(self):
        self.key, sub = jax.random.split(self.key)
        return sub


def init_pointwise(kg, cin, cout):
    return {"w": jax.random.normal(kg(), (cin, cout), jnp.float32) / jnp.sqrt(float(cin)),
            "b": 0.02 * jax.random.normal(kg(), (cout,), jnp.float32)}


def init_depthwise(kg, c):
    # torch Conv3d(groups=C) weight (C,1,7,7,7) -> stored here as (7,7,7,C); Conv = correlation.
    return {"w": 0.05 * jax.random.normal(kg(), (7, 7, 7, c), jnp.float32),
            "b": 0.02 * jax.random.normal(kg(), (c,), jnp.float32)}


def init_depthwise_transpose(kg, c):
    # torch ConvTranspose3d(groups=C) weight; correlation kernel = spatial flip.
    w = 0.05 * jax.random.normal(kg(), (7, 7, 7, c), jnp.float32)
    return {"w": jnp.flip(w, axis=(0, 1, 2)),
            "b": 0.02 * jax.random.normal(kg(), (c,), jnp.float32)}


def init_groupnorm(kg, c):
    return {"g": 1.0 + 0.1 * jax.random.normal(kg(), (c,), jnp.float32),
            "b": 0.1 * jax.random.normal(kg(), (c,), jnp.float32)}


def init_mednext(kg, c, exp):
    return {"conv1": init_depthwise(kg, c),
            "conv2": init_pointwise(kg, c, exp * c),
            "norm": init_groupnorm(kg, exp * c),
            "conv3": init_pointwise(kg, exp * c, c),
            "groups": c}


def init_down(kg, c, exp):
    return {"conv1": init_depthwise(kg, c),
            "conv2": init_pointwise(kg, c, exp * c),
            "norm": init_groupnorm(kg, exp * c),
            "conv3": init_pointwise(kg, exp * c, 2 * c),
            "res": init_pointwise(kg, c, 2 * c),
            "groups": c}


def init_up(kg, c, exp):
    return {"conv1": init_depthwise_transpose(kg, c),
            "conv2": init_pointwise(kg, c, exp * c),
            "norm": init_groupnorm(kg, exp * c),
            "conv3": init_pointwise(kg, exp * c, c // 2),
            "res": init_pointwise(kg, c, c // 2),
            "groups": c}


def init_med_final2(key, cin, cout,
                    exp_rate=(2, 3, 4, 4, 4, 4, 4, 3, 2),
                    num_blocks=(2,) * 9):
    kg = KeyGen(key)
    p = {}
    p["semm"] = init_pointwise(kg, cin, cin)
    p["med_1"] = [init_mednext(kg, cin, exp_rate[0]) for _ in range(num_blocks[0])]
    p["down1"] = init_down(kg, cin, exp_rate[1])
    p["med_2"] = [init_mednext(kg, 2 * cin, exp_rate[1]) for _ in range(num_blocks[1])]
    p["down2"] = init_down(kg, 2 * cin, exp_rate[2])
    p["med_3"] = [init_mednext(kg, 4 * cin, exp_rate[2]) for _ in range(num_blocks[2])]
    p["down3"] = init_down(kg, 4 * cin, exp_rate[3])
    p["med_4"] = [init_mednext(kg, 8 * cin, exp_rate[3]) for _ in range(num_blocks[3])]
    p["down4"] = init_down(kg, 8 * cin, exp_rate[4])
    p["med_5"] = [init_mednext(kg, 16 * cin, exp_rate[4]) for _ in range(num_blocks[4])]
    p["up1"] = init_up(kg, 16 * cin, exp_rate[4])
    p["med_6"] = [init_mednext(kg, 8 * cin, exp_rate[5]) for _ in range(num_blocks[5])]
    p["up2"] = init_up(kg, 8 * cin, exp_rate[5])
    p["med_7"] = [init_mednext(kg, 4 * cin, exp_rate[6]) for _ in range(num_blocks[6])]
    p["up3"] = init_up(kg, 4 * cin, exp_rate[6])
    p["med_8"] = [init_mednext(kg, 2 * cin, exp_rate[7]) for _ in range(num_blocks[7])]
    p["up4"] = init_up(kg, 2 * cin, exp_rate[7])
    p["med_9"] = [init_mednext(kg, cin, exp_rate[8]) for _ in range(num_blocks[8])]
    p["out"] = init_pointwise(kg, cin, cout)
    return p


# ----------------------------------------------------------------------------
if __name__ == "__main__":
    key = jax.random.PRNGKey(0)
    pkey, xkey = jax.random.split(key)
    cin, cout = 4, 4
    # layout: NDHWC; spatial 16 so that 4 encoder downsamples reach 1^3 at the bottleneck
    x = jax.random.normal(xkey, (1, 16, 16, 16, cin), jnp.float32)
    params = init_med_final2(pkey, cin, cout)

    y = med_final2_forward(params, x)
    y = jax.block_until_ready(y)

    assert y.shape == (1, 16, 16, 16, cout), y.shape
    assert bool(jnp.all(jnp.isfinite(y)))
    # final op is softmax over the channel axis -> sums to 1
    assert bool(jnp.allclose(jnp.sum(y, axis=-1), 1.0, atol=1e-4))
    print("KERNEL_OK")
</pallas_src>

<mosaic_0001>
module attributes {stable_mosaic.version = 11 : i64} {
  func.func @_pointwise_kernel(%arg0: i32, %arg1: memref<4096x4xf32, #tpu.memory_space<vmem>>, %arg2: memref<4x4xf32, #tpu.memory_space<vmem>>, %arg3: memref<1x4xf32, #tpu.memory_space<vmem>>, %arg4: memref<4096x4xf32, #tpu.memory_space<vmem>>) attributes {dimension_semantics = [#tpu.dimension_semantics<parallel>], iteration_bounds = array<i64: 1>, scalar_prefetch = 0 : i64, scratch_operands = 0 : i64, tpu.core_type = #tpu.core_type<tc>, window_params = [{transform_indices = @transform_0, window_bounds = array<i64: 4096, 4>}, {pipeline_mode = #tpu.pipeline_mode<synchronous>, transform_indices = @transform_1, window_bounds = array<i64: 4, 4>}, {pipeline_mode = #tpu.pipeline_mode<synchronous>, transform_indices = @transform_2, window_bounds = array<i64: 1, 4>}, {transform_indices = @transform_3, window_bounds = array<i64: 4096, 4>}]} {
    %c0 = arith.constant 0 : index
    %c0_0 = arith.constant 0 : index
    %0 = vector.load %arg1[%c0, %c0_0] : memref<4096x4xf32, #tpu.memory_space<vmem>>, vector<4096x4xf32>
    %c0_1 = arith.constant 0 : index
    %c0_2 = arith.constant 0 : index
    %1 = vector.load %arg2[%c0_1, %c0_2] : memref<4x4xf32, #tpu.memory_space<vmem>>, vector<4x4xf32>
    %cst = arith.constant dense<0.000000e+00> : vector<4096x4xf32>
    %2 = tpu.matmul %0, %1, %cst {dimension_numbers = #tpu.dot_dimension_numbers<[1], [0], [0], [1], [0, 0, 1, 1], [], []>} : vector<4096x4xf32>, vector<4x4xf32>, vector<4096x4xf32> -> vector<4096x4xf32>
    %c0_3 = arith.constant 0 : index
    %c0_4 = arith.constant 0 : index
    %3 = vector.load %arg3[%c0_3, %c0_4] : memref<1x4xf32, #tpu.memory_space<vmem>>, vector<1x4xf32>
    %4 = vector.broadcast %3 : vector<1x4xf32> to vector<4096x4xf32>
    %5 = arith.addf %2, %4 : vector<4096x4xf32>
    %c0_5 = arith.constant 0 : index
    %c0_6 = arith.constant 0 : index
    %6 = vector.load %arg4[%c0_5, %c0_6] : memref<4096x4xf32, #tpu.memory_space<vmem>>, vector<4096x4xf32>
    tpu.vector_store %arg4[%c0_5, %c0_6], %5 {strides = array<i32>} : memref<4096x4xf32, #tpu.memory_space<vmem>>, vector<4096x4xf32>,
    return
  }
  func.func @transform_0(%arg0: i32) -> (i32, i32) {
    %c0_i32 = arith.constant 0 : i32
    %c0_i32_0 = arith.constant 0 : i32
    return %arg0, %c0_i32 : i32, i32
  }
  func.func @transform_1(%arg0: i32) -> (i32, i32) {
    %c0_i32 = arith.constant 0 : i32
    %c0_i32_0 = arith.constant 0 : i32
    %c0_i32_1 = arith.constant 0 : i32
    return %c0_i32, %c0_i32_0 : i32, i32
  }
  func.func @transform_2(%arg0: i32) -> (i32, i32) {
    %c0_i32 = arith.constant 0 : i32
    %c0_i32_0 = arith.constant 0 : i32
    %c0_i32_1 = arith.constant 0 : i32
    return %c0_i32, %c0_i32_0 : i32, i32
  }
  func.func @transform_3(%arg0: i32) -> (i32, i32) {
    %c0_i32 = arith.constant 0 : i32
    %c0_i32_0 = arith.constant 0 : i32
    return %arg0, %c0_i32 : i32, i32
  }
}

</mosaic_0001>

<llo_original>
// kernel: tpu_custom_call.1
$region0: #{tpu_custom_call.1}
  #allocation0 [shape = 'u32[]', space=smem, size = 0x4, offset = 0x4, fixed_abs, tag = 'smem constant byte address 0x4 - core index']
  #allocation1 [shape = 'u32[144,128]{1,0:T(1,128)}', space=vmem, size = 0x12000, scoped, tag = 'internal scratch']
  %s0 = inlined_call_operand.vmem [shape: f32[4096,4], index: 0, kind: input, shape index: {}]
  %s1 = inlined_call_operand.vmem [shape: f32[4,4], index: 1, kind: input, shape index: {}]
  %s2 = inlined_call_operand.vmem [shape: f32[1,4], index: 2, kind: input, shape index: {}]
  %s3 = inlined_call_operand.vmem [shape: f32[4096,4], index: 3, kind: output, shape index: {}]
  %s4 = sld [smem:[#allocation0]]
  $region22: #{tpu_custom_call.1} parent=0
    _
  %s6 = ssub.s32 1, %s4
  %s7 = scalar_select 0, %s6, %s4
  // Predicated region
  $region2: #{tpu_custom_call.1} parent=0 // pred_check
    _
  $region3: #{tpu_custom_call.1} parent=0 // pred_check_branch
    %9 = sbr.rel (0) target = $region5
  $region4: #{tpu_custom_call.1} parent=0 // pred_region
    _
  $region5: #{tpu_custom_call.1} parent=0 // pred_fallthru
    _
  // Predicated region
  $region6: #{tpu_custom_call.1} parent=0 // pred_check
    _
  $region7: #{tpu_custom_call.1} parent=0 // pred_check_branch
    %11 = sbr.rel (0) target = $region9
  $region8: #{tpu_custom_call.1} parent=0 // pred_region
    _
  $region9: #{tpu_custom_call.1} parent=0 // pred_fallthru
    _
  // Predicated region
  $region10: #{tpu_custom_call.1} parent=0 // pred_check
    _
  $region11: #{tpu_custom_call.1} parent=0 // pred_check_branch
    %13 = sbr.rel (0) target = $region13
  $region12: #{tpu_custom_call.1} parent=0 // pred_region
    _
  $region13: #{tpu_custom_call.1} parent=0 // pred_fallthru
    _
  %v14 = vld [vmem:[%s0] sm:$0xff]
  %v15 = vld [vmem:[%s0 + $0x8] sm:$0xff]
  %v16 = vld [vmem:[%s0 + $0x10] sm:$0xff]
  %v17 = vld [vmem:[%s0 + $0x18] sm:$0xff]
  %v18 = vld [vmem:[%s0 + $0x20] sm:$0xff]
  %v19 = vld [vmem:[%s0 + $0x28] sm:$0xff]
  %v20 = vld [vmem:[%s0 + $0x30] sm:$0xff]
  %v21 = vld [vmem:[%s0 + $0x38] sm:$0xff]
  %v22 = vld [vmem:[%s0 + $0x40] sm:$0xff]
  %v23 = vld [vmem:[%s0 + $0x48] sm:$0xff]
  %v24 = vld [vmem:[%s0 + $0x50] sm:$0xff]
  %v25 = vld [vmem:[%s0 + $0x58] sm:$0xff]
  %v26 = vld [vmem:[%s0 + $0x60] sm:$0xff]
  %v27 = vld [vmem:[%s0 + $0x68] sm:$0xff]
  %v28 = vld [vmem:[%s0 + $0x70] sm:$0xff]
  %v29 = vld [vmem:[%s0 + $0x78] sm:$0xff]
  %v30 = vld [vmem:[%s0 + $0x80] sm:$0xff]
  %v31 = vld [vmem:[%s0 + $0x88] sm:$0xff]
  %v32 = vld [vmem:[%s0 + $0x90] sm:$0xff]
  %v33 = vld [vmem:[%s0 + $0x98] sm:$0xff]
  %v34 = vld [vmem:[%s0 + $0xa0] sm:$0xff]
  %v35 = vld [vmem:[%s0 + $0xa8] sm:$0xff]
  %v36 = vld [vmem:[%s0 + $0xb0] sm:$0xff]
  %v37 = vld [vmem:[%s0 + $0xb8] sm:$0xff]
  %v38 = vld [vmem:[%s0 + $0xc0] sm:$0xff]
  %v39 = vld [vmem:[%s0 + $0xc8] sm:$0xff]
  %v40 = vld [vmem:[%s0 + $0xd0] sm:$0xff]
  %v41 = vld [vmem:[%s0 + $0xd8] sm:$0xff]
  %v42 = vld [vmem:[%s0 + $0xe0] sm:$0xff]
  %v43 = vld [vmem:[%s0 + $0xe8] sm:$0xff]
  %v44 = vld [vmem:[%s0 + $0xf0] sm:$0xff]
  %v45 = vld [vmem:[%s0 + $0xf8] sm:$0xff]
  %v46 = vld [vmem:[%s0 + $0x100] sm:$0xff]
  %v47 = vld [vmem:[%s0 + $0x108] sm:$0xff]
  %v48 = vld [vmem:[%s0 + $0x110] sm:$0xff]
  %v49 = vld [vmem:[%s0 + $0x118] sm:$0xff]
  %v50 = vld [vmem:[%s0 + $0x120] sm:$0xff]
  %v51 = vld [vmem:[%s0 + $0x128] sm:$0xff]
  %v52 = vld [vmem:[%s0 + $0x130] sm:$0xff]
  %v53 = vld [vmem:[%s0 + $0x138] sm:$0xff]
  %v54 = vld [vmem:[%s0 + $0x140] sm:$0xff]
  %v55 = vld [vmem:[%s0 + $0x148] sm:$0xff]
  %v56 = vld [vmem:[%s0 + $0x150] sm:$0xff]
  %v57 = vld [vmem:[%s0 + $0x158] sm:$0xff]
  %v58 = vld [vmem:[%s0 + $0x160] sm:$0xff]
  %v59 = vld [vmem:[%s0 + $0x168] sm:$0xff]
  %v60 = vld [vmem:[%s0 + $0x170] sm:$0xff]
  %v61 = vld [vmem:[%s0 + $0x178] sm:$0xff]
  %v62 = vld [vmem:[%s0 + $0x180] sm:$0xff]
  %v63 = vld [vmem:[%s0 + $0x188] sm:$0xff]
  %v64 = vld [vmem:[%s0 + $0x190] sm:$0xff]
  %v65 = vld [vmem:[%s0 + $0x198] sm:$0xff]
  %v66 = vld [vmem:[%s0 + $0x1a0] sm:$0xff]
  %v67 = vld [vmem:[%s0 + $0x1a8] sm:$0xff]
  %v68 = vld [vmem:[%s0 + $0x1b0] sm:$0xff]
  %v69 = vld [vmem:[%s0 + $0x1b8] sm:$0xff]
  %v70 = vld [vmem:[%s0 + $0x1c0] sm:$0xff]
  %v71 = vld [vmem:[%s0 + $0x1c8] sm:$0xff]
  %v72 = vld [vmem:[%s0 + $0x1d0] sm:$0xff]
  %v73 = vld [vmem:[%s0 + $0x1d8] sm:$0xff]
  %v74 = vld [vmem:[%s0 + $0x1e0] sm:$0xff]
  %v75 = vld [vmem:[%s0 + $0x1e8] sm:$0xff]
  %v76 = vld [vmem:[%s0 + $0x1f0] sm:$0xff]
  %v77 = vld [vmem:[%s0 + $0x1f8] sm:$0xff]
  %v78 = vld [vmem:[%s0 + $0x200] sm:$0xff]
  %v79 = vld [vmem:[%s0 + $0x208] sm:$0xff]
  %v80 = vld [vmem:[%s0 + $0x210] sm:$0xff]
  %v81 = vld [vmem:[%s0 + $0x218] sm:$0xff]
  %v82 = vld [vmem:[%s0 + $0x220] sm:$0xff]
  %v83 = vld [vmem:[%s0 + $0x228] sm:$0xff]
  %v84 = vld [vmem:[%s0 + $0x230] sm:$0xff]
  %v85 = vld [vmem:[%s0 + $0x238] sm:$0xff]
  %v86 = vld [vmem:[%s0 + $0x240] sm:$0xff]
  %v87 = vld [vmem:[%s0 + $0x248] sm:$0xff]
  %v88 = vld [vmem:[%s0 + $0x250] sm:$0xff]
  %v89 = vld [vmem:[%s0 + $0x258] sm:$0xff]
  %v90 = vld [vmem:[%s0 + $0x260] sm:$0xff]
  %v91 = vld [vmem:[%s0 + $0x268] sm:$0xff]
  %v92 = vld [vmem:[%s0 + $0x270] sm:$0xff]
  %v93 = vld [vmem:[%s0 + $0x278] sm:$0xff]
  %v94 = vld [vmem:[%s0 + $0x280] sm:$0xff]
  %v95 = vld [vmem:[%s0 + $0x288] sm:$0xff]
  %v96 = vld [vmem:[%s0 + $0x290] sm:$0xff]
  %v97 = vld [vmem:[%s0 + $0x298] sm:$0xff]
  %v98 = vld [vmem:[%s0 + $0x2a0] sm:$0xff]
  %v99 = vld [vmem:[%s0 + $0x2a8] sm:$0xff]
  %v100 = vld [vmem:[%s0 + $0x2b0] sm:$0xff]
  %v101 = vld [vmem:[%s0 + $0x2b8] sm:$0xff]
  %v102 = vld [vmem:[%s0 + $0x2c0] sm:$0xff]
  %v103 = vld [vmem:[%s0 + $0x2c8] sm:$0xff]
  %v104 = vld [vmem:[%s0 + $0x2d0] sm:$0xff]
  %v105 = vld [vmem:[%s0 + $0x2d8] sm:$0xff]
  %v106 = vld [vmem:[%s0 + $0x2e0] sm:$0xff]
  %v107 = vld [vmem:[%s0 + $0x2e8] sm:$0xff]
  %v108 = vld [vmem:[%s0 + $0x2f0] sm:$0xff]
  %v109 = vld [vmem:[%s0 + $0x2f8] sm:$0xff]
  %v110 = vld [vmem:[%s0 + $0x300] sm:$0xff]
  %v111 = vld [vmem:[%s0 + $0x308] sm:$0xff]
  %v112 = vld [vmem:[%s0 + $0x310] sm:$0xff]
  %v113 = vld [vmem:[%s0 + $0x318] sm:$0xff]
  %v114 = vld [vmem:[%s0 + $0x320] sm:$0xff]
  %v115 = vld [vmem:[%s0 + $0x328] sm:$0xff]
  %v116 = vld [vmem:[%s0 + $0x330] sm:$0xff]
  %v117 = vld [vmem:[%s0 + $0x338] sm:$0xff]
  %v118 = vld [vmem:[%s0 + $0x340] sm:$0xff]
  %v119 = vld [vmem:[%s0 + $0x348] sm:$0xff]
  %v120 = vld [vmem:[%s0 + $0x350] sm:$0xff]
  %v121 = vld [vmem:[%s0 + $0x358] sm:$0xff]
  %v122 = vld [vmem:[%s0 + $0x360] sm:$0xff]
  %v123 = vld [vmem:[%s0 + $0x368] sm:$0xff]
  %v124 = vld [vmem:[%s0 + $0x370] sm:$0xff]
  %v125 = vld [vmem:[%s0 + $0x378] sm:$0xff]
  %v126 = vld [vmem:[%s0 + $0x380] sm:$0xff]
  %v127 = vld [vmem:[%s0 + $0x388] sm:$0xff]
  %v128 = vld [vmem:[%s0 + $0x390] sm:$0xff]
  %v129 = vld [vmem:[%s0 + $0x398] sm:$0xff]
  %v130 = vld [vmem:[%s0 + $0x3a0] sm:$0xff]
  %v131 = vld [vmem:[%s0 + $0x3a8] sm:$0xff]
  %v132 = vld [vmem:[%s0 + $0x3b0] sm:$0xff]
  %v133 = vld [vmem:[%s0 + $0x3b8] sm:$0xff]
  %v134 = vld [vmem:[%s0 + $0x3c0] sm:$0xff]
  %v135 = vld [vmem:[%s0 + $0x3c8] sm:$0xff]
  %v136 = vld [vmem:[%s0 + $0x3d0] sm:$0xff]
  %v137 = vld [vmem:[%s0 + $0x3d8] sm:$0xff]
  %v138 = vld [vmem:[%s0 + $0x3e0] sm:$0xff]
  %v139 = vld [vmem:[%s0 + $0x3e8] sm:$0xff]
  %v140 = vld [vmem:[%s0 + $0x3f0] sm:$0xff]
  %v141 = vld [vmem:[%s0 + $0x3f8] sm:$0xff]
  %v142 = vld [vmem:[%s0 + $0x400] sm:$0xff]
  %v143 = vld [vmem:[%s0 + $0x408] sm:$0xff]
  %v144 = vld [vmem:[%s0 + $0x410] sm:$0xff]
  %v145 = vld [vmem:[%s0 + $0x418] sm:$0xff]
  %v146 = vld [vmem:[%s0 + $0x420] sm:$0xff]
  %v147 = vld [vmem:[%s0 + $0x428] sm:$0xff]
  %v148 = vld [vmem:[%s0 + $0x430] sm:$0xff]
  %v149 = vld [vmem:[%s0 + $0x438] sm:$0xff]
  %v150 = vld [vmem:[%s0 + $0x440] sm:$0xff]
  %v151 = vld [vmem:[%s0 + $0x448] sm:$0xff]
  %v152 = vld [vmem:[%s0 + $0x450] sm:$0xff]
  %v153 = vld [vmem:[%s0 + $0x458] sm:$0xff]
  %v154 = vld [vmem:[%s0 + $0x460] sm:$0xff]
  %v155 = vld [vmem:[%s0 + $0x468] sm:$0xff]
  %v156 = vld [vmem:[%s0 + $0x470] sm:$0xff]
  %v157 = vld [vmem:[%s0 + $0x478] sm:$0xff]
  %v158 = vld [vmem:[%s0 + $0x480] sm:$0xff]
  %v159 = vld [vmem:[%s0 + $0x488] sm:$0xff]
  %v160 = vld [vmem:[%s0 + $0x490] sm:$0xff]
  %v161 = vld [vmem:[%s0 + $0x498] sm:$0xff]
  %v162 = vld [vmem:[%s0 + $0x4a0] sm:$0xff]
  %v163 = vld [vmem:[%s0 + $0x4a8] sm:$0xff]
  %v164 = vld [vmem:[%s0 + $0x4b0] sm:$0xff]
  %v165 = vld [vmem:[%s0 + $0x4b8] sm:$0xff]
  %v166 = vld [vmem:[%s0 + $0x4c0] sm:$0xff]
  %v167 = vld [vmem:[%s0 + $0x4c8] sm:$0xff]
  %v168 = vld [vmem:[%s0 + $0x4d0] sm:$0xff]
  %v169 = vld [vmem:[%s0 + $0x4d8] sm:$0xff]
  %v170 = vld [vmem:[%s0 + $0x4e0] sm:$0xff]
  %v171 = vld [vmem:[%s0 + $0x4e8] sm:$0xff]
  %v172 = vld [vmem:[%s0 + $0x4f0] sm:$0xff]
  %v173 = vld [vmem:[%s0 + $0x4f8] sm:$0xff]
  %v174 = vld [vmem:[%s0 + $0x500] sm:$0xff]
  %v175 = vld [vmem:[%s0 + $0x508] sm:$0xff]
  %v176 = vld [vmem:[%s0 + $0x510] sm:$0xff]
  %v177 = vld [vmem:[%s0 + $0x518] sm:$0xff]
  %v178 = vld [vmem:[%s0 + $0x520] sm:$0xff]
  %v179 = vld [vmem:[%s0 + $0x528] sm:$0xff]
  %v180 = vld [vmem:[%s0 + $0x530] sm:$0xff]
  %v181 = vld [vmem:[%s0 + $0x538] sm:$0xff]
  %v182 = vld [vmem:[%s0 + $0x540] sm:$0xff]
  %v183 = vld [vmem:[%s0 + $0x548] sm:$0xff]
  %v184 = vld [vmem:[%s0 + $0x550] sm:$0xff]
  %v185 = vld [vmem:[%s0 + $0x558] sm:$0xff]
  %v186 = vld [vmem:[%s0 + $0x560] sm:$0xff]
  %v187 = vld [vmem:[%s0 + $0x568] sm:$0xff]
  %v188 = vld [vmem:[%s0 + $0x570] sm:$0xff]
  %v189 = vld [vmem:[%s0 + $0x578] sm:$0xff]
  %v190 = vld [vmem:[%s0 + $0x580] sm:$0xff]
  %v191 = vld [vmem:[%s0 + $0x588] sm:$0xff]
  %v192 = vld [vmem:[%s0 + $0x590] sm:$0xff]
  %v193 = vld [vmem:[%s0 + $0x598] sm:$0xff]
  %v194 = vld [vmem:[%s0 + $0x5a0] sm:$0xff]
  %v195 = vld [vmem:[%s0 + $0x5a8] sm:$0xff]
  %v196 = vld [vmem:[%s0 + $0x5b0] sm:$0xff]
  %v197 = vld [vmem:[%s0 + $0x5b8] sm:$0xff]
  %v198 = vld [vmem:[%s0 + $0x5c0] sm:$0xff]
  %v199 = vld [vmem:[%s0 + $0x5c8] sm:$0xff]
  %v200 = vld [vmem:[%s0 + $0x5d0] sm:$0xff]
  %v201 = vld [vmem:[%s0 + $0x5d8] sm:$0xff]
  %v202 = vld [vmem:[%s0 + $0x5e0] sm:$0xff]
  %v203 = vld [vmem:[%s0 + $0x5e8] sm:$0xff]
  %v204 = vld [vmem:[%s0 + $0x5f0] sm:$0xff]
  %v205 = vld [vmem:[%s0 + $0x5f8] sm:$0xff]
  %v206 = vld [vmem:[%s0 + $0x600] sm:$0xff]
  %v207 = vld [vmem:[%s0 + $0x608] sm:$0xff]
  %v208 = vld [vmem:[%s0 + $0x610] sm:$0xff]
  %v209 = vld [vmem:[%s0 + $0x618] sm:$0xff]
  %v210 = vld [vmem:[%s0 + $0x620] sm:$0xff]
  %v211 = vld [vmem:[%s0 + $0x628] sm:$0xff]
  %v212 = vld [vmem:[%s0 + $0x630] sm:$0xff]
  %v213 = vld [vmem:[%s0 + $0x638] sm:$0xff]
  %v214 = vld [vmem:[%s0 + $0x640] sm:$0xff]
  %v215 = vld [vmem:[%s0 + $0x648] sm:$0xff]
  %v216 = vld [vmem:[%s0 + $0x650] sm:$0xff]
  %v217 = vld [vmem:[%s0 + $0x658] sm:$0xff]
  %v218 = vld [vmem:[%s0 + $0x660] sm:$0xff]
  %v219 = vld [vmem:[%s0 + $0x668] sm:$0xff]
  %v220 = vld [vmem:[%s0 + $0x670] sm:$0xff]
  %v221 = vld [vmem:[%s0 + $0x678] sm:$0xff]
  %v222 = vld [vmem:[%s0 + $0x680] sm:$0xff]
  %v223 = vld [vmem:[%s0 + $0x688] sm:$0xff]
  %v224 = vld [vmem:[%s0 + $0x690] sm:$0xff]
  %v225 = vld [vmem:[%s0 + $0x698] sm:$0xff]
  %v226 = vld [vmem:[%s0 + $0x6a0] sm:$0xff]
  %v227 = vld [vmem:[%s0 + $0x6a8] sm:$0xff]
  %v228 = vld [vmem:[%s0 + $0x6b0] sm:$0xff]
  %v229 = vld [vmem:[%s0 + $0x6b8] sm:$0xff]
  %v230 = vld [vmem:[%s0 + $0x6c0] sm:$0xff]
  %v231 = vld [vmem:[%s0 + $0x6c8] sm:$0xff]
  %v232 = vld [vmem:[%s0 + $0x6d0] sm:$0xff]
  %v233 = vld [vmem:[%s0 + $0x6d8] sm:$0xff]
  %v234 = vld [vmem:[%s0 + $0x6e0] sm:$0xff]
  %v235 = vld [vmem:[%s0 + $0x6e8] sm:$0xff]
  %v236 = vld [vmem:[%s0 + $0x6f0] sm:$0xff]
  %v237 = vld [vmem:[%s0 + $0x6f8] sm:$0xff]
  %v238 = vld [vmem:[%s0 + $0x700] sm:$0xff]
  %v239 = vld [vmem:[%s0 + $0x708] sm:$0xff]
  %v240 = vld [vmem:[%s0 + $0x710] sm:$0xff]
  %v241 = vld [vmem:[%s0 + $0x718] sm:$0xff]
  %v242 = vld [vmem:[%s0 + $0x720] sm:$0xff]
  %v243 = vld [vmem:[%s0 + $0x728] sm:$0xff]
  %v244 = vld [vmem:[%s0 + $0x730] sm:$0xff]
  %v245 = vld [vmem:[%s0 + $0x738] sm:$0xff]
  %v246 = vld [vmem:[%s0 + $0x740] sm:$0xff]
  %v247 = vld [vmem:[%s0 + $0x748] sm:$0xff]
  %v248 = vld [vmem:[%s0 + $0x750] sm:$0xff]
  %v249 = vld [vmem:[%s0 + $0x758] sm:$0xff]
  %v250 = vld [vmem:[%s0 + $0x760] sm:$0xff]
  %v251 = vld [vmem:[%s0 + $0x768] sm:$0xff]
  %v252 = vld [vmem:[%s0 + $0x770] sm:$0xff]
  %v253 = vld [vmem:[%s0 + $0x778] sm:$0xff]
  %v254 = vld [vmem:[%s0 + $0x780] sm:$0xff]
  %v255 = vld [vmem:[%s0 + $0x788] sm:$0xff]
  %v256 = vld [vmem:[%s0 + $0x790] sm:$0xff]
  %v257 = vld [vmem:[%s0 + $0x798] sm:$0xff]
  %v258 = vld [vmem:[%s0 + $0x7a0] sm:$0xff]
  %v259 = vld [vmem:[%s0 + $0x7a8] sm:$0xff]
  %v260 = vld [vmem:[%s0 + $0x7b0] sm:$0xff]
  %v261 = vld [vmem:[%s0 + $0x7b8] sm:$0xff]
  %v262 = vld [vmem:[%s0 + $0x7c0] sm:$0xff]
  %v263 = vld [vmem:[%s0 + $0x7c8] sm:$0xff]
  %v264 = vld [vmem:[%s0 + $0x7d0] sm:$0xff]
  %v265 = vld [vmem:[%s0 + $0x7d8] sm:$0xff]
  %v266 = vld [vmem:[%s0 + $0x7e0] sm:$0xff]
  %v267 = vld [vmem:[%s0 + $0x7e8] sm:$0xff]
  %v268 = vld [vmem:[%s0 + $0x7f0] sm:$0xff]
  %v269 = vld [vmem:[%s0 + $0x7f8] sm:$0xff]
  %v270 = vld [vmem:[%s0 + $0x800] sm:$0xff]
  %v271 = vld [vmem:[%s0 + $0x808] sm:$0xff]
  %v272 = vld [vmem:[%s0 + $0x810] sm:$0xff]
  %v273 = vld [vmem:[%s0 + $0x818] sm:$0xff]
  %v274 = vld [vmem:[%s0 + $0x820] sm:$0xff]
  %v275 = vld [vmem:[%s0 + $0x828] sm:$0xff]
  %v276 = vld [vmem:[%s0 + $0x830] sm:$0xff]
  %v277 = vld [vmem:[%s0 + $0x838] sm:$0xff]
  %v278 = vld [vmem:[%s0 + $0x840] sm:$0xff]
  %v279 = vld [vmem:[%s0 + $0x848] sm:$0xff]
  %v280 = vld [vmem:[%s0 + $0x850] sm:$0xff]
  %v281 = vld [vmem:[%s0 + $0x858] sm:$0xff]
  %v282 = vld [vmem:[%s0 + $0x860] sm:$0xff]
  %v283 = vld [vmem:[%s0 + $0x868] sm:$0xff]
  %v284 = vld [vmem:[%s0 + $0x870] sm:$0xff]
  %v285 = vld [vmem:[%s0 + $0x878] sm:$0xff]
  %v286 = vld [vmem:[%s0 + $0x880] sm:$0xff]
  %v287 = vld [vmem:[%s0 + $0x888] sm:$0xff]
  %v288 = vld [vmem:[%s0 + $0x890] sm:$0xff]
  %v289 = vld [vmem:[%s0 + $0x898] sm:$0xff]
  %v290 = vld [vmem:[%s0 + $0x8a0] sm:$0xff]
  %v291 = vld [vmem:[%s0 + $0x8a8] sm:$0xff]
  %v292 = vld [vmem:[%s0 + $0x8b0] sm:$0xff]
  %v293 = vld [vmem:[%s0 + $0x8b8] sm:$0xff]
  %v294 = vld [vmem:[%s0 + $0x8c0] sm:$0xff]
  %v295 = vld [vmem:[%s0 + $0x8c8] sm:$0xff]
  %v296 = vld [vmem:[%s0 + $0x8d0] sm:$0xff]
  %v297 = vld [vmem:[%s0 + $0x8d8] sm:$0xff]
  %v298 = vld [vmem:[%s0 + $0x8e0] sm:$0xff]
  %v299 = vld [vmem:[%s0 + $0x8e8] sm:$0xff]
  %v300 = vld [vmem:[%s0 + $0x8f0] sm:$0xff]
  %v301 = vld [vmem:[%s0 + $0x8f8] sm:$0xff]
  %v302 = vld [vmem:[%s0 + $0x900] sm:$0xff]
  %v303 = vld [vmem:[%s0 + $0x908] sm:$0xff]
  %v304 = vld [vmem:[%s0 + $0x910] sm:$0xff]
  %v305 = vld [vmem:[%s0 + $0x918] sm:$0xff]
  %v306 = vld [vmem:[%s0 + $0x920] sm:$0xff]
  %v307 = vld [vmem:[%s0 + $0x928] sm:$0xff]
  %v308 = vld [vmem:[%s0 + $0x930] sm:$0xff]
  %v309 = vld [vmem:[%s0 + $0x938] sm:$0xff]
  %v310 = vld [vmem:[%s0 + $0x940] sm:$0xff]
  %v311 = vld [vmem:[%s0 + $0x948] sm:$0xff]
  %v312 = vld [vmem:[%s0 + $0x950] sm:$0xff]
  %v313 = vld [vmem:[%s0 + $0x958] sm:$0xff]
  %v314 = vld [vmem:[%s0 + $0x960] sm:$0xff]
  %v315 = vld [vmem:[%s0 + $0x968] sm:$0xff]
  %v316 = vld [vmem:[%s0 + $0x970] sm:$0xff]
  %v317 = vld [vmem:[%s0 + $0x978] sm:$0xff]
  %v318 = vld [vmem:[%s0 + $0x980] sm:$0xff]
  %v319 = vld [vmem:[%s0 + $0x988] sm:$0xff]
  %v320 = vld [vmem:[%s0 + $0x990] sm:$0xff]
  %v321 = vld [vmem:[%s0 + $0x998] sm:$0xff]
  %v322 = vld [vmem:[%s0 + $0x9a0] sm:$0xff]
  %v323 = vld [vmem:[%s0 + $0x9a8] sm:$0xff]
  %v324 = vld [vmem:[%s0 + $0x9b0] sm:$0xff]
  %v325 = vld [vmem:[%s0 + $0x9b8] sm:$0xff]
  %v326 = vld [vmem:[%s0 + $0x9c0] sm:$0xff]
  %v327 = vld [vmem:[%s0 + $0x9c8] sm:$0xff]
  %v328 = vld [vmem:[%s0 + $0x9d0] sm:$0xff]
  %v329 = vld [vmem:[%s0 + $0x9d8] sm:$0xff]
  %v330 = vld [vmem:[%s0 + $0x9e0] sm:$0xff]
  %v331 = vld [vmem:[%s0 + $0x9e8] sm:$0xff]
  %v332 = vld [vmem:[%s0 + $0x9f0] sm:$0xff]
  %v333 = vld [vmem:[%s0 + $0x9f8] sm:$0xff]
  %v334 = vld [vmem:[%s0 + $0xa00] sm:$0xff]
  %v335 = vld [vmem:[%s0 + $0xa08] sm:$0xff]
  %v336 = vld [vmem:[%s0 + $0xa10] sm:$0xff]
  %v337 = vld [vmem:[%s0 + $0xa18] sm:$0xff]
  %v338 = vld [vmem:[%s0 + $0xa20] sm:$0xff]
  %v339 = vld [vmem:[%s0 + $0xa28] sm:$0xff]
  %v340 = vld [vmem:[%s0 + $0xa30] sm:$0xff]
  %v341 = vld [vmem:[%s0 + $0xa38] sm:$0xff]
  %v342 = vld [vmem:[%s0 + $0xa40] sm:$0xff]
  %v343 = vld [vmem:[%s0 + $0xa48] sm:$0xff]
  %v344 = vld [vmem:[%s0 + $0xa50] sm:$0xff]
  %v345 = vld [vmem:[%s0 + $0xa58] sm:$0xff]
  %v346 = vld [vmem:[%s0 + $0xa60] sm:$0xff]
  %v347 = vld [vmem:[%s0 + $0xa68] sm:$0xff]
  %v348 = vld [vmem:[%s0 + $0xa70] sm:$0xff]
  %v349 = vld [vmem:[%s0 + $0xa78] sm:$0xff]
  %v350 = vld [vmem:[%s0 + $0xa80] sm:$0xff]
  %v351 = vld [vmem:[%s0 + $0xa88] sm:$0xff]
  %v352 = vld [vmem:[%s0 + $0xa90] sm:$0xff]
  %v353 = vld [vmem:[%s0 + $0xa98] sm:$0xff]
  %v354 = vld [vmem:[%s0 + $0xaa0] sm:$0xff]
  %v355 = vld [vmem:[%s0 + $0xaa8] sm:$0xff]
  %v356 = vld [vmem:[%s0 + $0xab0] sm:$0xff]
  %v357 = vld [vmem:[%s0 + $0xab8] sm:$0xff]
  %v358 = vld [vmem:[%s0 + $0xac0] sm:$0xff]
  %v359 = vld [vmem:[%s0 + $0xac8] sm:$0xff]
  %v360 = vld [vmem:[%s0 + $0xad0] sm:$0xff]
  %v361 = vld [vmem:[%s0 + $0xad8] sm:$0xff]
  %v362 = vld [vmem:[%s0 + $0xae0] sm:$0xff]
  %v363 = vld [vmem:[%s0 + $0xae8] sm:$0xff]
  %v364 = vld [vmem:[%s0 + $0xaf0] sm:$0xff]
  %v365 = vld [vmem:[%s0 + $0xaf8] sm:$0xff]
  %v366 = vld [vmem:[%s0 + $0xb00] sm:$0xff]
  %v367 = vld [vmem:[%s0 + $0xb08] sm:$0xff]
  %v368 = vld [vmem:[%s0 + $0xb10] sm:$0xff]
  %v369 = vld [vmem:[%s0 + $0xb18] sm:$0xff]
  %v370 = vld [vmem:[%s0 + $0xb20] sm:$0xff]
  %v371 = vld [vmem:[%s0 + $0xb28] sm:$0xff]
  %v372 = vld [vmem:[%s0 + $0xb30] sm:$0xff]
  %v373 = vld [vmem:[%s0 + $0xb38] sm:$0xff]
  %v374 = vld [vmem:[%s0 + $0xb40] sm:$0xff]
  %v375 = vld [vmem:[%s0 + $0xb48] sm:$0xff]
  %v376 = vld [vmem:[%s0 + $0xb50] sm:$0xff]
  %v377 = vld [vmem:[%s0 + $0xb58] sm:$0xff]
  %v378 = vld [vmem:[%s0 + $0xb60] sm:$0xff]
  %v379 = vld [vmem:[%s0 + $0xb68] sm:$0xff]
  %v380 = vld [vmem:[%s0 + $0xb70] sm:$0xff]
  %v381 = vld [vmem:[%s0 + $0xb78] sm:$0xff]
  %v382 = vld [vmem:[%s0 + $0xb80] sm:$0xff]
  %v383 = vld [vmem:[%s0 + $0xb88] sm:$0xff]
  %v384 = vld [vmem:[%s0 + $0xb90] sm:$0xff]
  %v385 = vld [vmem:[%s0 + $0xb98] sm:$0xff]
  %v386 = vld [vmem:[%s0 + $0xba0] sm:$0xff]
  %v387 = vld [vmem:[%s0 + $0xba8] sm:$0xff]
  %v388 = vld [vmem:[%s0 + $0xbb0] sm:$0xff]
  %v389 = vld [vmem:[%s0 + $0xbb8] sm:$0xff]
  %v390 = vld [vmem:[%s0 + $0xbc0] sm:$0xff]
  %v391 = vld [vmem:[%s0 + $0xbc8] sm:$0xff]
  %v392 = vld [vmem:[%s0 + $0xbd0] sm:$0xff]
  %v393 = vld [vmem:[%s0 + $0xbd8] sm:$0xff]
  %v394 = vld [vmem:[%s0 + $0xbe0] sm:$0xff]
  %v395 = vld [vmem:[%s0 + $0xbe8] sm:$0xff]
  %v396 = vld [vmem:[%s0 + $0xbf0] sm:$0xff]
  %v397 = vld [vmem:[%s0 + $0xbf8] sm:$0xff]
  %v398 = vld [vmem:[%s0 + $0xc00] sm:$0xff]
  %v399 = vld [vmem:[%s0 + $0xc08] sm:$0xff]
  %v400 = vld [vmem:[%s0 + $0xc10] sm:$0xff]
  %v401 = vld [vmem:[%s0 + $0xc18] sm:$0xff]
  %v402 = vld [vmem:[%s0 + $0xc20] sm:$0xff]
  %v403 = vld [vmem:[%s0 + $0xc28] sm:$0xff]
  %v404 = vld [vmem:[%s0 + $0xc30] sm:$0xff]
  %v405 = vld [vmem:[%s0 + $0xc38] sm:$0xff]
  %v406 = vld [vmem:[%s0 + $0xc40] sm:$0xff]
  %v407 = vld [vmem:[%s0 + $0xc48] sm:$0xff]
  %v408 = vld [vmem:[%s0 + $0xc50] sm:$0xff]
  %v409 = vld [vmem:[%s0 + $0xc58] sm:$0xff]
  %v410 = vld [vmem:[%s0 + $0xc60] sm:$0xff]
  %v411 = vld [vmem:[%s0 + $0xc68] sm:$0xff]
  %v412 = vld [vmem:[%s0 + $0xc70] sm:$0xff]
  %v413 = vld [vmem:[%s0 + $0xc78] sm:$0xff]
  %v414 = vld [vmem:[%s0 + $0xc80] sm:$0xff]
  %v415 = vld [vmem:[%s0 + $0xc88] sm:$0xff]
  %v416 = vld [vmem:[%s0 + $0xc90] sm:$0xff]
  %v417 = vld [vmem:[%s0 + $0xc98] sm:$0xff]
  %v418 = vld [vmem:[%s0 + $0xca0] sm:$0xff]
  %v419 = vld [vmem:[%s0 + $0xca8] sm:$0xff]
  %v420 = vld [vmem:[%s0 + $0xcb0] sm:$0xff]
  %v421 = vld [vmem:[%s0 + $0xcb8] sm:$0xff]
  %v422 = vld [vmem:[%s0 + $0xcc0] sm:$0xff]
  %v423 = vld [vmem:[%s0 + $0xcc8] sm:$0xff]
  %v424 = vld [vmem:[%s0 + $0xcd0] sm:$0xff]
  %v425 = vld [vmem:[%s0 + $0xcd8] sm:$0xff]
  %v426 = vld [vmem:[%s0 + $0xce0] sm:$0xff]
  %v427 = vld [vmem:[%s0 + $0xce8] sm:$0xff]
  %v428 = vld [vmem:[%s0 + $0xcf0] sm:$0xff]
  %v429 = vld [vmem:[%s0 + $0xcf8] sm:$0xff]
  %v430 = vld [vmem:[%s0 + $0xd00] sm:$0xff]
  %v431 = vld [vmem:[%s0 + $0xd08] sm:$0xff]
  %v432 = vld [vmem:[%s0 + $0xd10] sm:$0xff]
  %v433 = vld [vmem:[%s0 + $0xd18] sm:$0xff]
  %v434 = vld [vmem:[%s0 + $0xd20] sm:$0xff]
  %v435 = vld [vmem:[%s0 + $0xd28] sm:$0xff]
  %v436 = vld [vmem:[%s0 + $0xd30] sm:$0xff]
  %v437 = vld [vmem:[%s0 + $0xd38] sm:$0xff]
  %v438 = vld [vmem:[%s0 + $0xd40] sm:$0xff]
  %v439 = vld [vmem:[%s0 + $0xd48] sm:$0xff]
  %v440 = vld [vmem:[%s0 + $0xd50] sm:$0xff]
  %v441 = vld [vmem:[%s0 + $0xd58] sm:$0xff]
  %v442 = vld [vmem:[%s0 + $0xd60] sm:$0xff]
  %v443 = vld [vmem:[%s0 + $0xd68] sm:$0xff]
  %v444 = vld [vmem:[%s0 + $0xd70] sm:$0xff]
  %v445 = vld [vmem:[%s0 + $0xd78] sm:$0xff]
  %v446 = vld [vmem:[%s0 + $0xd80] sm:$0xff]
  %v447 = vld [vmem:[%s0 + $0xd88] sm:$0xff]
  %v448 = vld [vmem:[%s0 + $0xd90] sm:$0xff]
  %v449 = vld [vmem:[%s0 + $0xd98] sm:$0xff]
  %v450 = vld [vmem:[%s0 + $0xda0] sm:$0xff]
  %v451 = vld [vmem:[%s0 + $0xda8] sm:$0xff]
  %v452 = vld [vmem:[%s0 + $0xdb0] sm:$0xff]
  %v453 = vld [vmem:[%s0 + $0xdb8] sm:$0xff]
  %v454 = vld [vmem:[%s0 + $0xdc0] sm:$0xff]
  %v455 = vld [vmem:[%s0 + $0xdc8] sm:$0xff]
  %v456 = vld [vmem:[%s0 + $0xdd0] sm:$0xff]
  %v457 = vld [vmem:[%s0 + $0xdd8] sm:$0xff]
  %v458 = vld [vmem:[%s0 + $0xde0] sm:$0xff]
  %v459 = vld [vmem:[%s0 + $0xde8] sm:$0xff]
  %v460 = vld [vmem:[%s0 + $0xdf0] sm:$0xff]
  %v461 = vld [vmem:[%s0 + $0xdf8] sm:$0xff]
  %v462 = vld [vmem:[%s0 + $0xe00] sm:$0xff]
  %v463 = vld [vmem:[%s0 + $0xe08] sm:$0xff]
  %v464 = vld [vmem:[%s0 + $0xe10] sm:$0xff]
  %v465 = vld [vmem:[%s0 + $0xe18] sm:$0xff]
  %v466 = vld [vmem:[%s0 + $0xe20] sm:$0xff]
  %v467 = vld [vmem:[%s0 + $0xe28] sm:$0xff]
  %v468 = vld [vmem:[%s0 + $0xe30] sm:$0xff]
  %v469 = vld [vmem:[%s0 + $0xe38] sm:$0xff]
  %v470 = vld [vmem:[%s0 + $0xe40] sm:$0xff]
  %v471 = vld [vmem:[%s0 + $0xe48] sm:$0xff]
  %v472 = vld [vmem:[%s0 + $0xe50] sm:$0xff]
  %v473 = vld [vmem:[%s0 + $0xe58] sm:$0xff]
  %v474 = vld [vmem:[%s0 + $0xe60] sm:$0xff]
  %v475 = vld [vmem:[%s0 + $0xe68] sm:$0xff]
  %v476 = vld [vmem:[%s0 + $0xe70] sm:$0xff]
  %v477 = vld [vmem:[%s0 + $0xe78] sm:$0xff]
  %v478 = vld [vmem:[%s0 + $0xe80] sm:$0xff]
  %v479 = vld [vmem:[%s0 + $0xe88] sm:$0xff]
  %v480 = vld [vmem:[%s0 + $0xe90] sm:$0xff]
  %v481 = vld [vmem:[%s0 + $0xe98] sm:$0xff]
  %v482 = vld [vmem:[%s0 + $0xea0] sm:$0xff]
  %v483 = vld [vmem:[%s0 + $0xea8] sm:$0xff]
  %v484 = vld [vmem:[%s0 + $0xeb0] sm:$0xff]
  %v485 = vld [vmem:[%s0 + $0xeb8] sm:$0xff]
  %v486 = vld [vmem:[%s0 + $0xec0] sm:$0xff]
  %v487 = vld [vmem:[%s0 + $0xec8] sm:$0xff]
  %v488 = vld [vmem:[%s0 + $0xed0] sm:$0xff]
  %v489 = vld [vmem:[%s0 + $0xed8] sm:$0xff]
  %v490 = vld [vmem:[%s0 + $0xee0] sm:$0xff]
  %v491 = vld [vmem:[%s0 + $0xee8] sm:$0xff]
  %v492 = vld [vmem:[%s0 + $0xef0] sm:$0xff]
  %v493 = vld [vmem:[%s0 + $0xef8] sm:$0xff]
  %v494 = vld [vmem:[%s0 + $0xf00] sm:$0xff]
  %v495 = vld [vmem:[%s0 + $0xf08] sm:$0xff]
  %v496 = vld [vmem:[%s0 + $0xf10] sm:$0xff]
  %v497 = vld [vmem:[%s0 + $0xf18] sm:$0xff]
  %v498 = vld [vmem:[%s0 + $0xf20] sm:$0xff]
  %v499 = vld [vmem:[%s0 + $0xf28] sm:$0xff]
  %v500 = vld [vmem:[%s0 + $0xf30] sm:$0xff]
  %v501 = vld [vmem:[%s0 + $0xf38] sm:$0xff]
  %v502 = vld [vmem:[%s0 + $0xf40] sm:$0xff]
  %v503 = vld [vmem:[%s0 + $0xf48] sm:$0xff]
  %v504 = vld [vmem:[%s0 + $0xf50] sm:$0xff]
  %v505 = vld [vmem:[%s0 + $0xf58] sm:$0xff]
  %v506 = vld [vmem:[%s0 + $0xf60] sm:$0xff]
  %v507 = vld [vmem:[%s0 + $0xf68] sm:$0xff]
  %v508 = vld [vmem:[%s0 + $0xf70] sm:$0xff]
  %v509 = vld [vmem:[%s0 + $0xf78] sm:$0xff]
  %v510 = vld [vmem:[%s0 + $0xf80] sm:$0xff]
  %v511 = vld [vmem:[%s0 + $0xf88] sm:$0xff]
  %v512 = vld [vmem:[%s0 + $0xf90] sm:$0xff]
  %v513 = vld [vmem:[%s0 + $0xf98] sm:$0xff]
  %v514 = vld [vmem:[%s0 + $0xfa0] sm:$0xff]
  %v515 = vld [vmem:[%s0 + $0xfa8] sm:$0xff]
  %v516 = vld [vmem:[%s0 + $0xfb0] sm:$0xff]
  %v517 = vld [vmem:[%s0 + $0xfb8] sm:$0xff]
  %v518 = vld [vmem:[%s0 + $0xfc0] sm:$0xff]
  %v519 = vld [vmem:[%s0 + $0xfc8] sm:$0xff]
  %v520 = vld [vmem:[%s0 + $0xfd0] sm:$0xff]
  %v521 = vld [vmem:[%s0 + $0xfd8] sm:$0xff]
  %v522 = vld [vmem:[%s0 + $0xfe0] sm:$0xff]
  %v523 = vld [vmem:[%s0 + $0xfe8] sm:$0xff]
  %v524 = vld [vmem:[%s0 + $0xff0] sm:$0xff]
  %v525 = vld [vmem:[%s0 + $0xff8] sm:$0xff]
  %v526 = vld [vmem:[%s1] sm:$0xf]
  %v527 = vld [vmem:[%s2] sm:$0x1]
  %v529 = vlaneseq
  %v530 = vshrl.u32 %v529, 7
  %v531 = vsub.s32 0, %v530
  %v532 = vrot.slane %v527, %v531
  %vm534 = vcmask 31744
  %v536 = vsel %vm534, %v14, 0
  %v539 = vsel %vm534, %v15, 0
  %v542 = vsel %vm534, %v16, 0
  %v545 = vsel %vm534, %v17, 0
  %v548 = vsel %vm534, %v18, 0
  %v551 = vsel %vm534, %v19, 0
  %v554 = vsel %vm534, %v20, 0
  %v557 = vsel %vm534, %v21, 0
  %v560 = vsel %vm534, %v22, 0
  %v563 = vsel %vm534, %v23, 0
  %v566 = vsel %vm534, %v24, 0
  %v569 = vsel %vm534, %v25, 0
  %v572 = vsel %vm534, %v26, 0
  %v575 = vsel %vm534, %v27, 0
  %v578 = vsel %vm534, %v28, 0
  %v581 = vsel %vm534, %v29, 0
  %v584 = vsel %vm534, %v30, 0
  %v587 = vsel %vm534, %v31, 0
  %v590 = vsel %vm534, %v32, 0
  %v593 = vsel %vm534, %v33, 0
  %v596 = vsel %vm534, %v34, 0
  %v599 = vsel %vm534, %v35, 0
  %v602 = vsel %vm534, %v36, 0
  %v605 = vsel %vm534, %v37, 0
  %v608 = vsel %vm534, %v38, 0
  %v611 = vsel %vm534, %v39, 0
  %v614 = vsel %vm534, %v40, 0
  %v617 = vsel %vm534, %v41, 0
  %v620 = vsel %vm534, %v42, 0
  %v623 = vsel %vm534, %v43, 0
  %v626 = vsel %vm534, %v44, 0
  %v629 = vsel %vm534, %v45, 0
  %v632 = vsel %vm534, %v46, 0
  %v635 = vsel %vm534, %v47, 0
  %v638 = vsel %vm534, %v48, 0
  %v641 = vsel %vm534, %v49, 0
  %v644 = vsel %vm534, %v50, 0
  %v647 = vsel %vm534, %v51, 0
  %v650 = vsel %vm534, %v52, 0
  %v653 = vsel %vm534, %v53, 0
  %v656 = vsel %vm534, %v54, 0
  %v659 = vsel %vm534, %v55, 0
  %v662 = vsel %vm534, %v56, 0
  %v665 = vsel %vm534, %v57, 0
  %v668 = vsel %vm534, %v58, 0
  %v671 = vsel %vm534, %v59, 0
  %v674 = vsel %vm534, %v60, 0
  %v677 = vsel %vm534, %v61, 0
  %v680 = vsel %vm534, %v62, 0
  %v683 = vsel %vm534, %v63, 0
  %v686 = vsel %vm534, %v64, 0
  %v689 = vsel %vm534, %v65, 0
  %v692 = vsel %vm534, %v66, 0
  %v695 = vsel %vm534, %v67, 0
  %v698 = vsel %vm534, %v68, 0
  %v701 = vsel %vm534, %v69, 0
  %v704 = vsel %vm534, %v70, 0
  %v707 = vsel %vm534, %v71, 0
  %v710 = vsel %vm534, %v72, 0
  %v713 = vsel %vm534, %v73, 0
  %v716 = vsel %vm534, %v74, 0
  %v719 = vsel %vm534, %v75, 0
  %v722 = vsel %vm534, %v76, 0
  %v725 = vsel %vm534, %v77, 0
  %v728 = vsel %vm534, %v78, 0
  %v731 = vsel %vm534, %v79, 0
  %v734 = vsel %vm534, %v80, 0
  %v737 = vsel %vm534, %v81, 0
  %v740 = vsel %vm534, %v82, 0
  %v743 = vsel %vm534, %v83, 0
  %v746 = vsel %vm534, %v84, 0
  %v749 = vsel %vm534, %v85, 0
  %v752 = vsel %vm534, %v86, 0
  %v755 = vsel %vm534, %v87, 0
  %v758 = vsel %vm534, %v88, 0
  %v761 = vsel %vm534, %v89, 0
  %v764 = vsel %vm534, %v90, 0
  %v767 = vsel %vm534, %v91, 0
  %v770 = vsel %vm534, %v92, 0
  %v773 = vsel %vm534, %v93, 0
  %v776 = vsel %vm534, %v94, 0
  %v779 = vsel %vm534, %v95, 0
  %v782 = vsel %vm534, %v96, 0
  %v785 = vsel %vm534, %v97, 0
  %v788 = vsel %vm534, %v98, 0
  %v791 = vsel %vm534, %v99, 0
  %v794 = vsel %vm534, %v100, 0
  %v797 = vsel %vm534, %v101, 0
  %v800 = vsel %vm534, %v102, 0
  %v803 = vsel %vm534, %v103, 0
  %v806 = vsel %vm534, %v104, 0
  %v809 = vsel %vm534, %v105, 0
  %v812 = vsel %vm534, %v106, 0
  %v815 = vsel %vm534, %v107, 0
  %v818 = vsel %vm534, %v108, 0
  %v821 = vsel %vm534, %v109, 0
  %v824 = vsel %vm534, %v110, 0
  %v827 = vsel %vm534, %v111, 0
  %v830 = vsel %vm534, %v112, 0
  %v833 = vsel %vm534, %v113, 0
  %v836 = vsel %vm534, %v114, 0
  %v839 = vsel %vm534, %v115, 0
  %v842 = vsel %vm534, %v116, 0
  %v845 = vsel %vm534, %v117, 0
  %v848 = vsel %vm534, %v118, 0
  %v851 = vsel %vm534, %v119, 0
  %v854 = vsel %vm534, %v120, 0
  %v857 = vsel %vm534, %v121, 0
  %v860 = vsel %vm534, %v122, 0
  %v863 = vsel %vm534, %v123, 0
  %v866 = vsel %vm534, %v124, 0
  %v869 = vsel %vm534, %v125, 0
  %v872 = vsel %vm534, %v126, 0
  %v875 = vsel %vm534, %v127, 0
  %v878 = vsel %vm534, %v128, 0
  %v881 = vsel %vm534, %v129, 0
  %v884 = vsel %vm534, %v130, 0
  %v887 = vsel %vm534, %v131, 0
  %v890 = vsel %vm534, %v132, 0
  %v893 = vsel %vm534, %v133, 0
  %v896 = vsel %vm534, %v134, 0
  %v899 = vsel %vm534, %v135, 0
  %v902 = vsel %vm534, %v136, 0
  %v905 = vsel %vm534, %v137, 0
  %v908 = vsel %vm534, %v138, 0
  %v911 = vsel %vm534, %v139, 0
  %v914 = vsel %vm534, %v140, 0
  %v917 = vsel %vm534, %v141, 0
  %v920 = vsel %vm534, %v142, 0
  %v923 = vsel %vm534, %v143, 0
  %v926 = vsel %vm534, %v144, 0
  %v929 = vsel %vm534, %v145, 0
  %v932 = vsel %vm534, %v146, 0
  %v935 = vsel %vm534, %v147, 0
  %v938 = vsel %vm534, %v148, 0
  %v941 = vsel %vm534, %v149, 0
  %v944 = vsel %vm534, %v150, 0
  %v947 = vsel %vm534, %v151, 0
  %v950 = vsel %vm534, %v152, 0
  %v953 = vsel %vm534, %v153, 0
  %v956 = vsel %vm534, %v154, 0
  %v959 = vsel %vm534, %v155, 0
  %v962 = vsel %vm534, %v156, 0
  %v965 = vsel %vm534, %v157, 0
  %v968 = vsel %vm534, %v158, 0
  %v971 = vsel %vm534, %v159, 0
  %v974 = vsel %vm534, %v160, 0
  %v977 = vsel %vm534, %v161, 0
  %v980 = vsel %vm534, %v162, 0
  %v983 = vsel %vm534, %v163, 0
  %v986 = vsel %vm534, %v164, 0
  %v989 = vsel %vm534, %v165, 0
  %v992 = vsel %vm534, %v166, 0
  %v995 = vsel %vm534, %v167, 0
  %v998 = vsel %vm534, %v168, 0
  %v1001 = vsel %vm534, %v169, 0
  %v1004 = vsel %vm534, %v170, 0
  %v1007 = vsel %vm534, %v171, 0
  %v1010 = vsel %vm534, %v172, 0
  %v1013 = vsel %vm534, %v173, 0
  %v1016 = vsel %vm534, %v174, 0
  %v1019 = vsel %vm534, %v175, 0
  %v1022 = vsel %vm534, %v176, 0
  %v1025 = vsel %vm534, %v177, 0
  %v1028 = vsel %vm534, %v178, 0
  %v1031 = vsel %vm534, %v179, 0
  %v1034 = vsel %vm534, %v180, 0
  %v1037 = vsel %vm534, %v181, 0
  %v1040 = vsel %vm534, %v182, 0
  %v1043 = vsel %vm534, %v183, 0
  %v1046 = vsel %vm534, %v184, 0
  %v1049 = vsel %vm534, %v185, 0
  %v1052 = vsel %vm534, %v186, 0
  %v1055 = vsel %vm534, %v187, 0
  %v1058 = vsel %vm534, %v188, 0
  %v1061 = vsel %vm534, %v189, 0
  %v1064 = vsel %vm534, %v190, 0
  %v1067 = vsel %vm534, %v191, 0
  %v1070 = vsel %vm534, %v192, 0
  %v1073 = vsel %vm534, %v193, 0
  %v1076 = vsel %vm534, %v194, 0
  %v1079 = vsel %vm534, %v195, 0
  %v1082 = vsel %vm534, %v196, 0
  %v1085 = vsel %vm534, %v197, 0
  %v1088 = vsel %vm534, %v198, 0
  %v1091 = vsel %vm534, %v199, 0
  %v1094 = vsel %vm534, %v200, 0
  %v1097 = vsel %vm534, %v201, 0
  %v1100 = vsel %vm534, %v202, 0
  %v1103 = vsel %vm534, %v203, 0
  %v1106 = vsel %vm534, %v204, 0
  %v1109 = vsel %vm534, %v205, 0
  %v1112 = vsel %vm534, %v206, 0
  %v1115 = vsel %vm534, %v207, 0
  %v1118 = vsel %vm534, %v208, 0
  %v1121 = vsel %vm534, %v209, 0
  %v1124 = vsel %vm534, %v210, 0
  %v1127 = vsel %vm534, %v211, 0
  %v1130 = vsel %vm534, %v212, 0
  %v1133 = vsel %vm534, %v213, 0
  %v1136 = vsel %vm534, %v214, 0
  %v1139 = vsel %vm534, %v215, 0
  %v1142 = vsel %vm534, %v216, 0
  %v1145 = vsel %vm534, %v217, 0
  %v1148 = vsel %vm534, %v218, 0
  %v1151 = vsel %vm534, %v219, 0
  %v1154 = vsel %vm534, %v220, 0
  %v1157 = vsel %vm534, %v221, 0
  %v1160 = vsel %vm534, %v222, 0
  %v1163 = vsel %vm534, %v223, 0
  %v1166 = vsel %vm534, %v224, 0
  %v1169 = vsel %vm534, %v225, 0
  %v1172 = vsel %vm534, %v226, 0
  %v1175 = vsel %vm534, %v227, 0
  %v1178 = vsel %vm534, %v228, 0
  %v1181 = vsel %vm534, %v229, 0
  %v1184 = vsel %vm534, %v230, 0
  %v1187 = vsel %vm534, %v231, 0
  %v1190 = vsel %vm534, %v232, 0
  %v1193 = vsel %vm534, %v233, 0
  %v1196 = vsel %vm534, %v234, 0
  %v1199 = vsel %vm534, %v235, 0
  %v1202 = vsel %vm534, %v236, 0
  %v1205 = vsel %vm534, %v237, 0
  %v1208 = vsel %vm534, %v238, 0
  %v1211 = vsel %vm534, %v239, 0
  %v1214 = vsel %vm534, %v240, 0
  %v1217 = vsel %vm534, %v241, 0
  %v1220 = vsel %vm534, %v242, 0
  %v1223 = vsel %vm534, %v243, 0
  %v1226 = vsel %vm534, %v244, 0
  %v1229 = vsel %vm534, %v245, 0
  %v1232 = vsel %vm534, %v246, 0
  %v1235 = vsel %vm534, %v247, 0
  %v1238 = vsel %vm534, %v248, 0
  %v1241 = vsel %vm534, %v249, 0
  %v1244 = vsel %vm534, %v250, 0
  %v1247 = vsel %vm534, %v251, 0
  %v1250 = vsel %vm534, %v252, 0
  %v1253 = vsel %vm534, %v253, 0
  %v1256 = vsel %vm534, %v254, 0
  %v1259 = vsel %vm534, %v255, 0
  %v1262 = vsel %vm534, %v256, 0
  %v1265 = vsel %vm534, %v257, 0
  %v1268 = vsel %vm534, %v258, 0
  %v1271 = vsel %vm534, %v259, 0
  %v1274 = vsel %vm534, %v260, 0
  %v1277 = vsel %vm534, %v261, 0
  %v1280 = vsel %vm534, %v262, 0
  %v1283 = vsel %vm534, %v263, 0
  %v1286 = vsel %vm534, %v264, 0
  %v1289 = vsel %vm534, %v265, 0
  %v1292 = vsel %vm534, %v266, 0
  %v1295 = vsel %vm534, %v267, 0
  %v1298 = vsel %vm534, %v268, 0
  %v1301 = vsel %vm534, %v269, 0
  %v1304 = vsel %vm534, %v270, 0
  %v1307 = vsel %vm534, %v271, 0
  %v1310 = vsel %vm534, %v272, 0
  %v1313 = vsel %vm534, %v273, 0
  %v1316 = vsel %vm534, %v274, 0
  %v1319 = vsel %vm534, %v275, 0
  %v1322 = vsel %vm534, %v276, 0
  %v1325 = vsel %vm534, %v277, 0
  %v1328 = vsel %vm534, %v278, 0
  %v1331 = vsel %vm534, %v279, 0
  %v1334 = vsel %vm534, %v280, 0
  %v1337 = vsel %vm534, %v281, 0
  %v1340 = vsel %vm534, %v282, 0
  %v1343 = vsel %vm534, %v283, 0
  %v1346 = vsel %vm534, %v284, 0
  %v1349 = vsel %vm534, %v285, 0
  %v1352 = vsel %vm534, %v286, 0
  %v1355 = vsel %vm534, %v287, 0
  %v1358 = vsel %vm534, %v288, 0
  %v1361 = vsel %vm534, %v289, 0
  %v1364 = vsel %vm534, %v290, 0
  %v1367 = vsel %vm534, %v291, 0
  %v1370 = vsel %vm534, %v292, 0
  %v1373 = vsel %vm534, %v293, 0
  %v1376 = vsel %vm534, %v294, 0
  %v1379 = vsel %vm534, %v295, 0
  %v1382 = vsel %vm534, %v296, 0
  %v1385 = vsel %vm534, %v297, 0
  %v1388 = vsel %vm534, %v298, 0
  %v1391 = vsel %vm534, %v299, 0
  %v1394 = vsel %vm534, %v300, 0
  %v1397 = vsel %vm534, %v301, 0
  %v1400 = vsel %vm534, %v302, 0
  %v1403 = vsel %vm534, %v303, 0
  %v1406 = vsel %vm534, %v304, 0
  %v1409 = vsel %vm534, %v305, 0
  %v1412 = vsel %vm534, %v306, 0
  %v1415 = vsel %vm534, %v307, 0
  %v1418 = vsel %vm534, %v308, 0
  %v1421 = vsel %vm534, %v309, 0
  %v1424 = vsel %vm534, %v310, 0
  %v1427 = vsel %vm534, %v311, 0
  %v1430 = vsel %vm534, %v312, 0
  %v1433 = vsel %vm534, %v313, 0
  %v1436 = vsel %vm534, %v314, 0
  %v1439 = vsel %vm534, %v315, 0
  %v1442 = vsel %vm534, %v316, 0
  %v1445 = vsel %vm534, %v317, 0
  %v1448 = vsel %vm534, %v318, 0
  %v1451 = vsel %vm534, %v319, 0
  %v1454 = vsel %vm534, %v320, 0
  %v1457 = vsel %vm534, %v321, 0
  %v1460 = vsel %vm534, %v322, 0
  %v1463 = vsel %vm534, %v323, 0
  %v1466 = vsel %vm534, %v324, 0
  %v1469 = vsel %vm534, %v325, 0
  %v1472 = vsel %vm534, %v326, 0
  %v1475 = vsel %vm534, %v327, 0
  %v1478 = vsel %vm534, %v328, 0
  %v1481 = vsel %vm534, %v329, 0
  %v1484 = vsel %vm534, %v330, 0
  %v1487 = vsel %vm534, %v331, 0
  %v1490 = vsel %vm534, %v332, 0
  %v1493 = vsel %vm534, %v333, 0
  %v1496 = vsel %vm534, %v334, 0
  %v1499 = vsel %vm534, %v335, 0
  %v1502 = vsel %vm534, %v336, 0
  %v1505 = vsel %vm534, %v337, 0
  %v1508 = vsel %vm534, %v338, 0
  %v1511 = vsel %vm534, %v339, 0
  %v1514 = vsel %vm534, %v340, 0
  %v1517 = vsel %vm534, %v341, 0
  %v1520 = vsel %vm534, %v342, 0
  %v1523 = vsel %vm534, %v343, 0
  %v1526 = vsel %vm534, %v344, 0
  %v1529 = vsel %vm534, %v345, 0
  %v1532 = vsel %vm534, %v346, 0
  %v1535 = vsel %vm534, %v347, 0
  %v1538 = vsel %vm534, %v348, 0
  %v1541 = vsel %vm534, %v349, 0
  %v1544 = vsel %vm534, %v350, 0
  %v1547 = vsel %vm534, %v351, 0
  %v1550 = vsel %vm534, %v352, 0
  %v1553 = vsel %vm534, %v353, 0
  %v1556 = vsel %vm534, %v354, 0
  %v1559 = vsel %vm534, %v355, 0
  %v1562 = vsel %vm534, %v356, 0
  %v1565 = vsel %vm534, %v357, 0
  %v1568 = vsel %vm534, %v358, 0
  %v1571 = vsel %vm534, %v359, 0
  %v1574 = vsel %vm534, %v360, 0
  %v1577 = vsel %vm534, %v361, 0
  %v1580 = vsel %vm534, %v362, 0
  %v1583 = vsel %vm534, %v363, 0
  %v1586 = vsel %vm534, %v364, 0
  %v1589 = vsel %vm534, %v365, 0
  %v1592 = vsel %vm534, %v366, 0
  %v1595 = vsel %vm534, %v367, 0
  %v1598 = vsel %vm534, %v368, 0
  %v1601 = vsel %vm534, %v369, 0
  %v1604 = vsel %vm534, %v370, 0
  %v1607 = vsel %vm534, %v371, 0
  %v1610 = vsel %vm534, %v372, 0
  %v1613 = vsel %vm534, %v373, 0
  %v1616 = vsel %vm534, %v374, 0
  %v1619 = vsel %vm534, %v375, 0
  %v1622 = vsel %vm534, %v376, 0
  %v1625 = vsel %vm534, %v377, 0
  %v1628 = vsel %vm534, %v378, 0
  %v1631 = vsel %vm534, %v379, 0
  %v1634 = vsel %vm534, %v380, 0
  %v1637 = vsel %vm534, %v381, 0
  %v1640 = vsel %vm534, %v382, 0
  %v1643 = vsel %vm534, %v383, 0
  %v1646 = vsel %vm534, %v384, 0
  %v1649 = vsel %vm534, %v385, 0
  %v1652 = vsel %vm534, %v386, 0
  %v1655 = vsel %vm534, %v387, 0
  %v1658 = vsel %vm534, %v388, 0
  %v1661 = vsel %vm534, %v389, 0
  %v1664 = vsel %vm534, %v390, 0
  %v1667 = vsel %vm534, %v391, 0
  %v1670 = vsel %vm534, %v392, 0
  %v1673 = vsel %vm534, %v393, 0
  %v1676 = vsel %vm534, %v394, 0
  %v1679 = vsel %vm534, %v395, 0
  %v1682 = vsel %vm534, %v396, 0
  %v1685 = vsel %vm534, %v397, 0
  %v1688 = vsel %vm534, %v398, 0
  %v1691 = vsel %vm534, %v399, 0
  %v1694 = vsel %vm534, %v400, 0
  %v1697 = vsel %vm534, %v401, 0
  %v1700 = vsel %vm534, %v402, 0
  %v1703 = vsel %vm534, %v403, 0
  %v1706 = vsel %vm534, %v404, 0
  %v1709 = vsel %vm534, %v405, 0
  %v1712 = vsel %vm534, %v406, 0
  %v1715 = vsel %vm534, %v407, 0
  %v1718 = vsel %vm534, %v408, 0
  %v1721 = vsel %vm534, %v409, 0
  %v1724 = vsel %vm534, %v410, 0
  %v1727 = vsel %vm534, %v411, 0
  %v1730 = vsel %vm534, %v412, 0
  %v1733 = vsel %vm534, %v413, 0
  %v1736 = vsel %vm534, %v414, 0
  %v1739 = vsel %vm534, %v415, 0
  %v1742 = vsel %vm534, %v416, 0
  %v1745 = vsel %vm534, %v417, 0
  %v1748 = vsel %vm534, %v418, 0
  %v1751 = vsel %vm534, %v419, 0
  %v1754 = vsel %vm534, %v420, 0
  %v1757 = vsel %vm534, %v421, 0
  %v1760 = vsel %vm534, %v422, 0
  %v1763 = vsel %vm534, %v423, 0
  %v1766 = vsel %vm534, %v424, 0
  %v1769 = vsel %vm534, %v425, 0
  %v1772 = vsel %vm534, %v426, 0
  %v1775 = vsel %vm534, %v427, 0
  %v1778 = vsel %vm534, %v428, 0
  %v1781 = vsel %vm534, %v429, 0
  %v1784 = vsel %vm534, %v430, 0
  %v1787 = vsel %vm534, %v431, 0
  %v1790 = vsel %vm534, %v432, 0
  %v1793 = vsel %vm534, %v433, 0
  %v1796 = vsel %vm534, %v434, 0
  %v1799 = vsel %vm534, %v435, 0
  %v1802 = vsel %vm534, %v436, 0
  %v1805 = vsel %vm534, %v437, 0
  %v1808 = vsel %vm534, %v438, 0
  %v1811 = vsel %vm534, %v439, 0
  %v1814 = vsel %vm534, %v440, 0
  %v1817 = vsel %vm534, %v441, 0
  %v1820 = vsel %vm534, %v442, 0
  %v1823 = vsel %vm534, %v443, 0
  %v1826 = vsel %vm534, %v444, 0
  %v1829 = vsel %vm534, %v445, 0
  %v1832 = vsel %vm534, %v446, 0
  %v1835 = vsel %vm534, %v447, 0
  %v1838 = vsel %vm534, %v448, 0
  %v1841 = vsel %vm534, %v449, 0
  %v1844 = vsel %vm534, %v450, 0
  %v1847 = vsel %vm534, %v451, 0
  %v1850 = vsel %vm534, %v452, 0
  %v1853 = vsel %vm534, %v453, 0
  %v1856 = vsel %vm534, %v454, 0
  %v1859 = vsel %vm534, %v455, 0
  %v1862 = vsel %vm534, %v456, 0
  %v1865 = vsel %vm534, %v457, 0
  %v1868 = vsel %vm534, %v458, 0
  %v1871 = vsel %vm534, %v459, 0
  %v1874 = vsel %vm534, %v460, 0
  %v1877 = vsel %vm534, %v461, 0
  %v1880 = vsel %vm534, %v462, 0
  %v1883 = vsel %vm534, %v463, 0
  %v1886 = vsel %vm534, %v464, 0
  %v1889 = vsel %vm534, %v465, 0
  %v1892 = vsel %vm534, %v466, 0
  %v1895 = vsel %vm534, %v467, 0
  %v1898 = vsel %vm534, %v468, 0
  %v1901 = vsel %vm534, %v469, 0
  %v1904 = vsel %vm534, %v470, 0
  %v1907 = vsel %vm534, %v471, 0
  %v1910 = vsel %vm534, %v472, 0
  %v1913 = vsel %vm534, %v473, 0
  %v1916 = vsel %vm534, %v474, 0
  %v1919 = vsel %vm534, %v475, 0
  %v1922 = vsel %vm534, %v476, 0
  %v1925 = vsel %vm534, %v477, 0
  %v1928 = vsel %vm534, %v478, 0
  %v1931 = vsel %vm534, %v479, 0
  %v1934 = vsel %vm534, %v480, 0
  %v1937 = vsel %vm534, %v481, 0
  %v1940 = vsel %vm534, %v482, 0
  %v1943 = vsel %vm534, %v483, 0
  %v1946 = vsel %vm534, %v484, 0
  %v1949 = vsel %vm534, %v485, 0
  %v1952 = vsel %vm534, %v486, 0
  %v1955 = vsel %vm534, %v487, 0
  %v1958 = vsel %vm534, %v488, 0
  %v1961 = vsel %vm534, %v489, 0
  %v1964 = vsel %vm534, %v490, 0
  %v1967 = vsel %vm534, %v491, 0
  %v1970 = vsel %vm534, %v492, 0
  %v1973 = vsel %vm534, %v493, 0
  %v1976 = vsel %vm534, %v494, 0
  %v1979 = vsel %vm534, %v495, 0
  %v1982 = vsel %vm534, %v496, 0
  %v1985 = vsel %vm534, %v497, 0
  %v1988 = vsel %vm534, %v498, 0
  %v1991 = vsel %vm534, %v499, 0
  %v1994 = vsel %vm534, %v500, 0
  %v1997 = vsel %vm534, %v501, 0
  %v2000 = vsel %vm534, %v502, 0
  %v2003 = vsel %vm534, %v503, 0
  %v2006 = vsel %vm534, %v504, 0
  %v2009 = vsel %vm534, %v505, 0
  %v2012 = vsel %vm534, %v506, 0
  %v2015 = vsel %vm534, %v507, 0
  %v2018 = vsel %vm534, %v508, 0
  %v2021 = vsel %vm534, %v509, 0
  %v2024 = vsel %vm534, %v510, 0
  %v2027 = vsel %vm534, %v511, 0
  %v2030 = vsel %vm534, %v512, 0
  %v2033 = vsel %vm534, %v513, 0
  %v2036 = vsel %vm534, %v514, 0
  %v2039 = vsel %vm534, %v515, 0
  %v2042 = vsel %vm534, %v516, 0
  %v2045 = vsel %vm534, %v517, 0
  %v2048 = vsel %vm534, %v518, 0
  %v2051 = vsel %vm534, %v519, 0
  %v2054 = vsel %vm534, %v520, 0
  %v2057 = vsel %vm534, %v521, 0
  %v2060 = vsel %vm534, %v522, 0
  %v2063 = vsel %vm534, %v523, 0
  %v2066 = vsel %vm534, %v524, 0
  %v2069 = vsel %vm534, %v525, 0
  %vm2071 = vcmask 1043456
  %v2073 = vsel %vm2071, %v526, 0
  %2075 = vmatprep.subr.mxu0 0.0
  %2076 = vmatpush1.msra.mxu0 0.0
  %2077 = vmatprep.subr.mxu0 0.0
  %2078 = vmatpush1.msra.mxu0 0.0
  %2079 = vmatprep.subr.mxu0 0.0
  %2080 = vmatpush1.msra.mxu0 0.0
  %2081 = vmatprep.subr.mxu0 0.0
  %2082 = vmatpush1.msra.mxu0 0.0
  %2083 = vmatprep.subr.mxu0 0.0
  %2084 = vmatpush1.msra.mxu0 0.0
  %2085 = vmatprep.subr.mxu0 0.0
  %2086 = vmatpush1.msra.mxu0 0.0
  %2087 = vmatprep.subr.mxu0 0.0
  %2088 = vmatpush1.msra.mxu0 0.0
  %2089 = vmatprep.subr.mxu0 0.0
  %2090 = vmatpush1.msra.mxu0 0.0
  %2091 = vmatprep.subr.mxu0 0.0
  %2092 = vmatpush1.msra.mxu0 0.0
  %2093 = vmatprep.subr.mxu0 0.0
  %2094 = vmatpush1.msra.mxu0 0.0
  %2095 = vmatprep.subr.mxu0 0.0
  %2096 = vmatpush1.msra.mxu0 0.0
  %2097 = vmatprep.subr.mxu0 0.0
  %2098 = vmatpush1.msra.mxu0 0.0
  %2099 = vmatprep.subr.mxu0 0.0
  %2100 = vmatpush1.msra.mxu0 0.0
  %2101 = vmatprep.subr.mxu0 0.0
  %2102 = vmatpush1.msra.mxu0 0.0
  %2103 = vmatprep.subr.mxu0 0.0
  %2104 = vmatpush1.msra.mxu0 0.0
  %2105 = vmatprep.subr.mxu0 0.0
  %2106 = vmatpush1.msra.mxu0 %v2073
  %2107 = vmatprep.subr.mxu0 0.0
  %2108 = vmatpush2.msra.mxu0 0.0
  %2109 = vmatprep.subr.mxu0 0.0
  %2110 = vmatpush2.msra.mxu0 0.0
  %2111 = vmatprep.subr.mxu0 0.0
  %2112 = vmatpush2.msra.mxu0 0.0
  %2113 = vmatprep.subr.mxu0 0.0
  %2114 = vmatpush2.msra.mxu0 0.0
  %2115 = vmatprep.subr.mxu0 0.0
  %2116 = vmatpush2.msra.mxu0 0.0
  %2117 = vmatprep.subr.mxu0 0.0
  %2118 = vmatpush2.msra.mxu0 0.0
  %2119 = vmatprep.subr.mxu0 0.0
  %2120 = vmatpush2.msra.mxu0 0.0
  %2121 = vmatprep.subr.mxu0 0.0
  %2122 = vmatpush2.msra.mxu0 0.0
  %2123 = vmatprep.subr.mxu0 0.0
  %2124 = vmatpush2.msra.mxu0 0.0
  %2125 = vmatprep.subr.mxu0 0.0
  %2126 = vmatpush2.msra.mxu0 0.0
  %2127 = vmatprep.subr.mxu0 0.0
  %2128 = vmatpush2.msra.mxu0 0.0
  %2129 = vmatprep.subr.mxu0 0.0
  %2130 = vmatpush2.msra.mxu0 0.0
  %2131 = vmatprep.subr.mxu0 0.0
  %2132 = vmatpush2.msra.mxu0 0.0
  %2133 = vmatprep.subr.mxu0 0.0
  %2134 = vmatpush2.msra.mxu0 0.0
  %2135 = vmatprep.subr.mxu0 0.0
  %2136 = vmatpush2.msra.mxu0 0.0
  %2137 = vmatprep.subr.mxu0 0.0
  %2138 = vmatpush2.msra.mxu0 0.0
  %2139 = vmatprep.mubr.f32.mxu0 0.0
  %2140 = vmatmul.mubr.f32.gmra.mxu0 %v536
  %v2141 = vpop.f32.mrf.mxu0
  %v2142 = vadd.f32 %v532, %v2141
  %v2143 = vpop.f32.mrf.mxu0
  %2144 = vmatprep.mubr.f32.mxu0 0.0
  %2145 = vmatmul.mubr.f32.gmra.mxu0 %v539
  %v2146 = vpop.f32.mrf.mxu0
  %v2147 = vadd.f32 %v532, %v2146
  %v2148 = vpop.f32.mrf.mxu0
  %2149 = vmatprep.mubr.f32.mxu0 0.0
  %2150 = vmatmul.mubr.f32.gmra.mxu0 %v542
  %v2151 = vpop.f32.mrf.mxu0
  %v2152 = vadd.f32 %v532, %v2151
  %v2153 = vpop.f32.mrf.mxu0
  %2154 = vmatprep.mubr.f32.mxu0 0.0
  %2155 = vmatmul.mubr.f32.gmra.mxu0 %v545
  %v2156 = vpop.f32.mrf.mxu0
  %v2157 = vadd.f32 %v532, %v2156
  %v2158 = vpop.f32.mrf.mxu0
  %2159 = vmatprep.mubr.f32.mxu0 0.0
  %2160 = vmatmul.mubr.f32.gmra.mxu0 %v548
  %v2161 = vpop.f32.mrf.mxu0
  %v2162 = vadd.f32 %v532, %v2161
  %v2163 = vpop.f32.mrf.mxu0
  %2164 = vmatprep.mubr.f32.mxu0 0.0
  %2165 = vmatmul.mubr.f32.gmra.mxu0 %v551
  %v2166 = vpop.f32.mrf.mxu0
  %v2167 = vadd.f32 %v532, %v2166
  %v2168 = vpop.f32.mrf.mxu0
  %2169 = vmatprep.mubr.f32.mxu0 0.0
  %2170 = vmatmul.mubr.f32.gmra.mxu0 %v554
  %v2171 = vpop.f32.mrf.mxu0
  %v2172 = vadd.f32 %v532, %v2171
  %v2173 = vpop.f32.mrf.mxu0
  %2174 = vmatprep.mubr.f32.mxu0 0.0
  %2175 = vmatmul.mubr.f32.gmra.mxu0 %v557
  %v2176 = vpop.f32.mrf.mxu0
  %v2177 = vadd.f32 %v532, %v2176
  %v2178 = vpop.f32.mrf.mxu0
  %2179 = vmatprep.mubr.f32.mxu0 0.0
  %2180 = vmatmul.mubr.f32.gmra.mxu0 %v560
  %v2181 = vpop.f32.mrf.mxu0
  %v2182 = vadd.f32 %v532, %v2181
  %v2183 = vpop.f32.mrf.mxu0
  %2184 = vmatprep.mubr.f32.mxu0 0.0
  %2185 = vmatmul.mubr.f32.gmra.mxu0 %v563
  %v2186 = vpop.f32.mrf.mxu0
  %v2187 = vadd.f32 %v532, %v2186
  %v2188 = vpop.f32.mrf.mxu0
  %2189 = vmatprep.mubr.f32.mxu0 0.0
  %2190 = vmatmul.mubr.f32.gmra.mxu0 %v566
  %v2191 = vpop.f32.mrf.mxu0
  %v2192 = vadd.f32 %v532, %v2191
  %v2193 = vpop.f32.mrf.mxu0
  %2194 = vmatprep.mubr.f32.mxu0 0.0
  %2195 = vmatmul.mubr.f32.gmra.mxu0 %v569
  %v2196 = vpop.f32.mrf.mxu0
  %v2197 = vadd.f32 %v532, %v2196
  %v2198 = vpop.f32.mrf.mxu0
  %2199 = vmatprep.mubr.f32.mxu0 0.0
  %2200 = vmatmul.mubr.f32.gmra.mxu0 %v572
  %v2201 = vpop.f32.mrf.mxu0
  %v2202 = vadd.f32 %v532, %v2201
  %v2203 = vpop.f32.mrf.mxu0
  %2204 = vmatprep.mubr.f32.mxu0 0.0
  %2205 = vmatmul.mubr.f32.gmra.mxu0 %v575
  %v2206 = vpop.f32.mrf.mxu0
  %v2207 = vadd.f32 %v532, %v2206
  %v2208 = vpop.f32.mrf.mxu0
  %2209 = vmatprep.mubr.f32.mxu0 0.0
  %2210 = vmatmul.mubr.f32.gmra.mxu0 %v578
  %v2211 = vpop.f32.mrf.mxu0
  %v2212 = vadd.f32 %v532, %v2211
  %v2213 = vpop.f32.mrf.mxu0
  %2214 = vmatprep.mubr.f32.mxu0 0.0
  %2215 = vmatmul.mubr.f32.gmra.mxu0 %v581
  %v2216 = vpop.f32.mrf.mxu0
  %v2217 = vadd.f32 %v532, %v2216
  %v2218 = vpop.f32.mrf.mxu0
  %2219 = vmatprep.mubr.f32.mxu0 0.0
  %2220 = vmatmul.mubr.f32.gmra.mxu0 %v584
  %v2221 = vpop.f32.mrf.mxu0
  %v2222 = vadd.f32 %v532, %v2221
  %v2223 = vpop.f32.mrf.mxu0
  %2224 = vmatprep.mubr.f32.mxu0 0.0
  %2225 = vmatmul.mubr.f32.gmra.mxu0 %v587
  %v2226 = vpop.f32.mrf.mxu0
  %v2227 = vadd.f32 %v532, %v2226
  %v2228 = vpop.f32.mrf.mxu0
  %2229 = vmatprep.mubr.f32.mxu0 0.0
  %2230 = vmatmul.mubr.f32.gmra.mxu0 %v590
  %v2231 = vpop.f32.mrf.mxu0
  %v2232 = vadd.f32 %v532, %v2231
  %v2233 = vpop.f32.mrf.mxu0
  %2234 = vmatprep.mubr.f32.mxu0 0.0
  %2235 = vmatmul.mubr.f32.gmra.mxu0 %v593
  %v2236 = vpop.f32.mrf.mxu0
  %v2237 = vadd.f32 %v532, %v2236
  %v2238 = vpop.f32.mrf.mxu0
  %2239 = vmatprep.mubr.f32.mxu0 0.0
  %2240 = vmatmul.mubr.f32.gmra.mxu0 %v596
  %v2241 = vpop.f32.mrf.mxu0
  %v2242 = vadd.f32 %v532, %v2241
  %v2243 = vpop.f32.mrf.mxu0
  %2244 = vmatprep.mubr.f32.mxu0 0.0
  %2245 = vmatmul.mubr.f32.gmra.mxu0 %v599
  %v2246 = vpop.f32.mrf.mxu0
  %v2247 = vadd.f32 %v532, %v2246
  %v2248 = vpop.f32.mrf.mxu0
  %2249 = vmatprep.mubr.f32.mxu0 0.0
  %2250 = vmatmul.mubr.f32.gmra.mxu0 %v602
  %v2251 = vpop.f32.mrf.mxu0
  %v2252 = vadd.f32 %v532, %v2251
  %v2253 = vpop.f32.mrf.mxu0
  %2254 = vmatprep.mubr.f32.mxu0 0.0
  %2255 = vmatmul.mubr.f32.gmra.mxu0 %v605
  %v2256 = vpop.f32.mrf.mxu0
  %v2257 = vadd.f32 %v532, %v2256
  %v2258 = vpop.f32.mrf.mxu0
  %2259 = vmatprep.mubr.f32.mxu0 0.0
  %2260 = vmatmul.mubr.f32.gmra.mxu0 %v608
  %v2261 = vpop.f32.mrf.mxu0
  %v2262 = vadd.f32 %v532, %v2261
  %v2263 = vpop.f32.mrf.mxu0
  %2264 = vmatprep.mubr.f32.mxu0 0.0
  %2265 = vmatmul.mubr.f32.gmra.mxu0 %v611
  %v2266 = vpop.f32.mrf.mxu0
  %v2267 = vadd.f32 %v532, %v2266
  %v2268 = vpop.f32.mrf.mxu0
  %2269 = vmatprep.mubr.f32.mxu0 0.0
  %2270 = vmatmul.mubr.f32.gmra.mxu0 %v614
  %v2271 = vpop.f32.mrf.mxu0
  %v2272 = vadd.f32 %v532, %v2271
  %v2273 = vpop.f32.mrf.mxu0
  %2274 = vmatprep.mubr.f32.mxu0 0.0
  %2275 = vmatmul.mubr.f32.gmra.mxu0 %v617
  %v2276 = vpop.f32.mrf.mxu0
  %v2277 = vadd.f32 %v532, %v2276
  %v2278 = vpop.f32.mrf.mxu0
  %2279 = vmatprep.mubr.f32.mxu0 0.0
  %2280 = vmatmul.mubr.f32.gmra.mxu0 %v620
  %v2281 = vpop.f32.mrf.mxu0
  %v2282 = vadd.f32 %v532, %v2281
  %v2283 = vpop.f32.mrf.mxu0
  %2284 = vmatprep.mubr.f32.mxu0 0.0
  %2285 = vmatmul.mubr.f32.gmra.mxu0 %v623
  %v2286 = vpop.f32.mrf.mxu0
  %v2287 = vadd.f32 %v532, %v2286
  %v2288 = vpop.f32.mrf.mxu0
  %2289 = vmatprep.mubr.f32.mxu0 0.0
  %2290 = vmatmul.mubr.f32.gmra.mxu0 %v626
  %v2291 = vpop.f32.mrf.mxu0
  %v2292 = vadd.f32 %v532, %v2291
  %v2293 = vpop.f32.mrf.mxu0
  %2294 = vmatprep.mubr.f32.mxu0 0.0
  %2295 = vmatmul.mubr.f32.gmra.mxu0 %v629
  %v2296 = vpop.f32.mrf.mxu0
  %v2297 = vadd.f32 %v532, %v2296
  %v2298 = vpop.f32.mrf.mxu0
  %2299 = vmatprep.mubr.f32.mxu0 0.0
  %2300 = vmatmul.mubr.f32.gmra.mxu0 %v632
  %v2301 = vpop.f32.mrf.mxu0
  %v2302 = vadd.f32 %v532, %v2301
  %v2303 = vpop.f32.mrf.mxu0
  %2304 = vmatprep.mubr.f32.mxu0 0.0
  %2305 = vmatmul.mubr.f32.gmra.mxu0 %v635
  %v2306 = vpop.f32.mrf.mxu0
  %v2307 = vadd.f32 %v532, %v2306
  %v2308 = vpop.f32.mrf.mxu0
  %2309 = vmatprep.mubr.f32.mxu0 0.0
  %2310 = vmatmul.mubr.f32.gmra.mxu0 %v638
  %v2311 = vpop.f32.mrf.mxu0
  %v2312 = vadd.f32 %v532, %v2311
  %v2313 = vpop.f32.mrf.mxu0
  %2314 = vmatprep.mubr.f32.mxu0 0.0
  %2315 = vmatmul.mubr.f32.gmra.mxu0 %v641
  %v2316 = vpop.f32.mrf.mxu0
  %v2317 = vadd.f32 %v532, %v2316
  %v2318 = vpop.f32.mrf.mxu0
  %2319 = vmatprep.mubr.f32.mxu0 0.0
  %2320 = vmatmul.mubr.f32.gmra.mxu0 %v644
  %v2321 = vpop.f32.mrf.mxu0
  %v2322 = vadd.f32 %v532, %v2321
  %v2323 = vpop.f32.mrf.mxu0
  %2324 = vmatprep.mubr.f32.mxu0 0.0
  %2325 = vmatmul.mubr.f32.gmra.mxu0 %v647
  %v2326 = vpop.f32.mrf.mxu0
  %v2327 = vadd.f32 %v532, %v2326
  %v2328 = vpop.f32.mrf.mxu0
  %2329 = vmatprep.mubr.f32.mxu0 0.0
  %2330 = vmatmul.mubr.f32.gmra.mxu0 %v650
  %v2331 = vpop.f32.mrf.mxu0
  %v2332 = vadd.f32 %v532, %v2331
  %v2333 = vpop.f32.mrf.mxu0
  %2334 = vmatprep.mubr.f32.mxu0 0.0
  %2335 = vmatmul.mubr.f32.gmra.mxu0 %v653
  %v2336 = vpop.f32.mrf.mxu0
  %v2337 = vadd.f32 %v532, %v2336
  %v2338 = vpop.f32.mrf.mxu0
  %2339 = vmatprep.mubr.f32.mxu0 0.0
  %2340 = vmatmul.mubr.f32.gmra.mxu0 %v656
  %v2341 = vpop.f32.mrf.mxu0
  %v2342 = vadd.f32 %v532, %v2341
  %v2343 = vpop.f32.mrf.mxu0
  %2344 = vmatprep.mubr.f32.mxu0 0.0
  %2345 = vmatmul.mubr.f32.gmra.mxu0 %v659
  %v2346 = vpop.f32.mrf.mxu0
  %v2347 = vadd.f32 %v532, %v2346
  %v2348 = vpop.f32.mrf.mxu0
  %2349 = vmatprep.mubr.f32.mxu0 0.0
  %2350 = vmatmul.mubr.f32.gmra.mxu0 %v662
  %v2351 = vpop.f32.mrf.mxu0
  %v2352 = vadd.f32 %v532, %v2351
  %v2353 = vpop.f32.mrf.mxu0
  %2354 = vmatprep.mubr.f32.mxu0 0.0
  %2355 = vmatmul.mubr.f32.gmra.mxu0 %v665
  %v2356 = vpop.f32.mrf.mxu0
  %v2357 = vadd.f32 %v532, %v2356
  %v2358 = vpop.f32.mrf.mxu0
  %2359 = vmatprep.mubr.f32.mxu0 0.0
  %2360 = vmatmul.mubr.f32.gmra.mxu0 %v668
  %v2361 = vpop.f32.mrf.mxu0
  %v2362 = vadd.f32 %v532, %v2361
  %v2363 = vpop.f32.mrf.mxu0
  %2364 = vmatprep.mubr.f32.mxu0 0.0
  %2365 = vmatmul.mubr.f32.gmra.mxu0 %v671
  %v2366 = vpop.f32.mrf.mxu0
  %v2367 = vadd.f32 %v532, %v2366
  %v2368 = vpop.f32.mrf.mxu0
  %2369 = vmatprep.mubr.f32.mxu0 0.0
  %2370 = vmatmul.mubr.f32.gmra.mxu0 %v674
  %v2371 = vpop.f32.mrf.mxu0
  %v2372 = vadd.f32 %v532, %v2371
  %v2373 = vpop.f32.mrf.mxu0
  %2374 = vmatprep.mubr.f32.mxu0 0.0
  %2375 = vmatmul.mubr.f32.gmra.mxu0 %v677
  %v2376 = vpop.f32.mrf.mxu0
  %v2377 = vadd.f32 %v532, %v2376
  %v2378 = vpop.f32.mrf.mxu0
  %2379 = vmatprep.mubr.f32.mxu0 0.0
  %2380 = vmatmul.mubr.f32.gmra.mxu0 %v680
  %v2381 = vpop.f32.mrf.mxu0
  %v2382 = vadd.f32 %v532, %v2381
  %v2383 = vpop.f32.mrf.mxu0
  %2384 = vmatprep.mubr.f32.mxu0 0.0
  %2385 = vmatmul.mubr.f32.gmra.mxu0 %v683
  %v2386 = vpop.f32.mrf.mxu0
  %v2387 = vadd.f32 %v532, %v2386
  %v2388 = vpop.f32.mrf.mxu0
  %2389 = vmatprep.mubr.f32.mxu0 0.0
  %2390 = vmatmul.mubr.f32.gmra.mxu0 %v686
  %v2391 = vpop.f32.mrf.mxu0
  %v2392 = vadd.f32 %v532, %v2391
  %v2393 = vpop.f32.mrf.mxu0
  %2394 = vmatprep.mubr.f32.mxu0 0.0
  %2395 = vmatmul.mubr.f32.gmra.mxu0 %v689
  %v2396 = vpop.f32.mrf.mxu0
  %v2397 = vadd.f32 %v532, %v2396
  %v2398 = vpop.f32.mrf.mxu0
  %2399 = vmatprep.mubr.f32.mxu0 0.0
  %2400 = vmatmul.mubr.f32.gmra.mxu0 %v692
  %v2401 = vpop.f32.mrf.mxu0
  %v2402 = vadd.f32 %v532, %v2401
  %v2403 = vpop.f32.mrf.mxu0
  %2404 = vmatprep.mubr.f32.mxu0 0.0
  %2405 = vmatmul.mubr.f32.gmra.mxu0 %v695
  %v2406 = vpop.f32.mrf.mxu0
  %v2407 = vadd.f32 %v532, %v2406
  %v2408 = vpop.f32.mrf.mxu0
  %2409 = vmatprep.mubr.f32.mxu0 0.0
  %2410 = vmatmul.mubr.f32.gmra.mxu0 %v698
  %v2411 = vpop.f32.mrf.mxu0
  %v2412 = vadd.f32 %v532, %v2411
  %v2413 = vpop.f32.mrf.mxu0
  %2414 = vmatprep.mubr.f32.mxu0 0.0
  %2415 = vmatmul.mubr.f32.gmra.mxu0 %v701
  %v2416 = vpop.f32.mrf.mxu0
  %v2417 = vadd.f32 %v532, %v2416
  %v2418 = vpop.f32.mrf.mxu0
  %2419 = vmatprep.mubr.f32.mxu0 0.0
  %2420 = vmatmul.mubr.f32.gmra.mxu0 %v704
  %v2421 = vpop.f32.mrf.mxu0
  %v2422 = vadd.f32 %v532, %v2421
  %v2423 = vpop.f32.mrf.mxu0
  %2424 = vmatprep.mubr.f32.mxu0 0.0
  %2425 = vmatmul.mubr.f32.gmra.mxu0 %v707
  %v2426 = vpop.f32.mrf.mxu0
  %v2427 = vadd.f32 %v532, %v2426
  %v2428 = vpop.f32.mrf.mxu0
  %2429 = vmatprep.mubr.f32.mxu0 0.0
  %2430 = vmatmul.mubr.f32.gmra.mxu0 %v710
  %v2431 = vpop.f32.mrf.mxu0
  %v2432 = vadd.f32 %v532, %v2431
  %v2433 = vpop.f32.mrf.mxu0
  %2434 = vmatprep.mubr.f32.mxu0 0.0
  %2435 = vmatmul.mubr.f32.gmra.mxu0 %v713
  %v2436 = vpop.f32.mrf.mxu0
  %v2437 = vadd.f32 %v532, %v2436
  %v2438 = vpop.f32.mrf.mxu0
  %2439 = vmatprep.mubr.f32.mxu0 0.0
  %2440 = vmatmul.mubr.f32.gmra.mxu0 %v716
  %v2441 = vpop.f32.mrf.mxu0
  %v2442 = vadd.f32 %v532, %v2441
  %v2443 = vpop.f32.mrf.mxu0
  %2444 = vmatprep.mubr.f32.mxu0 0.0
  %2445 = vmatmul.mubr.f32.gmra.mxu0 %v719
  %v2446 = vpop.f32.mrf.mxu0
  %v2447 = vadd.f32 %v532, %v2446
  %v2448 = vpop.f32.mrf.mxu0
  %2449 = vmatprep.mubr.f32.mxu0 0.0
  %2450 = vmatmul.mubr.f32.gmra.mxu0 %v722
  %v2451 = vpop.f32.mrf.mxu0
  %v2452 = vadd.f32 %v532, %v2451
  %v2453 = vpop.f32.mrf.mxu0
  %2454 = vmatprep.mubr.f32.mxu0 0.0
  %2455 = vmatmul.mubr.f32.gmra.mxu0 %v725
  %v2456 = vpop.f32.mrf.mxu0
  %v2457 = vadd.f32 %v532, %v2456
  %v2458 = vpop.f32.mrf.mxu0
  %2459 = vmatprep.mubr.f32.mxu0 0.0
  %2460 = vmatmul.mubr.f32.gmra.mxu0 %v728
  %v2461 = vpop.f32.mrf.mxu0
  %v2462 = vadd.f32 %v532, %v2461
  %v2463 = vpop.f32.mrf.mxu0
  %2464 = vmatprep.mubr.f32.mxu0 0.0
  %2465 = vmatmul.mubr.f32.gmra.mxu0 %v731
  %v2466 = vpop.f32.mrf.mxu0
  %v2467 = vadd.f32 %v532, %v2466
  %v2468 = vpop.f32.mrf.mxu0
  %2469 = vmatprep.mubr.f32.mxu0 0.0
  %2470 = vmatmul.mubr.f32.gmra.mxu0 %v734
  %v2471 = vpop.f32.mrf.mxu0
  %v2472 = vadd.f32 %v532, %v2471
  %v2473 = vpop.f32.mrf.mxu0
  %2474 = vmatprep.mubr.f32.mxu0 0.0
  %2475 = vmatmul.mubr.f32.gmra.mxu0 %v737
  %v2476 = vpop.f32.mrf.mxu0
  %v2477 = vadd.f32 %v532, %v2476
  %v2478 = vpop.f32.mrf.mxu0
  %2479 = vmatprep.mubr.f32.mxu0 0.0
  %2480 = vmatmul.mubr.f32.gmra.mxu0 %v740
  %v2481 = vpop.f32.mrf.mxu0
  %v2482 = vadd.f32 %v532, %v2481
  %v2483 = vpop.f32.mrf.mxu0
  %2484 = vmatprep.mubr.f32.mxu0 0.0
  %2485 = vmatmul.mubr.f32.gmra.mxu0 %v743
  %v2486 = vpop.f32.mrf.mxu0
  %v2487 = vadd.f32 %v532, %v2486
  %v2488 = vpop.f32.mrf.mxu0
  %2489 = vmatprep.mubr.f32.mxu0 0.0
  %2490 = vmatmul.mubr.f32.gmra.mxu0 %v746
  %v2491 = vpop.f32.mrf.mxu0
  %v2492 = vadd.f32 %v532, %v2491
  %v2493 = vpop.f32.mrf.mxu0
  %2494 = vmatprep.mubr.f32.mxu0 0.0
  %2495 = vmatmul.mubr.f32.gmra.mxu0 %v749
  %v2496 = vpop.f32.mrf.mxu0
  %v2497 = vadd.f32 %v532, %v2496
  %v2498 = vpop.f32.mrf.mxu0
  %2499 = vmatprep.mubr.f32.mxu0 0.0
  %2500 = vmatmul.mubr.f32.gmra.mxu0 %v752
  %v2501 = vpop.f32.mrf.mxu0
  %v2502 = vadd.f32 %v532, %v2501
  %v2503 = vpop.f32.mrf.mxu0
  %2504 = vmatprep.mubr.f32.mxu0 0.0
  %2505 = vmatmul.mubr.f32.gmra.mxu0 %v755
  %v2506 = vpop.f32.mrf.mxu0
  %v2507 = vadd.f32 %v532, %v2506
  %v2508 = vpop.f32.mrf.mxu0
  %2509 = vmatprep.mubr.f32.mxu0 0.0
  %2510 = vmatmul.mubr.f32.gmra.mxu0 %v758
  %v2511 = vpop.f32.mrf.mxu0
  %v2512 = vadd.f32 %v532, %v2511
  %v2513 = vpop.f32.mrf.mxu0
  %2514 = vmatprep.mubr.f32.mxu0 0.0
  %2515 = vmatmul.mubr.f32.gmra.mxu0 %v761
  %v2516 = vpop.f32.mrf.mxu0
  %v2517 = vadd.f32 %v532, %v2516
  %v2518 = vpop.f32.mrf.mxu0
  %2519 = vmatprep.mubr.f32.mxu0 0.0
  %2520 = vmatmul.mubr.f32.gmra.mxu0 %v764
  %v2521 = vpop.f32.mrf.mxu0
  %v2522 = vadd.f32 %v532, %v2521
  %v2523 = vpop.f32.mrf.mxu0
  %2524 = vmatprep.mubr.f32.mxu0 0.0
  %2525 = vmatmul.mubr.f32.gmra.mxu0 %v767
  %v2526 = vpop.f32.mrf.mxu0
  %v2527 = vadd.f32 %v532, %v2526
  %v2528 = vpop.f32.mrf.mxu0
  %2529 = vmatprep.mubr.f32.mxu0 0.0
  %2530 = vmatmul.mubr.f32.gmra.mxu0 %v770
  %v2531 = vpop.f32.mrf.mxu0
  %v2532 = vadd.f32 %v532, %v2531
  %v2533 = vpop.f32.mrf.mxu0
  %2534 = vmatprep.mubr.f32.mxu0 0.0
  %2535 = vmatmul.mubr.f32.gmra.mxu0 %v773
  %v2536 = vpop.f32.mrf.mxu0
  %v2537 = vadd.f32 %v532, %v2536
  %v2538 = vpop.f32.mrf.mxu0
  %2539 = vmatprep.mubr.f32.mxu0 0.0
  %2540 = vmatmul.mubr.f32.gmra.mxu0 %v776
  %v2541 = vpop.f32.mrf.mxu0
  %v2542 = vadd.f32 %v532, %v2541
  %v2543 = vpop.f32.mrf.mxu0
  %2544 = vmatprep.mubr.f32.mxu0 0.0
  %2545 = vmatmul.mubr.f32.gmra.mxu0 %v779
  %v2546 = vpop.f32.mrf.mxu0
  %v2547 = vadd.f32 %v532, %v2546
  %v2548 = vpop.f32.mrf.mxu0
  %2549 = vmatprep.mubr.f32.mxu0 0.0
  %2550 = vmatmul.mubr.f32.gmra.mxu0 %v782
  %v2551 = vpop.f32.mrf.mxu0
  %v2552 = vadd.f32 %v532, %v2551
  %v2553 = vpop.f32.mrf.mxu0
  %2554 = vmatprep.mubr.f32.mxu0 0.0
  %2555 = vmatmul.mubr.f32.gmra.mxu0 %v785
  %v2556 = vpop.f32.mrf.mxu0
  %v2557 = vadd.f32 %v532, %v2556
  %v2558 = vpop.f32.mrf.mxu0
  %2559 = vmatprep.mubr.f32.mxu0 0.0
  %2560 = vmatmul.mubr.f32.gmra.mxu0 %v788
  %v2561 = vpop.f32.mrf.mxu0
  %v2562 = vadd.f32 %v532, %v2561
  %v2563 = vpop.f32.mrf.mxu0
  %2564 = vmatprep.mubr.f32.mxu0 0.0
  %2565 = vmatmul.mubr.f32.gmra.mxu0 %v791
  %v2566 = vpop.f32.mrf.mxu0
  %v2567 = vadd.f32 %v532, %v2566
  %v2568 = vpop.f32.mrf.mxu0
  %2569 = vmatprep.mubr.f32.mxu0 0.0
  %2570 = vmatmul.mubr.f32.gmra.mxu0 %v794
  %v2571 = vpop.f32.mrf.mxu0
  %v2572 = vadd.f32 %v532, %v2571
  %v2573 = vpop.f32.mrf.mxu0
  %2574 = vmatprep.mubr.f32.mxu0 0.0
  %2575 = vmatmul.mubr.f32.gmra.mxu0 %v797
  %v2576 = vpop.f32.mrf.mxu0
  %v2577 = vadd.f32 %v532, %v2576
  %v2578 = vpop.f32.mrf.mxu0
  %2579 = vmatprep.mubr.f32.mxu0 0.0
  %2580 = vmatmul.mubr.f32.gmra.mxu0 %v800
  %v2581 = vpop.f32.mrf.mxu0
  %v2582 = vadd.f32 %v532, %v2581
  %v2583 = vpop.f32.mrf.mxu0
  %2584 = vmatprep.mubr.f32.mxu0 0.0
  %2585 = vmatmul.mubr.f32.gmra.mxu0 %v803
  %v2586 = vpop.f32.mrf.mxu0
  %v2587 = vadd.f32 %v532, %v2586
  %v2588 = vpop.f32.mrf.mxu0
  %2589 = vmatprep.mubr.f32.mxu0 0.0
  %2590 = vmatmul.mubr.f32.gmra.mxu0 %v806
  %v2591 = vpop.f32.mrf.mxu0
  %v2592 = vadd.f32 %v532, %v2591
  %v2593 = vpop.f32.mrf.mxu0
  %2594 = vmatprep.mubr.f32.mxu0 0.0
  %2595 = vmatmul.mubr.f32.gmra.mxu0 %v809
  %v2596 = vpop.f32.mrf.mxu0
  %v2597 = vadd.f32 %v532, %v2596
  %v2598 = vpop.f32.mrf.mxu0
  %2599 = vmatprep.mubr.f32.mxu0 0.0
  %2600 = vmatmul.mubr.f32.gmra.mxu0 %v812
  %v2601 = vpop.f32.mrf.mxu0
  %v2602 = vadd.f32 %v532, %v2601
  %v2603 = vpop.f32.mrf.mxu0
  %2604 = vmatprep.mubr.f32.mxu0 0.0
  %2605 = vmatmul.mubr.f32.gmra.mxu0 %v815
  %v2606 = vpop.f32.mrf.mxu0
  %v2607 = vadd.f32 %v532, %v2606
  %v2608 = vpop.f32.mrf.mxu0
  %2609 = vmatprep.mubr.f32.mxu0 0.0
  %2610 = vmatmul.mubr.f32.gmra.mxu0 %v818
  %v2611 = vpop.f32.mrf.mxu0
  %v2612 = vadd.f32 %v532, %v2611
  %v2613 = vpop.f32.mrf.mxu0
  %2614 = vmatprep.mubr.f32.mxu0 0.0
  %2615 = vmatmul.mubr.f32.gmra.mxu0 %v821
  %v2616 = vpop.f32.mrf.mxu0
  %v2617 = vadd.f32 %v532, %v2616
  %v2618 = vpop.f32.mrf.mxu0
  %2619 = vmatprep.mubr.f32.mxu0 0.0
  %2620 = vmatmul.mubr.f32.gmra.mxu0 %v824
  %v2621 = vpop.f32.mrf.mxu0
  %v2622 = vadd.f32 %v532, %v2621
  %v2623 = vpop.f32.mrf.mxu0
  %2624 = vmatprep.mubr.f32.mxu0 0.0
  %2625 = vmatmul.mubr.f32.gmra.mxu0 %v827
  %v2626 = vpop.f32.mrf.mxu0
  %v2627 = vadd.f32 %v532, %v2626
  %v2628 = vpop.f32.mrf.mxu0
  %2629 = vmatprep.mubr.f32.mxu0 0.0
  %2630 = vmatmul.mubr.f32.gmra.mxu0 %v830
  %v2631 = vpop.f32.mrf.mxu0
  %v2632 = vadd.f32 %v532, %v2631
  %v2633 = vpop.f32.mrf.mxu0
  %2634 = vmatprep.mubr.f32.mxu0 0.0
  %2635 = vmatmul.mubr.f32.gmra.mxu0 %v833
  %v2636 = vpop.f32.mrf.mxu0
  %v2637 = vadd.f32 %v532, %v2636
  %v2638 = vpop.f32.mrf.mxu0
  %2639 = vmatprep.mubr.f32.mxu0 0.0
  %2640 = vmatmul.mubr.f32.gmra.mxu0 %v836
  %v2641 = vpop.f32.mrf.mxu0
  %v2642 = vadd.f32 %v532, %v2641
  %v2643 = vpop.f32.mrf.mxu0
  %2644 = vmatprep.mubr.f32.mxu0 0.0
  %2645 = vmatmul.mubr.f32.gmra.mxu0 %v839
  %v2646 = vpop.f32.mrf.mxu0
  %v2647 = vadd.f32 %v532, %v2646
  %v2648 = vpop.f32.mrf.mxu0
  %2649 = vmatprep.mubr.f32.mxu0 0.0
  %2650 = vmatmul.mubr.f32.gmra.mxu0 %v842
  %v2651 = vpop.f32.mrf.mxu0
  %v2652 = vadd.f32 %v532, %v2651
  %v2653 = vpop.f32.mrf.mxu0
  %2654 = vmatprep.mubr.f32.mxu0 0.0
  %2655 = vmatmul.mubr.f32.gmra.mxu0 %v845
  %v2656 = vpop.f32.mrf.mxu0
  %v2657 = vadd.f32 %v532, %v2656
  %v2658 = vpop.f32.mrf.mxu0
  %2659 = vmatprep.mubr.f32.mxu0 0.0
  %2660 = vmatmul.mubr.f32.gmra.mxu0 %v848
  %v2661 = vpop.f32.mrf.mxu0
  %v2662 = vadd.f32 %v532, %v2661
  %v2663 = vpop.f32.mrf.mxu0
  %2664 = vmatprep.mubr.f32.mxu0 0.0
  %2665 = vmatmul.mubr.f32.gmra.mxu0 %v851
  %v2666 = vpop.f32.mrf.mxu0
  %v2667 = vadd.f32 %v532, %v2666
  %v2668 = vpop.f32.mrf.mxu0
  %2669 = vmatprep.mubr.f32.mxu0 0.0
  %2670 = vmatmul.mubr.f32.gmra.mxu0 %v854
  %v2671 = vpop.f32.mrf.mxu0
  %v2672 = vadd.f32 %v532, %v2671
  %v2673 = vpop.f32.mrf.mxu0
  %2674 = vmatprep.mubr.f32.mxu0 0.0
  %2675 = vmatmul.mubr.f32.gmra.mxu0 %v857
  %v2676 = vpop.f32.mrf.mxu0
  %v2677 = vadd.f32 %v532, %v2676
  %v2678 = vpop.f32.mrf.mxu0
  %2679 = vmatprep.mubr.f32.mxu0 0.0
  %2680 = vmatmul.mubr.f32.gmra.mxu0 %v860
  %v2681 = vpop.f32.mrf.mxu0
  %v2682 = vadd.f32 %v532, %v2681
  %v2683 = vpop.f32.mrf.mxu0
  %2684 = vmatprep.mubr.f32.mxu0 0.0
  %2685 = vmatmul.mubr.f32.gmra.mxu0 %v863
  %v2686 = vpop.f32.mrf.mxu0
  %v2687 = vadd.f32 %v532, %v2686
  %v2688 = vpop.f32.mrf.mxu0
  %2689 = vmatprep.mubr.f32.mxu0 0.0
  %2690 = vmatmul.mubr.f32.gmra.mxu0 %v866
  %v2691 = vpop.f32.mrf.mxu0
  %v2692 = vadd.f32 %v532, %v2691
  %v2693 = vpop.f32.mrf.mxu0
  %2694 = vmatprep.mubr.f32.mxu0 0.0
  %2695 = vmatmul.mubr.f32.gmra.mxu0 %v869
  %v2696 = vpop.f32.mrf.mxu0
  %v2697 = vadd.f32 %v532, %v2696
  %v2698 = vpop.f32.mrf.mxu0
  %2699 = vmatprep.mubr.f32.mxu0 0.0
  %2700 = vmatmul.mubr.f32.gmra.mxu0 %v872
  %v2701 = vpop.f32.mrf.mxu0
  %v2702 = vadd.f32 %v532, %v2701
  %v2703 = vpop.f32.mrf.mxu0
  %2704 = vmatprep.mubr.f32.mxu0 0.0
  %2705 = vmatmul.mubr.f32.gmra.mxu0 %v875
  %v2706 = vpop.f32.mrf.mxu0
  %v2707 = vadd.f32 %v532, %v2706
  %v2708 = vpop.f32.mrf.mxu0
  %2709 = vmatprep.mubr.f32.mxu0 0.0
  %2710 = vmatmul.mubr.f32.gmra.mxu0 %v878
  %v2711 = vpop.f32.mrf.mxu0
  %v2712 = vadd.f32 %v532, %v2711
  %v2713 = vpop.f32.mrf.mxu0
  %2714 = vmatprep.mubr.f32.mxu0 0.0
  %2715 = vmatmul.mubr.f32.gmra.mxu0 %v881
  %v2716 = vpop.f32.mrf.mxu0
  %v2717 = vadd.f32 %v532, %v2716
  %v2718 = vpop.f32.mrf.mxu0
  %2719 = vmatprep.mubr.f32.mxu0 0.0
  %2720 = vmatmul.mubr.f32.gmra.mxu0 %v884
  %v2721 = vpop.f32.mrf.mxu0
  %v2722 = vadd.f32 %v532, %v2721
  %v2723 = vpop.f32.mrf.mxu0
  %2724 = vmatprep.mubr.f32.mxu0 0.0
  %2725 = vmatmul.mubr.f32.gmra.mxu0 %v887
  %v2726 = vpop.f32.mrf.mxu0
  %v2727 = vadd.f32 %v532, %v2726
  %v2728 = vpop.f32.mrf.mxu0
  %2729 = vmatprep.mubr.f32.mxu0 0.0
  %2730 = vmatmul.mubr.f32.gmra.mxu0 %v890
  %v2731 = vpop.f32.mrf.mxu0
  %v2732 = vadd.f32 %v532, %v2731
  %v2733 = vpop.f32.mrf.mxu0
  %2734 = vmatprep.mubr.f32.mxu0 0.0
  %2735 = vmatmul.mubr.f32.gmra.mxu0 %v893
  %v2736 = vpop.f32.mrf.mxu0
  %v2737 = vadd.f32 %v532, %v2736
  %v2738 = vpop.f32.mrf.mxu0
  %2739 = vmatprep.mubr.f32.mxu0 0.0
  %2740 = vmatmul.mubr.f32.gmra.mxu0 %v896
  %v2741 = vpop.f32.mrf.mxu0
  %v2742 = vadd.f32 %v532, %v2741
  %v2743 = vpop.f32.mrf.mxu0
  %2744 = vmatprep.mubr.f32.mxu0 0.0
  %2745 = vmatmul.mubr.f32.gmra.mxu0 %v899
  %v2746 = vpop.f32.mrf.mxu0
  %v2747 = vadd.f32 %v532, %v2746
  %v2748 = vpop.f32.mrf.mxu0
  %2749 = vmatprep.mubr.f32.mxu0 0.0
  %2750 = vmatmul.mubr.f32.gmra.mxu0 %v902
  %v2751 = vpop.f32.mrf.mxu0
  %v2752 = vadd.f32 %v532, %v2751
  %v2753 = vpop.f32.mrf.mxu0
  %2754 = vmatprep.mubr.f32.mxu0 0.0
  %2755 = vmatmul.mubr.f32.gmra.mxu0 %v905
  %v2756 = vpop.f32.mrf.mxu0
  %v2757 = vadd.f32 %v532, %v2756
  %v2758 = vpop.f32.mrf.mxu0
  %2759 = vmatprep.mubr.f32.mxu0 0.0
  %2760 = vmatmul.mubr.f32.gmra.mxu0 %v908
  %v2761 = vpop.f32.mrf.mxu0
  %v2762 = vadd.f32 %v532, %v2761
  %v2763 = vpop.f32.mrf.mxu0
  %2764 = vmatprep.mubr.f32.mxu0 0.0
  %2765 = vmatmul.mubr.f32.gmra.mxu0 %v911
  %v2766 = vpop.f32.mrf.mxu0
  %v2767 = vadd.f32 %v532, %v2766
  %v2768 = vpop.f32.mrf.mxu0
  %2769 = vmatprep.mubr.f32.mxu0 0.0
  %2770 = vmatmul.mubr.f32.gmra.mxu0 %v914
  %v2771 = vpop.f32.mrf.mxu0
  %v2772 = vadd.f32 %v532, %v2771
  %v2773 = vpop.f32.mrf.mxu0
  %2774 = vmatprep.mubr.f32.mxu0 0.0
  %2775 = vmatmul.mubr.f32.gmra.mxu0 %v917
  %v2776 = vpop.f32.mrf.mxu0
  %v2777 = vadd.f32 %v532, %v2776
  %v2778 = vpop.f32.mrf.mxu0
  %2779 = vmatprep.mubr.f32.mxu0 0.0
  %2780 = vmatmul.mubr.f32.gmra.mxu0 %v920
  %v2781 = vpop.f32.mrf.mxu0
  %v2782 = vadd.f32 %v532, %v2781
  %v2783 = vpop.f32.mrf.mxu0
  %2784 = vmatprep.mubr.f32.mxu0 0.0
  %2785 = vmatmul.mubr.f32.gmra.mxu0 %v923
  %v2786 = vpop.f32.mrf.mxu0
  %v2787 = vadd.f32 %v532, %v2786
  %v2788 = vpop.f32.mrf.mxu0
  %2789 = vmatprep.mubr.f32.mxu0 0.0
  %2790 = vmatmul.mubr.f32.gmra.mxu0 %v926
  %v2791 = vpop.f32.mrf.mxu0
  %v2792 = vadd.f32 %v532, %v2791
  %v2793 = vpop.f32.mrf.mxu0
  %2794 = vmatprep.mubr.f32.mxu0 0.0
  %2795 = vmatmul.mubr.f32.gmra.mxu0 %v929
  %v2796 = vpop.f32.mrf.mxu0
  %v2797 = vadd.f32 %v532, %v2796
  %v2798 = vpop.f32.mrf.mxu0
  %2799 = vmatprep.mubr.f32.mxu0 0.0
  %2800 = vmatmul.mubr.f32.gmra.mxu0 %v932
  %v2801 = vpop.f32.mrf.mxu0
  %v2802 = vadd.f32 %v532, %v2801
  %v2803 = vpop.f32.mrf.mxu0
  %2804 = vmatprep.mubr.f32.mxu0 0.0
  %2805 = vmatmul.mubr.f32.gmra.mxu0 %v935
  %v2806 = vpop.f32.mrf.mxu0
  %v2807 = vadd.f32 %v532, %v2806
  %v2808 = vpop.f32.mrf.mxu0
  %2809 = vmatprep.mubr.f32.mxu0 0.0
  %2810 = vmatmul.mubr.f32.gmra.mxu0 %v938
  %v2811 = vpop.f32.mrf.mxu0
  %v2812 = vadd.f32 %v532, %v2811
  %v2813 = vpop.f32.mrf.mxu0
  %2814 = vmatprep.mubr.f32.mxu0 0.0
  %2815 = vmatmul.mubr.f32.gmra.mxu0 %v941
  %v2816 = vpop.f32.mrf.mxu0
  %v2817 = vadd.f32 %v532, %v2816
  %v2818 = vpop.f32.mrf.mxu0
  %2819 = vmatprep.mubr.f32.mxu0 0.0
  %2820 = vmatmul.mubr.f32.gmra.mxu0 %v944
  %v2821 = vpop.f32.mrf.mxu0
  %v2822 = vadd.f32 %v532, %v2821
  %v2823 = vpop.f32.mrf.mxu0
  %2824 = vmatprep.mubr.f32.mxu0 0.0
  %2825 = vmatmul.mubr.f32.gmra.mxu0 %v947
  %v2826 = vpop.f32.mrf.mxu0
  %v2827 = vadd.f32 %v532, %v2826
  %v2828 = vpop.f32.mrf.mxu0
  %2829 = vmatprep.mubr.f32.mxu0 0.0
  %2830 = vmatmul.mubr.f32.gmra.mxu0 %v950
  %v2831 = vpop.f32.mrf.mxu0
  %v2832 = vadd.f32 %v532, %v2831
  %v2833 = vpop.f32.mrf.mxu0
  %2834 = vmatprep.mubr.f32.mxu0 0.0
  %2835 = vmatmul.mubr.f32.gmra.mxu0 %v953
  %v2836 = vpop.f32.mrf.mxu0
  %v2837 = vadd.f32 %v532, %v2836
  %v2838 = vpop.f32.mrf.mxu0
  %2839 = vmatprep.mubr.f32.mxu0 0.0
  %2840 = vmatmul.mubr.f32.gmra.mxu0 %v956
  %v2841 = vpop.f32.mrf.mxu0
  %v2842 = vadd.f32 %v532, %v2841
  %v2843 = vpop.f32.mrf.mxu0
  %2844 = vmatprep.mubr.f32.mxu0 0.0
  %2845 = vmatmul.mubr.f32.gmra.mxu0 %v959
  %v2846 = vpop.f32.mrf.mxu0
  %v2847 = vadd.f32 %v532, %v2846
  %v2848 = vpop.f32.mrf.mxu0
  %2849 = vmatprep.mubr.f32.mxu0 0.0
  %2850 = vmatmul.mubr.f32.gmra.mxu0 %v962
  %v2851 = vpop.f32.mrf.mxu0
  %v2852 = vadd.f32 %v532, %v2851
  %v2853 = vpop.f32.mrf.mxu0
  %2854 = vmatprep.mubr.f32.mxu0 0.0
  %2855 = vmatmul.mubr.f32.gmra.mxu0 %v965
  %v2856 = vpop.f32.mrf.mxu0
  %v2857 = vadd.f32 %v532, %v2856
  %v2858 = vpop.f32.mrf.mxu0
  %2859 = vmatprep.mubr.f32.mxu0 0.0
  %2860 = vmatmul.mubr.f32.gmra.mxu0 %v968
  %v2861 = vpop.f32.mrf.mxu0
  %v2862 = vadd.f32 %v532, %v2861
  %v2863 = vpop.f32.mrf.mxu0
  %2864 = vmatprep.mubr.f32.mxu0 0.0
  %2865 = vmatmul.mubr.f32.gmra.mxu0 %v971
  %v2866 = vpop.f32.mrf.mxu0
  %v2867 = vadd.f32 %v532, %v2866
  %v2868 = vpop.f32.mrf.mxu0
  %2869 = vmatprep.mubr.f32.mxu0 0.0
  %2870 = vmatmul.mubr.f32.gmra.mxu0 %v974
  %v2871 = vpop.f32.mrf.mxu0
  %v2872 = vadd.f32 %v532, %v2871
  %v2873 = vpop.f32.mrf.mxu0
  %2874 = vmatprep.mubr.f32.mxu0 0.0
  %2875 = vmatmul.mubr.f32.gmra.mxu0 %v977
  %v2876 = vpop.f32.mrf.mxu0
  %v2877 = vadd.f32 %v532, %v2876
  %v2878 = vpop.f32.mrf.mxu0
  %2879 = vmatprep.mubr.f32.mxu0 0.0
  %2880 = vmatmul.mubr.f32.gmra.mxu0 %v980
  %v2881 = vpop.f32.mrf.mxu0
  %v2882 = vadd.f32 %v532, %v2881
  %v2883 = vpop.f32.mrf.mxu0
  %2884 = vmatprep.mubr.f32.mxu0 0.0
  %2885 = vmatmul.mubr.f32.gmra.mxu0 %v983
  %v2886 = vpop.f32.mrf.mxu0
  %v2887 = vadd.f32 %v532, %v2886
  %v2888 = vpop.f32.mrf.mxu0
  %2889 = vmatprep.mubr.f32.mxu0 0.0
  %2890 = vmatmul.mubr.f32.gmra.mxu0 %v986
  %v2891 = vpop.f32.mrf.mxu0
  %v2892 = vadd.f32 %v532, %v2891
  %v2893 = vpop.f32.mrf.mxu0
  %2894 = vmatprep.mubr.f32.mxu0 0.0
  %2895 = vmatmul.mubr.f32.gmra.mxu0 %v989
  %v2896 = vpop.f32.mrf.mxu0
  %v2897 = vadd.f32 %v532, %v2896
  %v2898 = vpop.f32.mrf.mxu0
  %2899 = vmatprep.mubr.f32.mxu0 0.0
  %2900 = vmatmul.mubr.f32.gmra.mxu0 %v992
  %v2901 = vpop.f32.mrf.mxu0
  %v2902 = vadd.f32 %v532, %v2901
  %v2903 = vpop.f32.mrf.mxu0
  %2904 = vmatprep.mubr.f32.mxu0 0.0
  %2905 = vmatmul.mubr.f32.gmra.mxu0 %v995
  %v2906 = vpop.f32.mrf.mxu0
  %v2907 = vadd.f32 %v532, %v2906
  %v2908 = vpop.f32.mrf.mxu0
  %2909 = vmatprep.mubr.f32.mxu0 0.0
  %2910 = vmatmul.mubr.f32.gmra.mxu0 %v998
  %v2911 = vpop.f32.mrf.mxu0
  %v2912 = vadd.f32 %v532, %v2911
  %v2913 = vpop.f32.mrf.mxu0
  %2914 = vmatprep.mubr.f32.mxu0 0.0
  %2915 = vmatmul.mubr.f32.gmra.mxu0 %v1001
  %v2916 = vpop.f32.mrf.mxu0
  %v2917 = vadd.f32 %v532, %v2916
  %v2918 = vpop.f32.mrf.mxu0
  %2919 = vmatprep.mubr.f32.mxu0 0.0
  %2920 = vmatmul.mubr.f32.gmra.mxu0 %v1004
  %v2921 = vpop.f32.mrf.mxu0
  %v2922 = vadd.f32 %v532, %v2921
  %v2923 = vpop.f32.mrf.mxu0
  %2924 = vmatprep.mubr.f32.mxu0 0.0
  %2925 = vmatmul.mubr.f32.gmra.mxu0 %v1007
  %v2926 = vpop.f32.mrf.mxu0
  %v2927 = vadd.f32 %v532, %v2926
  %v2928 = vpop.f32.mrf.mxu0
  %2929 = vmatprep.mubr.f32.mxu0 0.0
  %2930 = vmatmul.mubr.f32.gmra.mxu0 %v1010
  %v2931 = vpop.f32.mrf.mxu0
  %v2932 = vadd.f32 %v532, %v2931
  %v2933 = vpop.f32.mrf.mxu0
  %2934 = vmatprep.mubr.f32.mxu0 0.0
  %2935 = vmatmul.mubr.f32.gmra.mxu0 %v1013
  %v2936 = vpop.f32.mrf.mxu0
  %v2937 = vadd.f32 %v532, %v2936
  %v2938 = vpop.f32.mrf.mxu0
  %2939 = vmatprep.mubr.f32.mxu0 0.0
  %2940 = vmatmul.mubr.f32.gmra.mxu0 %v1016
  %v2941 = vpop.f32.mrf.mxu0
  %v2942 = vadd.f32 %v532, %v2941
  %v2943 = vpop.f32.mrf.mxu0
  %2944 = vmatprep.mubr.f32.mxu0 0.0
  %2945 = vmatmul.mubr.f32.gmra.mxu0 %v1019
  %v2946 = vpop.f32.mrf.mxu0
  %v2947 = vadd.f32 %v532, %v2946
  %v2948 = vpop.f32.mrf.mxu0
  %2949 = vmatprep.mubr.f32.mxu0 0.0
  %2950 = vmatmul.mubr.f32.gmra.mxu0 %v1022
  %v2951 = vpop.f32.mrf.mxu0
  %v2952 = vadd.f32 %v532, %v2951
  %v2953 = vpop.f32.mrf.mxu0
  %2954 = vmatprep.mubr.f32.mxu0 0.0
  %2955 = vmatmul.mubr.f32.gmra.mxu0 %v1025
  %v2956 = vpop.f32.mrf.mxu0
  %v2957 = vadd.f32 %v532, %v2956
  %v2958 = vpop.f32.mrf.mxu0
  %2959 = vmatprep.mubr.f32.mxu0 0.0
  %2960 = vmatmul.mubr.f32.gmra.mxu0 %v1028
  %v2961 = vpop.f32.mrf.mxu0
  %v2962 = vadd.f32 %v532, %v2961
  %v2963 = vpop.f32.mrf.mxu0
  %2964 = vmatprep.mubr.f32.mxu0 0.0
  %2965 = vmatmul.mubr.f32.gmra.mxu0 %v1031
  %v2966 = vpop.f32.mrf.mxu0
  %v2967 = vadd.f32 %v532, %v2966
  %v2968 = vpop.f32.mrf.mxu0
  %2969 = vmatprep.mubr.f32.mxu0 0.0
  %2970 = vmatmul.mubr.f32.gmra.mxu0 %v1034
  %v2971 = vpop.f32.mrf.mxu0
  %v2972 = vadd.f32 %v532, %v2971
  %v2973 = vpop.f32.mrf.mxu0
  %2974 = vmatprep.mubr.f32.mxu0 0.0
  %2975 = vmatmul.mubr.f32.gmra.mxu0 %v1037
  %v2976 = vpop.f32.mrf.mxu0
  %v2977 = vadd.f32 %v532, %v2976
  %v2978 = vpop.f32.mrf.mxu0
  %2979 = vmatprep.mubr.f32.mxu0 0.0
  %2980 = vmatmul.mubr.f32.gmra.mxu0 %v1040
  %v2981 = vpop.f32.mrf.mxu0
  %v2982 = vadd.f32 %v532, %v2981
  %v2983 = vpop.f32.mrf.mxu0
  %2984 = vmatprep.mubr.f32.mxu0 0.0
  %2985 = vmatmul.mubr.f32.gmra.mxu0 %v1043
  %v2986 = vpop.f32.mrf.mxu0
  %v2987 = vadd.f32 %v532, %v2986
  %v2988 = vpop.f32.mrf.mxu0
  %2989 = vmatprep.mubr.f32.mxu0 0.0
  %2990 = vmatmul.mubr.f32.gmra.mxu0 %v1046
  %v2991 = vpop.f32.mrf.mxu0
  %v2992 = vadd.f32 %v532, %v2991
  %v2993 = vpop.f32.mrf.mxu0
  %2994 = vmatprep.mubr.f32.mxu0 0.0
  %2995 = vmatmul.mubr.f32.gmra.mxu0 %v1049
  %v2996 = vpop.f32.mrf.mxu0
  %v2997 = vadd.f32 %v532, %v2996
  %v2998 = vpop.f32.mrf.mxu0
  %2999 = vmatprep.mubr.f32.mxu0 0.0
  %3000 = vmatmul.mubr.f32.gmra.mxu0 %v1052
  %v3001 = vpop.f32.mrf.mxu0
  %v3002 = vadd.f32 %v532, %v3001
  %v3003 = vpop.f32.mrf.mxu0
  %3004 = vmatprep.mubr.f32.mxu0 0.0
  %3005 = vmatmul.mubr.f32.gmra.mxu0 %v1055
  %v3006 = vpop.f32.mrf.mxu0
  %v3007 = vadd.f32 %v532, %v3006
  %v3008 = vpop.f32.mrf.mxu0
  %3009 = vmatprep.mubr.f32.mxu0 0.0
  %3010 = vmatmul.mubr.f32.gmra.mxu0 %v1058
  %v3011 = vpop.f32.mrf.mxu0
  %v3012 = vadd.f32 %v532, %v3011
  %v3013 = vpop.f32.mrf.mxu0
  %3014 = vmatprep.mubr.f32.mxu0 0.0
  %3015 = vmatmul.mubr.f32.gmra.mxu0 %v1061
  %v3016 = vpop.f32.mrf.mxu0
  %v3017 = vadd.f32 %v532, %v3016
  %v3018 = vpop.f32.mrf.mxu0
  %3019 = vmatprep.mubr.f32.mxu0 0.0
  %3020 = vmatmul.mubr.f32.gmra.mxu0 %v1064
  %v3021 = vpop.f32.mrf.mxu0
  %v3022 = vadd.f32 %v532, %v3021
  %v3023 = vpop.f32.mrf.mxu0
  %3024 = vmatprep.mubr.f32.mxu0 0.0
  %3025 = vmatmul.mubr.f32.gmra.mxu0 %v1067
  %v3026 = vpop.f32.mrf.mxu0
  %v3027 = vadd.f32 %v532, %v3026
  %v3028 = vpop.f32.mrf.mxu0
  %3029 = vmatprep.mubr.f32.mxu0 0.0
  %3030 = vmatmul.mubr.f32.gmra.mxu0 %v1070
  %v3031 = vpop.f32.mrf.mxu0
  %v3032 = vadd.f32 %v532, %v3031
  %v3033 = vpop.f32.mrf.mxu0
  %3034 = vmatprep.mubr.f32.mxu0 0.0
  %3035 = vmatmul.mubr.f32.gmra.mxu0 %v1073
  %v3036 = vpop.f32.mrf.mxu0
  %v3037 = vadd.f32 %v532, %v3036
  %v3038 = vpop.f32.mrf.mxu0
  %3039 = vmatprep.mubr.f32.mxu0 0.0
  %3040 = vmatmul.mubr.f32.gmra.mxu0 %v1076
  %v3041 = vpop.f32.mrf.mxu0
  %v3042 = vadd.f32 %v532, %v3041
  %v3043 = vpop.f32.mrf.mxu0
  %3044 = vmatprep.mubr.f32.mxu0 0.0
  %3045 = vmatmul.mubr.f32.gmra.mxu0 %v1079
  %v3046 = vpop.f32.mrf.mxu0
  %v3047 = vadd.f32 %v532, %v3046
  %v3048 = vpop.f32.mrf.mxu0
  %3049 = vmatprep.mubr.f32.mxu0 0.0
  %3050 = vmatmul.mubr.f32.gmra.mxu0 %v1082
  %v3051 = vpop.f32.mrf.mxu0
  %v3052 = vadd.f32 %v532, %v3051
  %v3053 = vpop.f32.mrf.mxu0
  %3054 = vmatprep.mubr.f32.mxu0 0.0
  %3055 = vmatmul.mubr.f32.gmra.mxu0 %v1085
  %v3056 = vpop.f32.mrf.mxu0
  %v3057 = vadd.f32 %v532, %v3056
  %v3058 = vpop.f32.mrf.mxu0
  %3059 = vmatprep.mubr.f32.mxu0 0.0
  %3060 = vmatmul.mubr.f32.gmra.mxu0 %v1088
  %v3061 = vpop.f32.mrf.mxu0
  %v3062 = vadd.f32 %v532, %v3061
  %v3063 = vpop.f32.mrf.mxu0
  %3064 = vmatprep.mubr.f32.mxu0 0.0
  %3065 = vmatmul.mubr.f32.gmra.mxu0 %v1091
  %v3066 = vpop.f32.mrf.mxu0
  %v3067 = vadd.f32 %v532, %v3066
  %v3068 = vpop.f32.mrf.mxu0
  %3069 = vmatprep.mubr.f32.mxu0 0.0
  %3070 = vmatmul.mubr.f32.gmra.mxu0 %v1094
  %v3071 = vpop.f32.mrf.mxu0
  %v3072 = vadd.f32 %v532, %v3071
  %v3073 = vpop.f32.mrf.mxu0
  %3074 = vmatprep.mubr.f32.mxu0 0.0
  %3075 = vmatmul.mubr.f32.gmra.mxu0 %v1097
  %v3076 = vpop.f32.mrf.mxu0
  %v3077 = vadd.f32 %v532, %v3076
  %v3078 = vpop.f32.mrf.mxu0
  %3079 = vmatprep.mubr.f32.mxu0 0.0
  %3080 = vmatmul.mubr.f32.gmra.mxu0 %v1100
  %v3081 = vpop.f32.mrf.mxu0
  %v3082 = vadd.f32 %v532, %v3081
  %v3083 = vpop.f32.mrf.mxu0
  %3084 = vmatprep.mubr.f32.mxu0 0.0
  %3085 = vmatmul.mubr.f32.gmra.mxu0 %v1103
  %v3086 = vpop.f32.mrf.mxu0
  %v3087 = vadd.f32 %v532, %v3086
  %v3088 = vpop.f32.mrf.mxu0
  %3089 = vmatprep.mubr.f32.mxu0 0.0
  %3090 = vmatmul.mubr.f32.gmra.mxu0 %v1106
  %v3091 = vpop.f32.mrf.mxu0
  %v3092 = vadd.f32 %v532, %v3091
  %v3093 = vpop.f32.mrf.mxu0
  %3094 = vmatprep.mubr.f32.mxu0 0.0
  %3095 = vmatmul.mubr.f32.gmra.mxu0 %v1109
  %v3096 = vpop.f32.mrf.mxu0
  %v3097 = vadd.f32 %v532, %v3096
  %v3098 = vpop.f32.mrf.mxu0
  %3099 = vmatprep.mubr.f32.mxu0 0.0
  %3100 = vmatmul.mubr.f32.gmra.mxu0 %v1112
  %v3101 = vpop.f32.mrf.mxu0
  %v3102 = vadd.f32 %v532, %v3101
  %v3103 = vpop.f32.mrf.mxu0
  %3104 = vmatprep.mubr.f32.mxu0 0.0
  %3105 = vmatmul.mubr.f32.gmra.mxu0 %v1115
  %v3106 = vpop.f32.mrf.mxu0
  %v3107 = vadd.f32 %v532, %v3106
  %v3108 = vpop.f32.mrf.mxu0
  %3109 = vmatprep.mubr.f32.mxu0 0.0
  %3110 = vmatmul.mubr.f32.gmra.mxu0 %v1118
  %v3111 = vpop.f32.mrf.mxu0
  %v3112 = vadd.f32 %v532, %v3111
  %v3113 = vpop.f32.mrf.mxu0
  %3114 = vmatprep.mubr.f32.mxu0 0.0
  %3115 = vmatmul.mubr.f32.gmra.mxu0 %v1121
  %v3116 = vpop.f32.mrf.mxu0
  %v3117 = vadd.f32 %v532, %v3116
  %v3118 = vpop.f32.mrf.mxu0
  %3119 = vmatprep.mubr.f32.mxu0 0.0
  %3120 = vmatmul.mubr.f32.gmra.mxu0 %v1124
  %v3121 = vpop.f32.mrf.mxu0
  %v3122 = vadd.f32 %v532, %v3121
  %v3123 = vpop.f32.mrf.mxu0
  %3124 = vmatprep.mubr.f32.mxu0 0.0
  %3125 = vmatmul.mubr.f32.gmra.mxu0 %v1127
  %v3126 = vpop.f32.mrf.mxu0
  %v3127 = vadd.f32 %v532, %v3126
  %v3128 = vpop.f32.mrf.mxu0
  %3129 = vmatprep.mubr.f32.mxu0 0.0
  %3130 = vmatmul.mubr.f32.gmra.mxu0 %v1130
  %v3131 = vpop.f32.mrf.mxu0
  %v3132 = vadd.f32 %v532, %v3131
  %v3133 = vpop.f32.mrf.mxu0
  %3134 = vmatprep.mubr.f32.mxu0 0.0
  %3135 = vmatmul.mubr.f32.gmra.mxu0 %v1133
  %v3136 = vpop.f32.mrf.mxu0
  %v3137 = vadd.f32 %v532, %v3136
  %v3138 = vpop.f32.mrf.mxu0
  %3139 = vmatprep.mubr.f32.mxu0 0.0
  %3140 = vmatmul.mubr.f32.gmra.mxu0 %v1136
  %v3141 = vpop.f32.mrf.mxu0
  %v3142 = vadd.f32 %v532, %v3141
  %v3143 = vpop.f32.mrf.mxu0
  %3144 = vmatprep.mubr.f32.mxu0 0.0
  %3145 = vmatmul.mubr.f32.gmra.mxu0 %v1139
  %v3146 = vpop.f32.mrf.mxu0
  %v3147 = vadd.f32 %v532, %v3146
  %v3148 = vpop.f32.mrf.mxu0
  %3149 = vmatprep.mubr.f32.mxu0 0.0
  %3150 = vmatmul.mubr.f32.gmra.mxu0 %v1142
  %v3151 = vpop.f32.mrf.mxu0
  %v3152 = vadd.f32 %v532, %v3151
  %v3153 = vpop.f32.mrf.mxu0
  %3154 = vmatprep.mubr.f32.mxu0 0.0
  %3155 = vmatmul.mubr.f32.gmra.mxu0 %v1145
  %v3156 = vpop.f32.mrf.mxu0
  %v3157 = vadd.f32 %v532, %v3156
  %v3158 = vpop.f32.mrf.mxu0
  %3159 = vmatprep.mubr.f32.mxu0 0.0
  %3160 = vmatmul.mubr.f32.gmra.mxu0 %v1148
  %v3161 = vpop.f32.mrf.mxu0
  %v3162 = vadd.f32 %v532, %v3161
  %v3163 = vpop.f32.mrf.mxu0
  %3164 = vmatprep.mubr.f32.mxu0 0.0
  %3165 = vmatmul.mubr.f32.gmra.mxu0 %v1151
  %v3166 = vpop.f32.mrf.mxu0
  %v3167 = vadd.f32 %v532, %v3166
  %v3168 = vpop.f32.mrf.mxu0
  %3169 = vmatprep.mubr.f32.mxu0 0.0
  %3170 = vmatmul.mubr.f32.gmra.mxu0 %v1154
  %v3171 = vpop.f32.mrf.mxu0
  %v3172 = vadd.f32 %v532, %v3171
  %v3173 = vpop.f32.mrf.mxu0
  %3174 = vmatprep.mubr.f32.mxu0 0.0
  %3175 = vmatmul.mubr.f32.gmra.mxu0 %v1157
  %v3176 = vpop.f32.mrf.mxu0
  %v3177 = vadd.f32 %v532, %v3176
  %v3178 = vpop.f32.mrf.mxu0
  %3179 = vmatprep.mubr.f32.mxu0 0.0
  %3180 = vmatmul.mubr.f32.gmra.mxu0 %v1160
  %v3181 = vpop.f32.mrf.mxu0
  %v3182 = vadd.f32 %v532, %v3181
  %v3183 = vpop.f32.mrf.mxu0
  %3184 = vmatprep.mubr.f32.mxu0 0.0
  %3185 = vmatmul.mubr.f32.gmra.mxu0 %v1163
  %v3186 = vpop.f32.mrf.mxu0
  %v3187 = vadd.f32 %v532, %v3186
  %v3188 = vpop.f32.mrf.mxu0
  %3189 = vmatprep.mubr.f32.mxu0 0.0
  %3190 = vmatmul.mubr.f32.gmra.mxu0 %v1166
  %v3191 = vpop.f32.mrf.mxu0
  %v3192 = vadd.f32 %v532, %v3191
  %v3193 = vpop.f32.mrf.mxu0
  %3194 = vmatprep.mubr.f32.mxu0 0.0
  %3195 = vmatmul.mubr.f32.gmra.mxu0 %v1169
  %v3196 = vpop.f32.mrf.mxu0
  %v3197 = vadd.f32 %v532, %v3196
  %v3198 = vpop.f32.mrf.mxu0
  %3199 = vmatprep.mubr.f32.mxu0 0.0
  %3200 = vmatmul.mubr.f32.gmra.mxu0 %v1172
  %v3201 = vpop.f32.mrf.mxu0
  %v3202 = vadd.f32 %v532, %v3201
  %v3203 = vpop.f32.mrf.mxu0
  %3204 = vmatprep.mubr.f32.mxu0 0.0
  %3205 = vmatmul.mubr.f32.gmra.mxu0 %v1175
  %v3206 = vpop.f32.mrf.mxu0
  %v3207 = vadd.f32 %v532, %v3206
  %v3208 = vpop.f32.mrf.mxu0
  %3209 = vmatprep.mubr.f32.mxu0 0.0
  %3210 = vmatmul.mubr.f32.gmra.mxu0 %v1178
  %v3211 = vpop.f32.mrf.mxu0
  %v3212 = vadd.f32 %v532, %v3211
  %v3213 = vpop.f32.mrf.mxu0
  %3214 = vmatprep.mubr.f32.mxu0 0.0
  %3215 = vmatmul.mubr.f32.gmra.mxu0 %v1181
  %v3216 = vpop.f32.mrf.mxu0
  %v3217 = vadd.f32 %v532, %v3216
  %v3218 = vpop.f32.mrf.mxu0
  %3219 = vmatprep.mubr.f32.mxu0 0.0
  %3220 = vmatmul.mubr.f32.gmra.mxu0 %v1184
  %v3221 = vpop.f32.mrf.mxu0
  %v3222 = vadd.f32 %v532, %v3221
  %v3223 = vpop.f32.mrf.mxu0
  %3224 = vmatprep.mubr.f32.mxu0 0.0
  %3225 = vmatmul.mubr.f32.gmra.mxu0 %v1187
  %v3226 = vpop.f32.mrf.mxu0
  %v3227 = vadd.f32 %v532, %v3226
  %v3228 = vpop.f32.mrf.mxu0
  %3229 = vmatprep.mubr.f32.mxu0 0.0
  %3230 = vmatmul.mubr.f32.gmra.mxu0 %v1190
  %v3231 = vpop.f32.mrf.mxu0
  %v3232 = vadd.f32 %v532, %v3231
  %v3233 = vpop.f32.mrf.mxu0
  %3234 = vmatprep.mubr.f32.mxu0 0.0
  %3235 = vmatmul.mubr.f32.gmra.mxu0 %v1193
  %v3236 = vpop.f32.mrf.mxu0
  %v3237 = vadd.f32 %v532, %v3236
  %v3238 = vpop.f32.mrf.mxu0
  %3239 = vmatprep.mubr.f32.mxu0 0.0
  %3240 = vmatmul.mubr.f32.gmra.mxu0 %v1196
  %v3241 = vpop.f32.mrf.mxu0
  %v3242 = vadd.f32 %v532, %v3241
  %v3243 = vpop.f32.mrf.mxu0
  %3244 = vmatprep.mubr.f32.mxu0 0.0
  %3245 = vmatmul.mubr.f32.gmra.mxu0 %v1199
  %v3246 = vpop.f32.mrf.mxu0
  %v3247 = vadd.f32 %v532, %v3246
  %v3248 = vpop.f32.mrf.mxu0
  %3249 = vmatprep.mubr.f32.mxu0 0.0
  %3250 = vmatmul.mubr.f32.gmra.mxu0 %v1202
  %v3251 = vpop.f32.mrf.mxu0
  %v3252 = vadd.f32 %v532, %v3251
  %v3253 = vpop.f32.mrf.mxu0
  %3254 = vmatprep.mubr.f32.mxu0 0.0
  %3255 = vmatmul.mubr.f32.gmra.mxu0 %v1205
  %v3256 = vpop.f32.mrf.mxu0
  %v3257 = vadd.f32 %v532, %v3256
  %v3258 = vpop.f32.mrf.mxu0
  %3259 = vmatprep.mubr.f32.mxu0 0.0
  %3260 = vmatmul.mubr.f32.gmra.mxu0 %v1208
  %v3261 = vpop.f32.mrf.mxu0
  %v3262 = vadd.f32 %v532, %v3261
  %v3263 = vpop.f32.mrf.mxu0
  %3264 = vmatprep.mubr.f32.mxu0 0.0
  %3265 = vmatmul.mubr.f32.gmra.mxu0 %v1211
  %v3266 = vpop.f32.mrf.mxu0
  %v3267 = vadd.f32 %v532, %v3266
  %v3268 = vpop.f32.mrf.mxu0
  %3269 = vmatprep.mubr.f32.mxu0 0.0
  %3270 = vmatmul.mubr.f32.gmra.mxu0 %v1214
  %v3271 = vpop.f32.mrf.mxu0
  %v3272 = vadd.f32 %v532, %v3271
  %v3273 = vpop.f32.mrf.mxu0
  %3274 = vmatprep.mubr.f32.mxu0 0.0
  %3275 = vmatmul.mubr.f32.gmra.mxu0 %v1217
  %v3276 = vpop.f32.mrf.mxu0
  %v3277 = vadd.f32 %v532, %v3276
  %v3278 = vpop.f32.mrf.mxu0
  %3279 = vmatprep.mubr.f32.mxu0 0.0
  %3280 = vmatmul.mubr.f32.gmra.mxu0 %v1220
  %v3281 = vpop.f32.mrf.mxu0
  %v3282 = vadd.f32 %v532, %v3281
  %v3283 = vpop.f32.mrf.mxu0
  %3284 = vmatprep.mubr.f32.mxu0 0.0
  %3285 = vmatmul.mubr.f32.gmra.mxu0 %v1223
  %v3286 = vpop.f32.mrf.mxu0
  %v3287 = vadd.f32 %v532, %v3286
  %v3288 = vpop.f32.mrf.mxu0
  %3289 = vmatprep.mubr.f32.mxu0 0.0
  %3290 = vmatmul.mubr.f32.gmra.mxu0 %v1226
  %v3291 = vpop.f32.mrf.mxu0
  %v3292 = vadd.f32 %v532, %v3291
  %v3293 = vpop.f32.mrf.mxu0
  %3294 = vmatprep.mubr.f32.mxu0 0.0
  %3295 = vmatmul.mubr.f32.gmra.mxu0 %v1229
  %v3296 = vpop.f32.mrf.mxu0
  %v3297 = vadd.f32 %v532, %v3296
  %v3298 = vpop.f32.mrf.mxu0
  %3299 = vmatprep.mubr.f32.mxu0 0.0
  %3300 = vmatmul.mubr.f32.gmra.mxu0 %v1232
  %v3301 = vpop.f32.mrf.mxu0
  %v3302 = vadd.f32 %v532, %v3301
  %v3303 = vpop.f32.mrf.mxu0
  %3304 = vmatprep.mubr.f32.mxu0 0.0
  %3305 = vmatmul.mubr.f32.gmra.mxu0 %v1235
  %v3306 = vpop.f32.mrf.mxu0
  %v3307 = vadd.f32 %v532, %v3306
  %v3308 = vpop.f32.mrf.mxu0
  %3309 = vmatprep.mubr.f32.mxu0 0.0
  %3310 = vmatmul.mubr.f32.gmra.mxu0 %v1238
  %v3311 = vpop.f32.mrf.mxu0
  %v3312 = vadd.f32 %v532, %v3311
  %v3313 = vpop.f32.mrf.mxu0
  %3314 = vmatprep.mubr.f32.mxu0 0.0
  %3315 = vmatmul.mubr.f32.gmra.mxu0 %v1241
  %v3316 = vpop.f32.mrf.mxu0
  %v3317 = vadd.f32 %v532, %v3316
  %v3318 = vpop.f32.mrf.mxu0
  %3319 = vmatprep.mubr.f32.mxu0 0.0
  %3320 = vmatmul.mubr.f32.gmra.mxu0 %v1244
  %v3321 = vpop.f32.mrf.mxu0
  %v3322 = vadd.f32 %v532, %v3321
  %v3323 = vpop.f32.mrf.mxu0
  %3324 = vmatprep.mubr.f32.mxu0 0.0
  %3325 = vmatmul.mubr.f32.gmra.mxu0 %v1247
  %v3326 = vpop.f32.mrf.mxu0
  %v3327 = vadd.f32 %v532, %v3326
  %v3328 = vpop.f32.mrf.mxu0
  %3329 = vmatprep.mubr.f32.mxu0 0.0
  %3330 = vmatmul.mubr.f32.gmra.mxu0 %v1250
  %v3331 = vpop.f32.mrf.mxu0
  %v3332 = vadd.f32 %v532, %v3331
  %v3333 = vpop.f32.mrf.mxu0
  %3334 = vmatprep.mubr.f32.mxu0 0.0
  %3335 = vmatmul.mubr.f32.gmra.mxu0 %v1253
  %v3336 = vpop.f32.mrf.mxu0
  %v3337 = vadd.f32 %v532, %v3336
  %v3338 = vpop.f32.mrf.mxu0
  %3339 = vmatprep.mubr.f32.mxu0 0.0
  %3340 = vmatmul.mubr.f32.gmra.mxu0 %v1256
  %v3341 = vpop.f32.mrf.mxu0
  %v3342 = vadd.f32 %v532, %v3341
  %v3343 = vpop.f32.mrf.mxu0
  %3344 = vmatprep.mubr.f32.mxu0 0.0
  %3345 = vmatmul.mubr.f32.gmra.mxu0 %v1259
  %v3346 = vpop.f32.mrf.mxu0
  %v3347 = vadd.f32 %v532, %v3346
  %v3348 = vpop.f32.mrf.mxu0
  %3349 = vmatprep.mubr.f32.mxu0 0.0
  %3350 = vmatmul.mubr.f32.gmra.mxu0 %v1262
  %v3351 = vpop.f32.mrf.mxu0
  %v3352 = vadd.f32 %v532, %v3351
  %v3353 = vpop.f32.mrf.mxu0
  %3354 = vmatprep.mubr.f32.mxu0 0.0
  %3355 = vmatmul.mubr.f32.gmra.mxu0 %v1265
  %v3356 = vpop.f32.mrf.mxu0
  %v3357 = vadd.f32 %v532, %v3356
  %v3358 = vpop.f32.mrf.mxu0
  %3359 = vmatprep.mubr.f32.mxu0 0.0
  %3360 = vmatmul.mubr.f32.gmra.mxu0 %v1268
  %v3361 = vpop.f32.mrf.mxu0
  %v3362 = vadd.f32 %v532, %v3361
  %v3363 = vpop.f32.mrf.mxu0
  %3364 = vmatprep.mubr.f32.mxu0 0.0
  %3365 = vmatmul.mubr.f32.gmra.mxu0 %v1271
  %v3366 = vpop.f32.mrf.mxu0
  %v3367 = vadd.f32 %v532, %v3366
  %v3368 = vpop.f32.mrf.mxu0
  %3369 = vmatprep.mubr.f32.mxu0 0.0
  %3370 = vmatmul.mubr.f32.gmra.mxu0 %v1274
  %v3371 = vpop.f32.mrf.mxu0
  %v3372 = vadd.f32 %v532, %v3371
  %v3373 = vpop.f32.mrf.mxu0
  %3374 = vmatprep.mubr.f32.mxu0 0.0
  %3375 = vmatmul.mubr.f32.gmra.mxu0 %v1277
  %v3376 = vpop.f32.mrf.mxu0
  %v3377 = vadd.f32 %v532, %v3376
  %v3378 = vpop.f32.mrf.mxu0
  %3379 = vmatprep.mubr.f32.mxu0 0.0
  %3380 = vmatmul.mubr.f32.gmra.mxu0 %v1280
  %v3381 = vpop.f32.mrf.mxu0
  %v3382 = vadd.f32 %v532, %v3381
  %v3383 = vpop.f32.mrf.mxu0
  %3384 = vmatprep.mubr.f32.mxu0 0.0
  %3385 = vmatmul.mubr.f32.gmra.mxu0 %v1283
  %v3386 = vpop.f32.mrf.mxu0
  %v3387 = vadd.f32 %v532, %v3386
  %v3388 = vpop.f32.mrf.mxu0
  %3389 = vmatprep.mubr.f32.mxu0 0.0
  %3390 = vmatmul.mubr.f32.gmra.mxu0 %v1286
  %v3391 = vpop.f32.mrf.mxu0
  %v3392 = vadd.f32 %v532, %v3391
  %v3393 = vpop.f32.mrf.mxu0
  %3394 = vmatprep.mubr.f32.mxu0 0.0
  %3395 = vmatmul.mubr.f32.gmra.mxu0 %v1289
  %v3396 = vpop.f32.mrf.mxu0
  %v3397 = vadd.f32 %v532, %v3396
  %v3398 = vpop.f32.mrf.mxu0
  %3399 = vmatprep.mubr.f32.mxu0 0.0
  %3400 = vmatmul.mubr.f32.gmra.mxu0 %v1292
  %v3401 = vpop.f32.mrf.mxu0
  %v3402 = vadd.f32 %v532, %v3401
  %v3403 = vpop.f32.mrf.mxu0
  %3404 = vmatprep.mubr.f32.mxu0 0.0
  %3405 = vmatmul.mubr.f32.gmra.mxu0 %v1295
  %v3406 = vpop.f32.mrf.mxu0
  %v3407 = vadd.f32 %v532, %v3406
  %v3408 = vpop.f32.mrf.mxu0
  %3409 = vmatprep.mubr.f32.mxu0 0.0
  %3410 = vmatmul.mubr.f32.gmra.mxu0 %v1298
  %v3411 = vpop.f32.mrf.mxu0
  %v3412 = vadd.f32 %v532, %v3411
  %v3413 = vpop.f32.mrf.mxu0
  %3414 = vmatprep.mubr.f32.mxu0 0.0
  %3415 = vmatmul.mubr.f32.gmra.mxu0 %v1301
  %v3416 = vpop.f32.mrf.mxu0
  %v3417 = vadd.f32 %v532, %v3416
  %v3418 = vpop.f32.mrf.mxu0
  %3419 = vmatprep.mubr.f32.mxu0 0.0
  %3420 = vmatmul.mubr.f32.gmra.mxu0 %v1304
  %v3421 = vpop.f32.mrf.mxu0
  %v3422 = vadd.f32 %v532, %v3421
  %v3423 = vpop.f32.mrf.mxu0
  %3424 = vmatprep.mubr.f32.mxu0 0.0
  %3425 = vmatmul.mubr.f32.gmra.mxu0 %v1307
  %v3426 = vpop.f32.mrf.mxu0
  %v3427 = vadd.f32 %v532, %v3426
  %v3428 = vpop.f32.mrf.mxu0
  %3429 = vmatprep.mubr.f32.mxu0 0.0
  %3430 = vmatmul.mubr.f32.gmra.mxu0 %v1310
  %v3431 = vpop.f32.mrf.mxu0
  %v3432 = vadd.f32 %v532, %v3431
  %v3433 = vpop.f32.mrf.mxu0
  %3434 = vmatprep.mubr.f32.mxu0 0.0
  %3435 = vmatmul.mubr.f32.gmra.mxu0 %v1313
  %v3436 = vpop.f32.mrf.mxu0
  %v3437 = vadd.f32 %v532, %v3436
  %v3438 = vpop.f32.mrf.mxu0
  %3439 = vmatprep.mubr.f32.mxu0 0.0
  %3440 = vmatmul.mubr.f32.gmra.mxu0 %v1316
  %v3441 = vpop.f32.mrf.mxu0
  %v3442 = vadd.f32 %v532, %v3441
  %v3443 = vpop.f32.mrf.mxu0
  %3444 = vmatprep.mubr.f32.mxu0 0.0
  %3445 = vmatmul.mubr.f32.gmra.mxu0 %v1319
  %v3446 = vpop.f32.mrf.mxu0
  %v3447 = vadd.f32 %v532, %v3446
  %v3448 = vpop.f32.mrf.mxu0
  %3449 = vmatprep.mubr.f32.mxu0 0.0
  %3450 = vmatmul.mubr.f32.gmra.mxu0 %v1322
  %v3451 = vpop.f32.mrf.mxu0
  %v3452 = vadd.f32 %v532, %v3451
  %v3453 = vpop.f32.mrf.mxu0
  %3454 = vmatprep.mubr.f32.mxu0 0.0
  %3455 = vmatmul.mubr.f32.gmra.mxu0 %v1325
  %v3456 = vpop.f32.mrf.mxu0
  %v3457 = vadd.f32 %v532, %v3456
  %v3458 = vpop.f32.mrf.mxu0
  %3459 = vmatprep.mubr.f32.mxu0 0.0
  %3460 = vmatmul.mubr.f32.gmra.mxu0 %v1328
  %v3461 = vpop.f32.mrf.mxu0
  %v3462 = vadd.f32 %v532, %v3461
  %v3463 = vpop.f32.mrf.mxu0
  %3464 = vmatprep.mubr.f32.mxu0 0.0
  %3465 = vmatmul.mubr.f32.gmra.mxu0 %v1331
  %v3466 = vpop.f32.mrf.mxu0
  %v3467 = vadd.f32 %v532, %v3466
  %v3468 = vpop.f32.mrf.mxu0
  %3469 = vmatprep.mubr.f32.mxu0 0.0
  %3470 = vmatmul.mubr.f32.gmra.mxu0 %v1334
  %v3471 = vpop.f32.mrf.mxu0
  %v3472 = vadd.f32 %v532, %v3471
  %v3473 = vpop.f32.mrf.mxu0
  %3474 = vmatprep.mubr.f32.mxu0 0.0
  %3475 = vmatmul.mubr.f32.gmra.mxu0 %v1337
  %v3476 = vpop.f32.mrf.mxu0
  %v3477 = vadd.f32 %v532, %v3476
  %v3478 = vpop.f32.mrf.mxu0
  %3479 = vmatprep.mubr.f32.mxu0 0.0
  %3480 = vmatmul.mubr.f32.gmra.mxu0 %v1340
  %v3481 = vpop.f32.mrf.mxu0
  %v3482 = vadd.f32 %v532, %v3481
  %v3483 = vpop.f32.mrf.mxu0
  %3484 = vmatprep.mubr.f32.mxu0 0.0
  %3485 = vmatmul.mubr.f32.gmra.mxu0 %v1343
  %v3486 = vpop.f32.mrf.mxu0
  %v3487 = vadd.f32 %v532, %v3486
  %v3488 = vpop.f32.mrf.mxu0
  %3489 = vmatprep.mubr.f32.mxu0 0.0
  %3490 = vmatmul.mubr.f32.gmra.mxu0 %v1346
  %v3491 = vpop.f32.mrf.mxu0
  %v3492 = vadd.f32 %v532, %v3491
  %v3493 = vpop.f32.mrf.mxu0
  %3494 = vmatprep.mubr.f32.mxu0 0.0
  %3495 = vmatmul.mubr.f32.gmra.mxu0 %v1349
  %v3496 = vpop.f32.mrf.mxu0
  %v3497 = vadd.f32 %v532, %v3496
  %v3498 = vpop.f32.mrf.mxu0
  %3499 = vmatprep.mubr.f32.mxu0 0.0
  %3500 = vmatmul.mubr.f32.gmra.mxu0 %v1352
  %v3501 = vpop.f32.mrf.mxu0
  %v3502 = vadd.f32 %v532, %v3501
  %v3503 = vpop.f32.mrf.mxu0
  %3504 = vmatprep.mubr.f32.mxu0 0.0
  %3505 = vmatmul.mubr.f32.gmra.mxu0 %v1355
  %v3506 = vpop.f32.mrf.mxu0
  %v3507 = vadd.f32 %v532, %v3506
  %v3508 = vpop.f32.mrf.mxu0
  %3509 = vmatprep.mubr.f32.mxu0 0.0
  %3510 = vmatmul.mubr.f32.gmra.mxu0 %v1358
  %v3511 = vpop.f32.mrf.mxu0
  %v3512 = vadd.f32 %v532, %v3511
  %v3513 = vpop.f32.mrf.mxu0
  %3514 = vmatprep.mubr.f32.mxu0 0.0
  %3515 = vmatmul.mubr.f32.gmra.mxu0 %v1361
  %v3516 = vpop.f32.mrf.mxu0
  %v3517 = vadd.f32 %v532, %v3516
  %v3518 = vpop.f32.mrf.mxu0
  %3519 = vmatprep.mubr.f32.mxu0 0.0
  %3520 = vmatmul.mubr.f32.gmra.mxu0 %v1364
  %v3521 = vpop.f32.mrf.mxu0
  %v3522 = vadd.f32 %v532, %v3521
  %v3523 = vpop.f32.mrf.mxu0
  %3524 = vmatprep.mubr.f32.mxu0 0.0
  %3525 = vmatmul.mubr.f32.gmra.mxu0 %v1367
  %v3526 = vpop.f32.mrf.mxu0
  %v3527 = vadd.f32 %v532, %v3526
  %v3528 = vpop.f32.mrf.mxu0
  %3529 = vmatprep.mubr.f32.mxu0 0.0
  %3530 = vmatmul.mubr.f32.gmra.mxu0 %v1370
  %v3531 = vpop.f32.mrf.mxu0
  %v3532 = vadd.f32 %v532, %v3531
  %v3533 = vpop.f32.mrf.mxu0
  %3534 = vmatprep.mubr.f32.mxu0 0.0
  %3535 = vmatmul.mubr.f32.gmra.mxu0 %v1373
  %v3536 = vpop.f32.mrf.mxu0
  %v3537 = vadd.f32 %v532, %v3536
  %v3538 = vpop.f32.mrf.mxu0
  %3539 = vmatprep.mubr.f32.mxu0 0.0
  %3540 = vmatmul.mubr.f32.gmra.mxu0 %v1376
  %v3541 = vpop.f32.mrf.mxu0
  %v3542 = vadd.f32 %v532, %v3541
  %v3543 = vpop.f32.mrf.mxu0
  %3544 = vmatprep.mubr.f32.mxu0 0.0
  %3545 = vmatmul.mubr.f32.gmra.mxu0 %v1379
  %v3546 = vpop.f32.mrf.mxu0
  %v3547 = vadd.f32 %v532, %v3546
  %v3548 = vpop.f32.mrf.mxu0
  %3549 = vmatprep.mubr.f32.mxu0 0.0
  %3550 = vmatmul.mubr.f32.gmra.mxu0 %v1382
  %v3551 = vpop.f32.mrf.mxu0
  %v3552 = vadd.f32 %v532, %v3551
  %v3553 = vpop.f32.mrf.mxu0
  %3554 = vmatprep.mubr.f32.mxu0 0.0
  %3555 = vmatmul.mubr.f32.gmra.mxu0 %v1385
  %v3556 = vpop.f32.mrf.mxu0
  %v3557 = vadd.f32 %v532, %v3556
  %v3558 = vpop.f32.mrf.mxu0
  %3559 = vmatprep.mubr.f32.mxu0 0.0
  %3560 = vmatmul.mubr.f32.gmra.mxu0 %v1388
  %v3561 = vpop.f32.mrf.mxu0
  %v3562 = vadd.f32 %v532, %v3561
  %v3563 = vpop.f32.mrf.mxu0
  %3564 = vmatprep.mubr.f32.mxu0 0.0
  %3565 = vmatmul.mubr.f32.gmra.mxu0 %v1391
  %v3566 = vpop.f32.mrf.mxu0
  %v3567 = vadd.f32 %v532, %v3566
  %v3568 = vpop.f32.mrf.mxu0
  %3569 = vmatprep.mubr.f32.mxu0 0.0
  %3570 = vmatmul.mubr.f32.gmra.mxu0 %v1394
  %v3571 = vpop.f32.mrf.mxu0
  %v3572 = vadd.f32 %v532, %v3571
  %v3573 = vpop.f32.mrf.mxu0
  %3574 = vmatprep.mubr.f32.mxu0 0.0
  %3575 = vmatmul.mubr.f32.gmra.mxu0 %v1397
  %v3576 = vpop.f32.mrf.mxu0
  %v3577 = vadd.f32 %v532, %v3576
  %v3578 = vpop.f32.mrf.mxu0
  %3579 = vmatprep.mubr.f32.mxu0 0.0
  %3580 = vmatmul.mubr.f32.gmra.mxu0 %v1400
  %v3581 = vpop.f32.mrf.mxu0
  %v3582 = vadd.f32 %v532, %v3581
  %v3583 = vpop.f32.mrf.mxu0
  %3584 = vmatprep.mubr.f32.mxu0 0.0
  %3585 = vmatmul.mubr.f32.gmra.mxu0 %v1403
  %v3586 = vpop.f32.mrf.mxu0
  %v3587 = vadd.f32 %v532, %v3586
  %v3588 = vpop.f32.mrf.mxu0
  %3589 = vmatprep.mubr.f32.mxu0 0.0
  %3590 = vmatmul.mubr.f32.gmra.mxu0 %v1406
  %v3591 = vpop.f32.mrf.mxu0
  %v3592 = vadd.f32 %v532, %v3591
  %v3593 = vpop.f32.mrf.mxu0
  %3594 = vmatprep.mubr.f32.mxu0 0.0
  %3595 = vmatmul.mubr.f32.gmra.mxu0 %v1409
  %v3596 = vpop.f32.mrf.mxu0
  %v3597 = vadd.f32 %v532, %v3596
  %v3598 = vpop.f32.mrf.mxu0
  %3599 = vmatprep.mubr.f32.mxu0 0.0
  %3600 = vmatmul.mubr.f32.gmra.mxu0 %v1412
  %v3601 = vpop.f32.mrf.mxu0
  %v3602 = vadd.f32 %v532, %v3601
  %v3603 = vpop.f32.mrf.mxu0
  %3604 = vmatprep.mubr.f32.mxu0 0.0
  %3605 = vmatmul.mubr.f32.gmra.mxu0 %v1415
  %v3606 = vpop.f32.mrf.mxu0
  %v3607 = vadd.f32 %v532, %v3606
  %v3608 = vpop.f32.mrf.mxu0
  %3609 = vmatprep.mubr.f32.mxu0 0.0
  %3610 = vmatmul.mubr.f32.gmra.mxu0 %v1418
  %v3611 = vpop.f32.mrf.mxu0
  %v3612 = vadd.f32 %v532, %v3611
  %v3613 = vpop.f32.mrf.mxu0
  %3614 = vmatprep.mubr.f32.mxu0 0.0
  %3615 = vmatmul.mubr.f32.gmra.mxu0 %v1421
  %v3616 = vpop.f32.mrf.mxu0
  %v3617 = vadd.f32 %v532, %v3616
  %v3618 = vpop.f32.mrf.mxu0
  %3619 = vmatprep.mubr.f32.mxu0 0.0
  %3620 = vmatmul.mubr.f32.gmra.mxu0 %v1424
  %v3621 = vpop.f32.mrf.mxu0
  %v3622 = vadd.f32 %v532, %v3621
  %v3623 = vpop.f32.mrf.mxu0
  %3624 = vmatprep.mubr.f32.mxu0 0.0
  %3625 = vmatmul.mubr.f32.gmra.mxu0 %v1427
  %v3626 = vpop.f32.mrf.mxu0
  %v3627 = vadd.f32 %v532, %v3626
  %v3628 = vpop.f32.mrf.mxu0
  %3629 = vmatprep.mubr.f32.mxu0 0.0
  %3630 = vmatmul.mubr.f32.gmra.mxu0 %v1430
  %v3631 = vpop.f32.mrf.mxu0
  %v3632 = vadd.f32 %v532, %v3631
  %v3633 = vpop.f32.mrf.mxu0
  %3634 = vmatprep.mubr.f32.mxu0 0.0
  %3635 = vmatmul.mubr.f32.gmra.mxu0 %v1433
  %v3636 = vpop.f32.mrf.mxu0
  %v3637 = vadd.f32 %v532, %v3636
  %v3638 = vpop.f32.mrf.mxu0
  %3639 = vmatprep.mubr.f32.mxu0 0.0
  %3640 = vmatmul.mubr.f32.gmra.mxu0 %v1436
  %v3641 = vpop.f32.mrf.mxu0
  %v3642 = vadd.f32 %v532, %v3641
  %v3643 = vpop.f32.mrf.mxu0
  %3644 = vmatprep.mubr.f32.mxu0 0.0
  %3645 = vmatmul.mubr.f32.gmra.mxu0 %v1439
  %v3646 = vpop.f32.mrf.mxu0
  %v3647 = vadd.f32 %v532, %v3646
  %v3648 = vpop.f32.mrf.mxu0
  %3649 = vmatprep.mubr.f32.mxu0 0.0
  %3650 = vmatmul.mubr.f32.gmra.mxu0 %v1442
  %v3651 = vpop.f32.mrf.mxu0
  %v3652 = vadd.f32 %v532, %v3651
  %v3653 = vpop.f32.mrf.mxu0
  %3654 = vmatprep.mubr.f32.mxu0 0.0
  %3655 = vmatmul.mubr.f32.gmra.mxu0 %v1445
  %v3656 = vpop.f32.mrf.mxu0
  %v3657 = vadd.f32 %v532, %v3656
  %v3658 = vpop.f32.mrf.mxu0
  %3659 = vmatprep.mubr.f32.mxu0 0.0
  %3660 = vmatmul.mubr.f32.gmra.mxu0 %v1448
  %v3661 = vpop.f32.mrf.mxu0
  %v3662 = vadd.f32 %v532, %v3661
  %v3663 = vpop.f32.mrf.mxu0
  %3664 = vmatprep.mubr.f32.mxu0 0.0
  %3665 = vmatmul.mubr.f32.gmra.mxu0 %v1451
  %v3666 = vpop.f32.mrf.mxu0
  %v3667 = vadd.f32 %v532, %v3666
  %v3668 = vpop.f32.mrf.mxu0
  %3669 = vmatprep.mubr.f32.mxu0 0.0
  %3670 = vmatmul.mubr.f32.gmra.mxu0 %v1454
  %v3671 = vpop.f32.mrf.mxu0
  %v3672 = vadd.f32 %v532, %v3671
  %v3673 = vpop.f32.mrf.mxu0
  %3674 = vmatprep.mubr.f32.mxu0 0.0
  %3675 = vmatmul.mubr.f32.gmra.mxu0 %v1457
  %v3676 = vpop.f32.mrf.mxu0
  %v3677 = vadd.f32 %v532, %v3676
  %v3678 = vpop.f32.mrf.mxu0
  %3679 = vmatprep.mubr.f32.mxu0 0.0
  %3680 = vmatmul.mubr.f32.gmra.mxu0 %v1460
  %v3681 = vpop.f32.mrf.mxu0
  %v3682 = vadd.f32 %v532, %v3681
  %v3683 = vpop.f32.mrf.mxu0
  %3684 = vmatprep.mubr.f32.mxu0 0.0
  %3685 = vmatmul.mubr.f32.gmra.mxu0 %v1463
  %v3686 = vpop.f32.mrf.mxu0
  %v3687 = vadd.f32 %v532, %v3686
  %v3688 = vpop.f32.mrf.mxu0
  %3689 = vmatprep.mubr.f32.mxu0 0.0
  %3690 = vmatmul.mubr.f32.gmra.mxu0 %v1466
  %v3691 = vpop.f32.mrf.mxu0
  %v3692 = vadd.f32 %v532, %v3691
  %v3693 = vpop.f32.mrf.mxu0
  %3694 = vmatprep.mubr.f32.mxu0 0.0
  %3695 = vmatmul.mubr.f32.gmra.mxu0 %v1469
  %v3696 = vpop.f32.mrf.mxu0
  %v3697 = vadd.f32 %v532, %v3696
  %v3698 = vpop.f32.mrf.mxu0
  %3699 = vmatprep.mubr.f32.mxu0 0.0
  %3700 = vmatmul.mubr.f32.gmra.mxu0 %v1472
  %v3701 = vpop.f32.mrf.mxu0
  %v3702 = vadd.f32 %v532, %v3701
  %v3703 = vpop.f32.mrf.mxu0
  %3704 = vmatprep.mubr.f32.mxu0 0.0
  %3705 = vmatmul.mubr.f32.gmra.mxu0 %v1475
  %v3706 = vpop.f32.mrf.mxu0
  %v3707 = vadd.f32 %v532, %v3706
  %v3708 = vpop.f32.mrf.mxu0
  %3709 = vmatprep.mubr.f32.mxu0 0.0
  %3710 = vmatmul.mubr.f32.gmra.mxu0 %v1478
  %v3711 = vpop.f32.mrf.mxu0
  %v3712 = vadd.f32 %v532, %v3711
  %v3713 = vpop.f32.mrf.mxu0
  %3714 = vmatprep.mubr.f32.mxu0 0.0
  %3715 = vmatmul.mubr.f32.gmra.mxu0 %v1481
  %v3716 = vpop.f32.mrf.mxu0
  %v3717 = vadd.f32 %v532, %v3716
  %v3718 = vpop.f32.mrf.mxu0
  %3719 = vmatprep.mubr.f32.mxu0 0.0
  %3720 = vmatmul.mubr.f32.gmra.mxu0 %v1484
  %v3721 = vpop.f32.mrf.mxu0
  %v3722 = vadd.f32 %v532, %v3721
  %v3723 = vpop.f32.mrf.mxu0
  %3724 = vmatprep.mubr.f32.mxu0 0.0
  %3725 = vmatmul.mubr.f32.gmra.mxu0 %v1487
  %v3726 = vpop.f32.mrf.mxu0
  %v3727 = vadd.f32 %v532, %v3726
  %v3728 = vpop.f32.mrf.mxu0
  %3729 = vmatprep.mubr.f32.mxu0 0.0
  %3730 = vmatmul.mubr.f32.gmra.mxu0 %v1490
  %v3731 = vpop.f32.mrf.mxu0
  %v3732 = vadd.f32 %v532, %v3731
  %v3733 = vpop.f32.mrf.mxu0
  %3734 = vmatprep.mubr.f32.mxu0 0.0
  %3735 = vmatmul.mubr.f32.gmra.mxu0 %v1493
  %v3736 = vpop.f32.mrf.mxu0
  %v3737 = vadd.f32 %v532, %v3736
  %v3738 = vpop.f32.mrf.mxu0
  %3739 = vmatprep.mubr.f32.mxu0 0.0
  %3740 = vmatmul.mubr.f32.gmra.mxu0 %v1496
  %v3741 = vpop.f32.mrf.mxu0
  %v3742 = vadd.f32 %v532, %v3741
  %v3743 = vpop.f32.mrf.mxu0
  %3744 = vmatprep.mubr.f32.mxu0 0.0
  %3745 = vmatmul.mubr.f32.gmra.mxu0 %v1499
  %v3746 = vpop.f32.mrf.mxu0
  %v3747 = vadd.f32 %v532, %v3746
  %v3748 = vpop.f32.mrf.mxu0
  %3749 = vmatprep.mubr.f32.mxu0 0.0
  %3750 = vmatmul.mubr.f32.gmra.mxu0 %v1502
  %v3751 = vpop.f32.mrf.mxu0
  %v3752 = vadd.f32 %v532, %v3751
  %v3753 = vpop.f32.mrf.mxu0
  %3754 = vmatprep.mubr.f32.mxu0 0.0
  %3755 = vmatmul.mubr.f32.gmra.mxu0 %v1505
  %v3756 = vpop.f32.mrf.mxu0
  %v3757 = vadd.f32 %v532, %v3756
  %v3758 = vpop.f32.mrf.mxu0
  %3759 = vmatprep.mubr.f32.mxu0 0.0
  %3760 = vmatmul.mubr.f32.gmra.mxu0 %v1508
  %v3761 = vpop.f32.mrf.mxu0
  %v3762 = vadd.f32 %v532, %v3761
  %v3763 = vpop.f32.mrf.mxu0
  %3764 = vmatprep.mubr.f32.mxu0 0.0
  %3765 = vmatmul.mubr.f32.gmra.mxu0 %v1511
  %v3766 = vpop.f32.mrf.mxu0
  %v3767 = vadd.f32 %v532, %v3766
  %v3768 = vpop.f32.mrf.mxu0
  %3769 = vmatprep.mubr.f32.mxu0 0.0
  %3770 = vmatmul.mubr.f32.gmra.mxu0 %v1514
  %v3771 = vpop.f32.mrf.mxu0
  %v3772 = vadd.f32 %v532, %v3771
  %v3773 = vpop.f32.mrf.mxu0
  %3774 = vmatprep.mubr.f32.mxu0 0.0
  %3775 = vmatmul.mubr.f32.gmra.mxu0 %v1517
  %v3776 = vpop.f32.mrf.mxu0
  %v3777 = vadd.f32 %v532, %v3776
  %v3778 = vpop.f32.mrf.mxu0
  %3779 = vmatprep.mubr.f32.mxu0 0.0
  %3780 = vmatmul.mubr.f32.gmra.mxu0 %v1520
  %v3781 = vpop.f32.mrf.mxu0
  %v3782 = vadd.f32 %v532, %v3781
  %v3783 = vpop.f32.mrf.mxu0
  %3784 = vmatprep.mubr.f32.mxu0 0.0
  %3785 = vmatmul.mubr.f32.gmra.mxu0 %v1523
  %v3786 = vpop.f32.mrf.mxu0
  %v3787 = vadd.f32 %v532, %v3786
  %v3788 = vpop.f32.mrf.mxu0
  %3789 = vmatprep.mubr.f32.mxu0 0.0
  %3790 = vmatmul.mubr.f32.gmra.mxu0 %v1526
  %v3791 = vpop.f32.mrf.mxu0
  %v3792 = vadd.f32 %v532, %v3791
  %v3793 = vpop.f32.mrf.mxu0
  %3794 = vmatprep.mubr.f32.mxu0 0.0
  %3795 = vmatmul.mubr.f32.gmra.mxu0 %v1529
  %v3796 = vpop.f32.mrf.mxu0
  %v3797 = vadd.f32 %v532, %v3796
  %v3798 = vpop.f32.mrf.mxu0
  %3799 = vmatprep.mubr.f32.mxu0 0.0
  %3800 = vmatmul.mubr.f32.gmra.mxu0 %v1532
  %v3801 = vpop.f32.mrf.mxu0
  %v3802 = vadd.f32 %v532, %v3801
  %v3803 = vpop.f32.mrf.mxu0
  %3804 = vmatprep.mubr.f32.mxu0 0.0
  %3805 = vmatmul.mubr.f32.gmra.mxu0 %v1535
  %v3806 = vpop.f32.mrf.mxu0
  %v3807 = vadd.f32 %v532, %v3806
  %v3808 = vpop.f32.mrf.mxu0
  %3809 = vmatprep.mubr.f32.mxu0 0.0
  %3810 = vmatmul.mubr.f32.gmra.mxu0 %v1538
  %v3811 = vpop.f32.mrf.mxu0
  %v3812 = vadd.f32 %v532, %v3811
  %v3813 = vpop.f32.mrf.mxu0
  %3814 = vmatprep.mubr.f32.mxu0 0.0
  %3815 = vmatmul.mubr.f32.gmra.mxu0 %v1541
  %v3816 = vpop.f32.mrf.mxu0
  %v3817 = vadd.f32 %v532, %v3816
  %v3818 = vpop.f32.mrf.mxu0
  %3819 = vmatprep.mubr.f32.mxu0 0.0
  %3820 = vmatmul.mubr.f32.gmra.mxu0 %v1544
  %v3821 = vpop.f32.mrf.mxu0
  %v3822 = vadd.f32 %v532, %v3821
  %v3823 = vpop.f32.mrf.mxu0
  %3824 = vmatprep.mubr.f32.mxu0 0.0
  %3825 = vmatmul.mubr.f32.gmra.mxu0 %v1547
  %v3826 = vpop.f32.mrf.mxu0
  %v3827 = vadd.f32 %v532, %v3826
  %v3828 = vpop.f32.mrf.mxu0
  %3829 = vmatprep.mubr.f32.mxu0 0.0
  %3830 = vmatmul.mubr.f32.gmra.mxu0 %v1550
  %v3831 = vpop.f32.mrf.mxu0
  %v3832 = vadd.f32 %v532, %v3831
  %v3833 = vpop.f32.mrf.mxu0
  %3834 = vmatprep.mubr.f32.mxu0 0.0
  %3835 = vmatmul.mubr.f32.gmra.mxu0 %v1553
  %v3836 = vpop.f32.mrf.mxu0
  %v3837 = vadd.f32 %v532, %v3836
  %v3838 = vpop.f32.mrf.mxu0
  %3839 = vmatprep.mubr.f32.mxu0 0.0
  %3840 = vmatmul.mubr.f32.gmra.mxu0 %v1556
  %v3841 = vpop.f32.mrf.mxu0
  %v3842 = vadd.f32 %v532, %v3841
  %v3843 = vpop.f32.mrf.mxu0
  %3844 = vmatprep.mubr.f32.mxu0 0.0
  %3845 = vmatmul.mubr.f32.gmra.mxu0 %v1559
  %v3846 = vpop.f32.mrf.mxu0
  %v3847 = vadd.f32 %v532, %v3846
  %v3848 = vpop.f32.mrf.mxu0
  %3849 = vmatprep.mubr.f32.mxu0 0.0
  %3850 = vmatmul.mubr.f32.gmra.mxu0 %v1562
  %v3851 = vpop.f32.mrf.mxu0
  %v3852 = vadd.f32 %v532, %v3851
  %v3853 = vpop.f32.mrf.mxu0
  %3854 = vmatprep.mubr.f32.mxu0 0.0
  %3855 = vmatmul.mubr.f32.gmra.mxu0 %v1565
  %v3856 = vpop.f32.mrf.mxu0
  %v3857 = vadd.f32 %v532, %v3856
  %v3858 = vpop.f32.mrf.mxu0
  %3859 = vmatprep.mubr.f32.mxu0 0.0
  %3860 = vmatmul.mubr.f32.gmra.mxu0 %v1568
  %v3861 = vpop.f32.mrf.mxu0
  %v3862 = vadd.f32 %v532, %v3861
  %v3863 = vpop.f32.mrf.mxu0
  %3864 = vmatprep.mubr.f32.mxu0 0.0
  %3865 = vmatmul.mubr.f32.gmra.mxu0 %v1571
  %v3866 = vpop.f32.mrf.mxu0
  %v3867 = vadd.f32 %v532, %v3866
  %v3868 = vpop.f32.mrf.mxu0
  %3869 = vmatprep.mubr.f32.mxu0 0.0
  %3870 = vmatmul.mubr.f32.gmra.mxu0 %v1574
  %v3871 = vpop.f32.mrf.mxu0
  %v3872 = vadd.f32 %v532, %v3871
  %v3873 = vpop.f32.mrf.mxu0
  %3874 = vmatprep.mubr.f32.mxu0 0.0
  %3875 = vmatmul.mubr.f32.gmra.mxu0 %v1577
  %v3876 = vpop.f32.mrf.mxu0
  %v3877 = vadd.f32 %v532, %v3876
  %v3878 = vpop.f32.mrf.mxu0
  %3879 = vmatprep.mubr.f32.mxu0 0.0
  %3880 = vmatmul.mubr.f32.gmra.mxu0 %v1580
  %v3881 = vpop.f32.mrf.mxu0
  %v3882 = vadd.f32 %v532, %v3881
  %v3883 = vpop.f32.mrf.mxu0
  %3884 = vmatprep.mubr.f32.mxu0 0.0
  %3885 = vmatmul.mubr.f32.gmra.mxu0 %v1583
  %v3886 = vpop.f32.mrf.mxu0
  %v3887 = vadd.f32 %v532, %v3886
  %v3888 = vpop.f32.mrf.mxu0
  %3889 = vmatprep.mubr.f32.mxu0 0.0
  %3890 = vmatmul.mubr.f32.gmra.mxu0 %v1586
  %v3891 = vpop.f32.mrf.mxu0
  %v3892 = vadd.f32 %v532, %v3891
  %v3893 = vpop.f32.mrf.mxu0
  %3894 = vmatprep.mubr.f32.mxu0 0.0
  %3895 = vmatmul.mubr.f32.gmra.mxu0 %v1589
  %v3896 = vpop.f32.mrf.mxu0
  %v3897 = vadd.f32 %v532, %v3896
  %v3898 = vpop.f32.mrf.mxu0
  %3899 = vmatprep.mubr.f32.mxu0 0.0
  %3900 = vmatmul.mubr.f32.gmra.mxu0 %v1592
  %v3901 = vpop.f32.mrf.mxu0
  %v3902 = vadd.f32 %v532, %v3901
  %v3903 = vpop.f32.mrf.mxu0
  %3904 = vmatprep.mubr.f32.mxu0 0.0
  %3905 = vmatmul.mubr.f32.gmra.mxu0 %v1595
  %v3906 = vpop.f32.mrf.mxu0
  %v3907 = vadd.f32 %v532, %v3906
  %v3908 = vpop.f32.mrf.mxu0
  %3909 = vmatprep.mubr.f32.mxu0 0.0
  %3910 = vmatmul.mubr.f32.gmra.mxu0 %v1598
  %v3911 = vpop.f32.mrf.mxu0
  %v3912 = vadd.f32 %v532, %v3911
  %v3913 = vpop.f32.mrf.mxu0
  %3914 = vmatprep.mubr.f32.mxu0 0.0
  %3915 = vmatmul.mubr.f32.gmra.mxu0 %v1601
  %v3916 = vpop.f32.mrf.mxu0
  %v3917 = vadd.f32 %v532, %v3916
  %v3918 = vpop.f32.mrf.mxu0
  %3919 = vmatprep.mubr.f32.mxu0 0.0
  %3920 = vmatmul.mubr.f32.gmra.mxu0 %v1604
  %v3921 = vpop.f32.mrf.mxu0
  %v3922 = vadd.f32 %v532, %v3921
  %v3923 = vpop.f32.mrf.mxu0
  %3924 = vmatprep.mubr.f32.mxu0 0.0
  %3925 = vmatmul.mubr.f32.gmra.mxu0 %v1607
  %v3926 = vpop.f32.mrf.mxu0
  %v3927 = vadd.f32 %v532, %v3926
  %v3928 = vpop.f32.mrf.mxu0
  %3929 = vmatprep.mubr.f32.mxu0 0.0
  %3930 = vmatmul.mubr.f32.gmra.mxu0 %v1610
  %v3931 = vpop.f32.mrf.mxu0
  %v3932 = vadd.f32 %v532, %v3931
  %v3933 = vpop.f32.mrf.mxu0
  %3934 = vmatprep.mubr.f32.mxu0 0.0
  %3935 = vmatmul.mubr.f32.gmra.mxu0 %v1613
  %v3936 = vpop.f32.mrf.mxu0
  %v3937 = vadd.f32 %v532, %v3936
  %v3938 = vpop.f32.mrf.mxu0
  %3939 = vmatprep.mubr.f32.mxu0 0.0
  %3940 = vmatmul.mubr.f32.gmra.mxu0 %v1616
  %v3941 = vpop.f32.mrf.mxu0
  %v3942 = vadd.f32 %v532, %v3941
  %v3943 = vpop.f32.mrf.mxu0
  %3944 = vmatprep.mubr.f32.mxu0 0.0
  %3945 = vmatmul.mubr.f32.gmra.mxu0 %v1619
  %v3946 = vpop.f32.mrf.mxu0
  %v3947 = vadd.f32 %v532, %v3946
  %v3948 = vpop.f32.mrf.mxu0
  %3949 = vmatprep.mubr.f32.mxu0 0.0
  %3950 = vmatmul.mubr.f32.gmra.mxu0 %v1622
  %v3951 = vpop.f32.mrf.mxu0
  %v3952 = vadd.f32 %v532, %v3951
  %v3953 = vpop.f32.mrf.mxu0
  %3954 = vmatprep.mubr.f32.mxu0 0.0
  %3955 = vmatmul.mubr.f32.gmra.mxu0 %v1625
  %v3956 = vpop.f32.mrf.mxu0
  %v3957 = vadd.f32 %v532, %v3956
  %v3958 = vpop.f32.mrf.mxu0
  %3959 = vmatprep.mubr.f32.mxu0 0.0
  %3960 = vmatmul.mubr.f32.gmra.mxu0 %v1628
  %v3961 = vpop.f32.mrf.mxu0
  %v3962 = vadd.f32 %v532, %v3961
  %v3963 = vpop.f32.mrf.mxu0
  %3964 = vmatprep.mubr.f32.mxu0 0.0
  %3965 = vmatmul.mubr.f32.gmra.mxu0 %v1631
  %v3966 = vpop.f32.mrf.mxu0
  %v3967 = vadd.f32 %v532, %v3966
  %v3968 = vpop.f32.mrf.mxu0
  %3969 = vmatprep.mubr.f32.mxu0 0.0
  %3970 = vmatmul.mubr.f32.gmra.mxu0 %v1634
  %v3971 = vpop.f32.mrf.mxu0
  %v3972 = vadd.f32 %v532, %v3971
  %v3973 = vpop.f32.mrf.mxu0
  %3974 = vmatprep.mubr.f32.mxu0 0.0
  %3975 = vmatmul.mubr.f32.gmra.mxu0 %v1637
  %v3976 = vpop.f32.mrf.mxu0
  %v3977 = vadd.f32 %v532, %v3976
  %v3978 = vpop.f32.mrf.mxu0
  %3979 = vmatprep.mubr.f32.mxu0 0.0
  %3980 = vmatmul.mubr.f32.gmra.mxu0 %v1640
  %v3981 = vpop.f32.mrf.mxu0
  %v3982 = vadd.f32 %v532, %v3981
  %v3983 = vpop.f32.mrf.mxu0
  %3984 = vmatprep.mubr.f32.mxu0 0.0
  %3985 = vmatmul.mubr.f32.gmra.mxu0 %v1643
  %v3986 = vpop.f32.mrf.mxu0
  %v3987 = vadd.f32 %v532, %v3986
  %v3988 = vpop.f32.mrf.mxu0
  %3989 = vmatprep.mubr.f32.mxu0 0.0
  %3990 = vmatmul.mubr.f32.gmra.mxu0 %v1646
  %v3991 = vpop.f32.mrf.mxu0
  %v3992 = vadd.f32 %v532, %v3991
  %v3993 = vpop.f32.mrf.mxu0
  %3994 = vmatprep.mubr.f32.mxu0 0.0
  %3995 = vmatmul.mubr.f32.gmra.mxu0 %v1649
  %v3996 = vpop.f32.mrf.mxu0
  %v3997 = vadd.f32 %v532, %v3996
  %v3998 = vpop.f32.mrf.mxu0
  %3999 = vmatprep.mubr.f32.mxu0 0.0
  %4000 = vmatmul.mubr.f32.gmra.mxu0 %v1652
  %v4001 = vpop.f32.mrf.mxu0
  %v4002 = vadd.f32 %v532, %v4001
  %v4003 = vpop.f32.mrf.mxu0
  %4004 = vmatprep.mubr.f32.mxu0 0.0
  %4005 = vmatmul.mubr.f32.gmra.mxu0 %v1655
  %v4006 = vpop.f32.mrf.mxu0
  %v4007 = vadd.f32 %v532, %v4006
  %v4008 = vpop.f32.mrf.mxu0
  %4009 = vmatprep.mubr.f32.mxu0 0.0
  %4010 = vmatmul.mubr.f32.gmra.mxu0 %v1658
  %v4011 = vpop.f32.mrf.mxu0
  %v4012 = vadd.f32 %v532, %v4011
  %v4013 = vpop.f32.mrf.mxu0
  %4014 = vmatprep.mubr.f32.mxu0 0.0
  %4015 = vmatmul.mubr.f32.gmra.mxu0 %v1661
  %v4016 = vpop.f32.mrf.mxu0
  %v4017 = vadd.f32 %v532, %v4016
  %v4018 = vpop.f32.mrf.mxu0
  %4019 = vmatprep.mubr.f32.mxu0 0.0
  %4020 = vmatmul.mubr.f32.gmra.mxu0 %v1664
  %v4021 = vpop.f32.mrf.mxu0
  %v4022 = vadd.f32 %v532, %v4021
  %v4023 = vpop.f32.mrf.mxu0
  %4024 = vmatprep.mubr.f32.mxu0 0.0
  %4025 = vmatmul.mubr.f32.gmra.mxu0 %v1667
  %v4026 = vpop.f32.mrf.mxu0
  %v4027 = vadd.f32 %v532, %v4026
  %v4028 = vpop.f32.mrf.mxu0
  %4029 = vmatprep.mubr.f32.mxu0 0.0
  %4030 = vmatmul.mubr.f32.gmra.mxu0 %v1670
  %v4031 = vpop.f32.mrf.mxu0
  %v4032 = vadd.f32 %v532, %v4031
  %v4033 = vpop.f32.mrf.mxu0
  %4034 = vmatprep.mubr.f32.mxu0 0.0
  %4035 = vmatmul.mubr.f32.gmra.mxu0 %v1673
  %v4036 = vpop.f32.mrf.mxu0
  %v4037 = vadd.f32 %v532, %v4036
  %v4038 = vpop.f32.mrf.mxu0
  %4039 = vmatprep.mubr.f32.mxu0 0.0
  %4040 = vmatmul.mubr.f32.gmra.mxu0 %v1676
  %v4041 = vpop.f32.mrf.mxu0
  %v4042 = vadd.f32 %v532, %v4041
  %v4043 = vpop.f32.mrf.mxu0
  %4044 = vmatprep.mubr.f32.mxu0 0.0
  %4045 = vmatmul.mubr.f32.gmra.mxu0 %v1679
  %v4046 = vpop.f32.mrf.mxu0
  %v4047 = vadd.f32 %v532, %v4046
  %v4048 = vpop.f32.mrf.mxu0
  %4049 = vmatprep.mubr.f32.mxu0 0.0
  %4050 = vmatmul.mubr.f32.gmra.mxu0 %v1682
  %v4051 = vpop.f32.mrf.mxu0
  %v4052 = vadd.f32 %v532, %v4051
  %v4053 = vpop.f32.mrf.mxu0
  %4054 = vmatprep.mubr.f32.mxu0 0.0
  %4055 = vmatmul.mubr.f32.gmra.mxu0 %v1685
  %v4056 = vpop.f32.mrf.mxu0
  %v4057 = vadd.f32 %v532, %v4056
  %v4058 = vpop.f32.mrf.mxu0
  %4059 = vmatprep.mubr.f32.mxu0 0.0
  %4060 = vmatmul.mubr.f32.gmra.mxu0 %v1688
  %v4061 = vpop.f32.mrf.mxu0
  %v4062 = vadd.f32 %v532, %v4061
  %v4063 = vpop.f32.mrf.mxu0
  %4064 = vmatprep.mubr.f32.mxu0 0.0
  %4065 = vmatmul.mubr.f32.gmra.mxu0 %v1691
  %v4066 = vpop.f32.mrf.mxu0
  %v4067 = vadd.f32 %v532, %v4066
  %v4068 = vpop.f32.mrf.mxu0
  %4069 = vmatprep.mubr.f32.mxu0 0.0
  %4070 = vmatmul.mubr.f32.gmra.mxu0 %v1694
  %v4071 = vpop.f32.mrf.mxu0
  %v4072 = vadd.f32 %v532, %v4071
  %v4073 = vpop.f32.mrf.mxu0
  %4074 = vmatprep.mubr.f32.mxu0 0.0
  %4075 = vmatmul.mubr.f32.gmra.mxu0 %v1697
  %v4076 = vpop.f32.mrf.mxu0
  %v4077 = vadd.f32 %v532, %v4076
  %v4078 = vpop.f32.mrf.mxu0
  %4079 = vmatprep.mubr.f32.mxu0 0.0
  %4080 = vmatmul.mubr.f32.gmra.mxu0 %v1700
  %v4081 = vpop.f32.mrf.mxu0
  %v4082 = vadd.f32 %v532, %v4081
  %v4083 = vpop.f32.mrf.mxu0
  %4084 = vmatprep.mubr.f32.mxu0 0.0
  %4085 = vmatmul.mubr.f32.gmra.mxu0 %v1703
  %v4086 = vpop.f32.mrf.mxu0
  %v4087 = vadd.f32 %v532, %v4086
  %v4088 = vpop.f32.mrf.mxu0
  %4089 = vmatprep.mubr.f32.mxu0 0.0
  %4090 = vmatmul.mubr.f32.gmra.mxu0 %v1706
  %v4091 = vpop.f32.mrf.mxu0
  %v4092 = vadd.f32 %v532, %v4091
  %v4093 = vpop.f32.mrf.mxu0
  %4094 = vmatprep.mubr.f32.mxu0 0.0
  %4095 = vmatmul.mubr.f32.gmra.mxu0 %v1709
  %v4096 = vpop.f32.mrf.mxu0
  %v4097 = vadd.f32 %v532, %v4096
  %v4098 = vpop.f32.mrf.mxu0
  %4099 = vmatprep.mubr.f32.mxu0 0.0
  %4100 = vmatmul.mubr.f32.gmra.mxu0 %v1712
  %v4101 = vpop.f32.mrf.mxu0
  %v4102 = vadd.f32 %v532, %v4101
  %v4103 = vpop.f32.mrf.mxu0
  %4104 = vmatprep.mubr.f32.mxu0 0.0
  %4105 = vmatmul.mubr.f32.gmra.mxu0 %v1715
  %v4106 = vpop.f32.mrf.mxu0
  %v4107 = vadd.f32 %v532, %v4106
  %v4108 = vpop.f32.mrf.mxu0
  %4109 = vmatprep.mubr.f32.mxu0 0.0
  %4110 = vmatmul.mubr.f32.gmra.mxu0 %v1718
  %v4111 = vpop.f32.mrf.mxu0
  %v4112 = vadd.f32 %v532, %v4111
  %v4113 = vpop.f32.mrf.mxu0
  %4114 = vmatprep.mubr.f32.mxu0 0.0
  %4115 = vmatmul.mubr.f32.gmra.mxu0 %v1721
  %v4116 = vpop.f32.mrf.mxu0
  %v4117 = vadd.f32 %v532, %v4116
  %v4118 = vpop.f32.mrf.mxu0
  %4119 = vmatprep.mubr.f32.mxu0 0.0
  %4120 = vmatmul.mubr.f32.gmra.mxu0 %v1724
  %v4121 = vpop.f32.mrf.mxu0
  %v4122 = vadd.f32 %v532, %v4121
  %v4123 = vpop.f32.mrf.mxu0
  %4124 = vmatprep.mubr.f32.mxu0 0.0
  %4125 = vmatmul.mubr.f32.gmra.mxu0 %v1727
  %v4126 = vpop.f32.mrf.mxu0
  %v4127 = vadd.f32 %v532, %v4126
  %v4128 = vpop.f32.mrf.mxu0
  %4129 = vmatprep.mubr.f32.mxu0 0.0
  %4130 = vmatmul.mubr.f32.gmra.mxu0 %v1730
  %v4131 = vpop.f32.mrf.mxu0
  %v4132 = vadd.f32 %v532, %v4131
  %v4133 = vpop.f32.mrf.mxu0
  %4134 = vmatprep.mubr.f32.mxu0 0.0
  %4135 = vmatmul.mubr.f32.gmra.mxu0 %v1733
  %v4136 = vpop.f32.mrf.mxu0
  %v4137 = vadd.f32 %v532, %v4136
  %v4138 = vpop.f32.mrf.mxu0
  %4139 = vmatprep.mubr.f32.mxu0 0.0
  %4140 = vmatmul.mubr.f32.gmra.mxu0 %v1736
  %v4141 = vpop.f32.mrf.mxu0
  %v4142 = vadd.f32 %v532, %v4141
  %v4143 = vpop.f32.mrf.mxu0
  %4144 = vmatprep.mubr.f32.mxu0 0.0
  %4145 = vmatmul.mubr.f32.gmra.mxu0 %v1739
  %v4146 = vpop.f32.mrf.mxu0
  %v4147 = vadd.f32 %v532, %v4146
  %v4148 = vpop.f32.mrf.mxu0
  %4149 = vmatprep.mubr.f32.mxu0 0.0
  %4150 = vmatmul.mubr.f32.gmra.mxu0 %v1742
  %v4151 = vpop.f32.mrf.mxu0
  %v4152 = vadd.f32 %v532, %v4151
  %v4153 = vpop.f32.mrf.mxu0
  %4154 = vmatprep.mubr.f32.mxu0 0.0
  %4155 = vmatmul.mubr.f32.gmra.mxu0 %v1745
  %v4156 = vpop.f32.mrf.mxu0
  %v4157 = vadd.f32 %v532, %v4156
  %v4158 = vpop.f32.mrf.mxu0
  %4159 = vmatprep.mubr.f32.mxu0 0.0
  %4160 = vmatmul.mubr.f32.gmra.mxu0 %v1748
  %v4161 = vpop.f32.mrf.mxu0
  %v4162 = vadd.f32 %v532, %v4161
  %v4163 = vpop.f32.mrf.mxu0
  %4164 = vmatprep.mubr.f32.mxu0 0.0
  %4165 = vmatmul.mubr.f32.gmra.mxu0 %v1751
  %v4166 = vpop.f32.mrf.mxu0
  %v4167 = vadd.f32 %v532, %v4166
  %v4168 = vpop.f32.mrf.mxu0
  %4169 = vmatprep.mubr.f32.mxu0 0.0
  %4170 = vmatmul.mubr.f32.gmra.mxu0 %v1754
  %v4171 = vpop.f32.mrf.mxu0
  %v4172 = vadd.f32 %v532, %v4171
  %v4173 = vpop.f32.mrf.mxu0
  %4174 = vmatprep.mubr.f32.mxu0 0.0
  %4175 = vmatmul.mubr.f32.gmra.mxu0 %v1757
  %v4176 = vpop.f32.mrf.mxu0
  %v4177 = vadd.f32 %v532, %v4176
  %v4178 = vpop.f32.mrf.mxu0
  %4179 = vmatprep.mubr.f32.mxu0 0.0
  %4180 = vmatmul.mubr.f32.gmra.mxu0 %v1760
  %v4181 = vpop.f32.mrf.mxu0
  %v4182 = vadd.f32 %v532, %v4181
  %v4183 = vpop.f32.mrf.mxu0
  %4184 = vmatprep.mubr.f32.mxu0 0.0
  %4185 = vmatmul.mubr.f32.gmra.mxu0 %v1763
  %v4186 = vpop.f32.mrf.mxu0
  %v4187 = vadd.f32 %v532, %v4186
  %v4188 = vpop.f32.mrf.mxu0
  %4189 = vmatprep.mubr.f32.mxu0 0.0
  %4190 = vmatmul.mubr.f32.gmra.mxu0 %v1766
  %v4191 = vpop.f32.mrf.mxu0
  %v4192 = vadd.f32 %v532, %v4191
  %v4193 = vpop.f32.mrf.mxu0
  %4194 = vmatprep.mubr.f32.mxu0 0.0
  %4195 = vmatmul.mubr.f32.gmra.mxu0 %v1769
  %v4196 = vpop.f32.mrf.mxu0
  %v4197 = vadd.f32 %v532, %v4196
  %v4198 = vpop.f32.mrf.mxu0
  %4199 = vmatprep.mubr.f32.mxu0 0.0
  %4200 = vmatmul.mubr.f32.gmra.mxu0 %v1772
  %v4201 = vpop.f32.mrf.mxu0
  %v4202 = vadd.f32 %v532, %v4201
  %v4203 = vpop.f32.mrf.mxu0
  %4204 = vmatprep.mubr.f32.mxu0 0.0
  %4205 = vmatmul.mubr.f32.gmra.mxu0 %v1775
  %v4206 = vpop.f32.mrf.mxu0
  %v4207 = vadd.f32 %v532, %v4206
  %v4208 = vpop.f32.mrf.mxu0
  %4209 = vmatprep.mubr.f32.mxu0 0.0
  %4210 = vmatmul.mubr.f32.gmra.mxu0 %v1778
  %v4211 = vpop.f32.mrf.mxu0
  %v4212 = vadd.f32 %v532, %v4211
  %v4213 = vpop.f32.mrf.mxu0
  %4214 = vmatprep.mubr.f32.mxu0 0.0
  %4215 = vmatmul.mubr.f32.gmra.mxu0 %v1781
  %v4216 = vpop.f32.mrf.mxu0
  %v4217 = vadd.f32 %v532, %v4216
  %v4218 = vpop.f32.mrf.mxu0
  %4219 = vmatprep.mubr.f32.mxu0 0.0
  %4220 = vmatmul.mubr.f32.gmra.mxu0 %v1784
  %v4221 = vpop.f32.mrf.mxu0
  %v4222 = vadd.f32 %v532, %v4221
  %v4223 = vpop.f32.mrf.mxu0
  %4224 = vmatprep.mubr.f32.mxu0 0.0
  %4225 = vmatmul.mubr.f32.gmra.mxu0 %v1787
  %v4226 = vpop.f32.mrf.mxu0
  %v4227 = vadd.f32 %v532, %v4226
  %v4228 = vpop.f32.mrf.mxu0
  %4229 = vmatprep.mubr.f32.mxu0 0.0
  %4230 = vmatmul.mubr.f32.gmra.mxu0 %v1790
  %v4231 = vpop.f32.mrf.mxu0
  %v4232 = vadd.f32 %v532, %v4231
  %v4233 = vpop.f32.mrf.mxu0
  %4234 = vmatprep.mubr.f32.mxu0 0.0
  %4235 = vmatmul.mubr.f32.gmra.mxu0 %v1793
  %v4236 = vpop.f32.mrf.mxu0
  %v4237 = vadd.f32 %v532, %v4236
  %v4238 = vpop.f32.mrf.mxu0
  %4239 = vmatprep.mubr.f32.mxu0 0.0
  %4240 = vmatmul.mubr.f32.gmra.mxu0 %v1796
  %v4241 = vpop.f32.mrf.mxu0
  %v4242 = vadd.f32 %v532, %v4241
  %v4243 = vpop.f32.mrf.mxu0
  %4244 = vmatprep.mubr.f32.mxu0 0.0
  %4245 = vmatmul.mubr.f32.gmra.mxu0 %v1799
  %v4246 = vpop.f32.mrf.mxu0
  %v4247 = vadd.f32 %v532, %v4246
  %v4248 = vpop.f32.mrf.mxu0
  %4249 = vmatprep.mubr.f32.mxu0 0.0
  %4250 = vmatmul.mubr.f32.gmra.mxu0 %v1802
  %v4251 = vpop.f32.mrf.mxu0
  %v4252 = vadd.f32 %v532, %v4251
  %v4253 = vpop.f32.mrf.mxu0
  %4254 = vmatprep.mubr.f32.mxu0 0.0
  %4255 = vmatmul.mubr.f32.gmra.mxu0 %v1805
  %v4256 = vpop.f32.mrf.mxu0
  %v4257 = vadd.f32 %v532, %v4256
  %v4258 = vpop.f32.mrf.mxu0
  %4259 = vmatprep.mubr.f32.mxu0 0.0
  %4260 = vmatmul.mubr.f32.gmra.mxu0 %v1808
  %v4261 = vpop.f32.mrf.mxu0
  %v4262 = vadd.f32 %v532, %v4261
  %v4263 = vpop.f32.mrf.mxu0
  %4264 = vmatprep.mubr.f32.mxu0 0.0
  %4265 = vmatmul.mubr.f32.gmra.mxu0 %v1811
  %v4266 = vpop.f32.mrf.mxu0
  %v4267 = vadd.f32 %v532, %v4266
  %v4268 = vpop.f32.mrf.mxu0
  %4269 = vmatprep.mubr.f32.mxu0 0.0
  %4270 = vmatmul.mubr.f32.gmra.mxu0 %v1814
  %v4271 = vpop.f32.mrf.mxu0
  %v4272 = vadd.f32 %v532, %v4271
  %v4273 = vpop.f32.mrf.mxu0
  %4274 = vmatprep.mubr.f32.mxu0 0.0
  %4275 = vmatmul.mubr.f32.gmra.mxu0 %v1817
  %v4276 = vpop.f32.mrf.mxu0
  %v4277 = vadd.f32 %v532, %v4276
  %v4278 = vpop.f32.mrf.mxu0
  %4279 = vmatprep.mubr.f32.mxu0 0.0
  %4280 = vmatmul.mubr.f32.gmra.mxu0 %v1820
  %v4281 = vpop.f32.mrf.mxu0
  %v4282 = vadd.f32 %v532, %v4281
  %v4283 = vpop.f32.mrf.mxu0
  %4284 = vmatprep.mubr.f32.mxu0 0.0
  %4285 = vmatmul.mubr.f32.gmra.mxu0 %v1823
  %v4286 = vpop.f32.mrf.mxu0
  %v4287 = vadd.f32 %v532, %v4286
  %v4288 = vpop.f32.mrf.mxu0
  %4289 = vmatprep.mubr.f32.mxu0 0.0
  %4290 = vmatmul.mubr.f32.gmra.mxu0 %v1826
  %v4291 = vpop.f32.mrf.mxu0
  %v4292 = vadd.f32 %v532, %v4291
  %v4293 = vpop.f32.mrf.mxu0
  %4294 = vmatprep.mubr.f32.mxu0 0.0
  %4295 = vmatmul.mubr.f32.gmra.mxu0 %v1829
  %v4296 = vpop.f32.mrf.mxu0
  %v4297 = vadd.f32 %v532, %v4296
  %v4298 = vpop.f32.mrf.mxu0
  %4299 = vmatprep.mubr.f32.mxu0 0.0
  %4300 = vmatmul.mubr.f32.gmra.mxu0 %v1832
  %v4301 = vpop.f32.mrf.mxu0
  %v4302 = vadd.f32 %v532, %v4301
  %v4303 = vpop.f32.mrf.mxu0
  %4304 = vmatprep.mubr.f32.mxu0 0.0
  %4305 = vmatmul.mubr.f32.gmra.mxu0 %v1835
  %v4306 = vpop.f32.mrf.mxu0
  %v4307 = vadd.f32 %v532, %v4306
  %v4308 = vpop.f32.mrf.mxu0
  %4309 = vmatprep.mubr.f32.mxu0 0.0
  %4310 = vmatmul.mubr.f32.gmra.mxu0 %v1838
  %v4311 = vpop.f32.mrf.mxu0
  %v4312 = vadd.f32 %v532, %v4311
  %v4313 = vpop.f32.mrf.mxu0
  %4314 = vmatprep.mubr.f32.mxu0 0.0
  %4315 = vmatmul.mubr.f32.gmra.mxu0 %v1841
  %v4316 = vpop.f32.mrf.mxu0
  %v4317 = vadd.f32 %v532, %v4316
  %v4318 = vpop.f32.mrf.mxu0
  %4319 = vmatprep.mubr.f32.mxu0 0.0
  %4320 = vmatmul.mubr.f32.gmra.mxu0 %v1844
  %v4321 = vpop.f32.mrf.mxu0
  %v4322 = vadd.f32 %v532, %v4321
  %v4323 = vpop.f32.mrf.mxu0
  %4324 = vmatprep.mubr.f32.mxu0 0.0
  %4325 = vmatmul.mubr.f32.gmra.mxu0 %v1847
  %v4326 = vpop.f32.mrf.mxu0
  %v4327 = vadd.f32 %v532, %v4326
  %v4328 = vpop.f32.mrf.mxu0
  %4329 = vmatprep.mubr.f32.mxu0 0.0
  %4330 = vmatmul.mubr.f32.gmra.mxu0 %v1850
  %v4331 = vpop.f32.mrf.mxu0
  %v4332 = vadd.f32 %v532, %v4331
  %v4333 = vpop.f32.mrf.mxu0
  %4334 = vmatprep.mubr.f32.mxu0 0.0
  %4335 = vmatmul.mubr.f32.gmra.mxu0 %v1853
  %v4336 = vpop.f32.mrf.mxu0
  %v4337 = vadd.f32 %v532, %v4336
  %v4338 = vpop.f32.mrf.mxu0
  %4339 = vmatprep.mubr.f32.mxu0 0.0
  %4340 = vmatmul.mubr.f32.gmra.mxu0 %v1856
  %v4341 = vpop.f32.mrf.mxu0
  %v4342 = vadd.f32 %v532, %v4341
  %v4343 = vpop.f32.mrf.mxu0
  %4344 = vmatprep.mubr.f32.mxu0 0.0
  %4345 = vmatmul.mubr.f32.gmra.mxu0 %v1859
  %v4346 = vpop.f32.mrf.mxu0
  %v4347 = vadd.f32 %v532, %v4346
  %v4348 = vpop.f32.mrf.mxu0
  %4349 = vmatprep.mubr.f32.mxu0 0.0
  %4350 = vmatmul.mubr.f32.gmra.mxu0 %v1862
  %v4351 = vpop.f32.mrf.mxu0
  %v4352 = vadd.f32 %v532, %v4351
  %v4353 = vpop.f32.mrf.mxu0
  %4354 = vmatprep.mubr.f32.mxu0 0.0
  %4355 = vmatmul.mubr.f32.gmra.mxu0 %v1865
  %v4356 = vpop.f32.mrf.mxu0
  %v4357 = vadd.f32 %v532, %v4356
  %v4358 = vpop.f32.mrf.mxu0
  %4359 = vmatprep.mubr.f32.mxu0 0.0
  %4360 = vmatmul.mubr.f32.gmra.mxu0 %v1868
  %v4361 = vpop.f32.mrf.mxu0
  %v4362 = vadd.f32 %v532, %v4361
  %v4363 = vpop.f32.mrf.mxu0
  %4364 = vmatprep.mubr.f32.mxu0 0.0
  %4365 = vmatmul.mubr.f32.gmra.mxu0 %v1871
  %v4366 = vpop.f32.mrf.mxu0
  %v4367 = vadd.f32 %v532, %v4366
  %v4368 = vpop.f32.mrf.mxu0
  %4369 = vmatprep.mubr.f32.mxu0 0.0
  %4370 = vmatmul.mubr.f32.gmra.mxu0 %v1874
  %v4371 = vpop.f32.mrf.mxu0
  %v4372 = vadd.f32 %v532, %v4371
  %v4373 = vpop.f32.mrf.mxu0
  %4374 = vmatprep.mubr.f32.mxu0 0.0
  %4375 = vmatmul.mubr.f32.gmra.mxu0 %v1877
  %v4376 = vpop.f32.mrf.mxu0
  %v4377 = vadd.f32 %v532, %v4376
  %v4378 = vpop.f32.mrf.mxu0
  %4379 = vmatprep.mubr.f32.mxu0 0.0
  %4380 = vmatmul.mubr.f32.gmra.mxu0 %v1880
  %v4381 = vpop.f32.mrf.mxu0
  %v4382 = vadd.f32 %v532, %v4381
  %v4383 = vpop.f32.mrf.mxu0
  %4384 = vmatprep.mubr.f32.mxu0 0.0
  %4385 = vmatmul.mubr.f32.gmra.mxu0 %v1883
  %v4386 = vpop.f32.mrf.mxu0
  %v4387 = vadd.f32 %v532, %v4386
  %v4388 = vpop.f32.mrf.mxu0
  %4389 = vmatprep.mubr.f32.mxu0 0.0
  %4390 = vmatmul.mubr.f32.gmra.mxu0 %v1886
  %v4391 = vpop.f32.mrf.mxu0
  %v4392 = vadd.f32 %v532, %v4391
  %v4393 = vpop.f32.mrf.mxu0
  %4394 = vmatprep.mubr.f32.mxu0 0.0
  %4395 = vmatmul.mubr.f32.gmra.mxu0 %v1889
  %v4396 = vpop.f32.mrf.mxu0
  %v4397 = vadd.f32 %v532, %v4396
  %v4398 = vpop.f32.mrf.mxu0
  %4399 = vmatprep.mubr.f32.mxu0 0.0
  %4400 = vmatmul.mubr.f32.gmra.mxu0 %v1892
  %v4401 = vpop.f32.mrf.mxu0
  %v4402 = vadd.f32 %v532, %v4401
  %v4403 = vpop.f32.mrf.mxu0
  %4404 = vmatprep.mubr.f32.mxu0 0.0
  %4405 = vmatmul.mubr.f32.gmra.mxu0 %v1895
  %v4406 = vpop.f32.mrf.mxu0
  %v4407 = vadd.f32 %v532, %v4406
  %v4408 = vpop.f32.mrf.mxu0
  %4409 = vmatprep.mubr.f32.mxu0 0.0
  %4410 = vmatmul.mubr.f32.gmra.mxu0 %v1898
  %v4411 = vpop.f32.mrf.mxu0
  %v4412 = vadd.f32 %v532, %v4411
  %v4413 = vpop.f32.mrf.mxu0
  %4414 = vmatprep.mubr.f32.mxu0 0.0
  %4415 = vmatmul.mubr.f32.gmra.mxu0 %v1901
  %v4416 = vpop.f32.mrf.mxu0
  %v4417 = vadd.f32 %v532, %v4416
  %v4418 = vpop.f32.mrf.mxu0
  %4419 = vmatprep.mubr.f32.mxu0 0.0
  %4420 = vmatmul.mubr.f32.gmra.mxu0 %v1904
  %v4421 = vpop.f32.mrf.mxu0
  %v4422 = vadd.f32 %v532, %v4421
  %v4423 = vpop.f32.mrf.mxu0
  %4424 = vmatprep.mubr.f32.mxu0 0.0
  %4425 = vmatmul.mubr.f32.gmra.mxu0 %v1907
  %v4426 = vpop.f32.mrf.mxu0
  %v4427 = vadd.f32 %v532, %v4426
  %v4428 = vpop.f32.mrf.mxu0
  %4429 = vmatprep.mubr.f32.mxu0 0.0
  %4430 = vmatmul.mubr.f32.gmra.mxu0 %v1910
  %v4431 = vpop.f32.mrf.mxu0
  %v4432 = vadd.f32 %v532, %v4431
  %v4433 = vpop.f32.mrf.mxu0
  %4434 = vmatprep.mubr.f32.mxu0 0.0
  %4435 = vmatmul.mubr.f32.gmra.mxu0 %v1913
  %v4436 = vpop.f32.mrf.mxu0
  %v4437 = vadd.f32 %v532, %v4436
  %v4438 = vpop.f32.mrf.mxu0
  %4439 = vmatprep.mubr.f32.mxu0 0.0
  %4440 = vmatmul.mubr.f32.gmra.mxu0 %v1916
  %v4441 = vpop.f32.mrf.mxu0
  %v4442 = vadd.f32 %v532, %v4441
  %v4443 = vpop.f32.mrf.mxu0
  %4444 = vmatprep.mubr.f32.mxu0 0.0
  %4445 = vmatmul.mubr.f32.gmra.mxu0 %v1919
  %v4446 = vpop.f32.mrf.mxu0
  %v4447 = vadd.f32 %v532, %v4446
  %v4448 = vpop.f32.mrf.mxu0
  %4449 = vmatprep.mubr.f32.mxu0 0.0
  %4450 = vmatmul.mubr.f32.gmra.mxu0 %v1922
  %v4451 = vpop.f32.mrf.mxu0
  %v4452 = vadd.f32 %v532, %v4451
  %v4453 = vpop.f32.mrf.mxu0
  %4454 = vmatprep.mubr.f32.mxu0 0.0
  %4455 = vmatmul.mubr.f32.gmra.mxu0 %v1925
  %v4456 = vpop.f32.mrf.mxu0
  %v4457 = vadd.f32 %v532, %v4456
  %v4458 = vpop.f32.mrf.mxu0
  %4459 = vmatprep.mubr.f32.mxu0 0.0
  %4460 = vmatmul.mubr.f32.gmra.mxu0 %v1928
  %v4461 = vpop.f32.mrf.mxu0
  %v4462 = vadd.f32 %v532, %v4461
  %v4463 = vpop.f32.mrf.mxu0
  %4464 = vmatprep.mubr.f32.mxu0 0.0
  %4465 = vmatmul.mubr.f32.gmra.mxu0 %v1931
  %v4466 = vpop.f32.mrf.mxu0
  %v4467 = vadd.f32 %v532, %v4466
  %v4468 = vpop.f32.mrf.mxu0
  %4469 = vmatprep.mubr.f32.mxu0 0.0
  %4470 = vmatmul.mubr.f32.gmra.mxu0 %v1934
  %v4471 = vpop.f32.mrf.mxu0
  %v4472 = vadd.f32 %v532, %v4471
  %v4473 = vpop.f32.mrf.mxu0
  %4474 = vmatprep.mubr.f32.mxu0 0.0
  %4475 = vmatmul.mubr.f32.gmra.mxu0 %v1937
  %v4476 = vpop.f32.mrf.mxu0
  %v4477 = vadd.f32 %v532, %v4476
  %v4478 = vpop.f32.mrf.mxu0
  %4479 = vmatprep.mubr.f32.mxu0 0.0
  %4480 = vmatmul.mubr.f32.gmra.mxu0 %v1940
  %v4481 = vpop.f32.mrf.mxu0
  %v4482 = vadd.f32 %v532, %v4481
  %v4483 = vpop.f32.mrf.mxu0
  %4484 = vmatprep.mubr.f32.mxu0 0.0
  %4485 = vmatmul.mubr.f32.gmra.mxu0 %v1943
  %v4486 = vpop.f32.mrf.mxu0
  %v4487 = vadd.f32 %v532, %v4486
  %v4488 = vpop.f32.mrf.mxu0
  %4489 = vmatprep.mubr.f32.mxu0 0.0
  %4490 = vmatmul.mubr.f32.gmra.mxu0 %v1946
  %v4491 = vpop.f32.mrf.mxu0
  %v4492 = vadd.f32 %v532, %v4491
  %v4493 = vpop.f32.mrf.mxu0
  %4494 = vmatprep.mubr.f32.mxu0 0.0
  %4495 = vmatmul.mubr.f32.gmra.mxu0 %v1949
  %v4496 = vpop.f32.mrf.mxu0
  %v4497 = vadd.f32 %v532, %v4496
  %v4498 = vpop.f32.mrf.mxu0
  %4499 = vmatprep.mubr.f32.mxu0 0.0
  %4500 = vmatmul.mubr.f32.gmra.mxu0 %v1952
  %v4501 = vpop.f32.mrf.mxu0
  %v4502 = vadd.f32 %v532, %v4501
  %v4503 = vpop.f32.mrf.mxu0
  %4504 = vmatprep.mubr.f32.mxu0 0.0
  %4505 = vmatmul.mubr.f32.gmra.mxu0 %v1955
  %v4506 = vpop.f32.mrf.mxu0
  %v4507 = vadd.f32 %v532, %v4506
  %v4508 = vpop.f32.mrf.mxu0
  %4509 = vmatprep.mubr.f32.mxu0 0.0
  %4510 = vmatmul.mubr.f32.gmra.mxu0 %v1958
  %v4511 = vpop.f32.mrf.mxu0
  %v4512 = vadd.f32 %v532, %v4511
  %v4513 = vpop.f32.mrf.mxu0
  %4514 = vmatprep.mubr.f32.mxu0 0.0
  %4515 = vmatmul.mubr.f32.gmra.mxu0 %v1961
  %v4516 = vpop.f32.mrf.mxu0
  %v4517 = vadd.f32 %v532, %v4516
  %v4518 = vpop.f32.mrf.mxu0
  %4519 = vmatprep.mubr.f32.mxu0 0.0
  %4520 = vmatmul.mubr.f32.gmra.mxu0 %v1964
  %v4521 = vpop.f32.mrf.mxu0
  %v4522 = vadd.f32 %v532, %v4521
  %v4523 = vpop.f32.mrf.mxu0
  %4524 = vmatprep.mubr.f32.mxu0 0.0
  %4525 = vmatmul.mubr.f32.gmra.mxu0 %v1967
  %v4526 = vpop.f32.mrf.mxu0
  %v4527 = vadd.f32 %v532, %v4526
  %v4528 = vpop.f32.mrf.mxu0
  %4529 = vmatprep.mubr.f32.mxu0 0.0
  %4530 = vmatmul.mubr.f32.gmra.mxu0 %v1970
  %v4531 = vpop.f32.mrf.mxu0
  %v4532 = vadd.f32 %v532, %v4531
  %v4533 = vpop.f32.mrf.mxu0
  %4534 = vmatprep.mubr.f32.mxu0 0.0
  %4535 = vmatmul.mubr.f32.gmra.mxu0 %v1973
  %v4536 = vpop.f32.mrf.mxu0
  %v4537 = vadd.f32 %v532, %v4536
  %v4538 = vpop.f32.mrf.mxu0
  %4539 = vmatprep.mubr.f32.mxu0 0.0
  %4540 = vmatmul.mubr.f32.gmra.mxu0 %v1976
  %v4541 = vpop.f32.mrf.mxu0
  %v4542 = vadd.f32 %v532, %v4541
  %v4543 = vpop.f32.mrf.mxu0
  %4544 = vmatprep.mubr.f32.mxu0 0.0
  %4545 = vmatmul.mubr.f32.gmra.mxu0 %v1979
  %v4546 = vpop.f32.mrf.mxu0
  %v4547 = vadd.f32 %v532, %v4546
  %v4548 = vpop.f32.mrf.mxu0
  %4549 = vmatprep.mubr.f32.mxu0 0.0
  %4550 = vmatmul.mubr.f32.gmra.mxu0 %v1982
  %v4551 = vpop.f32.mrf.mxu0
  %v4552 = vadd.f32 %v532, %v4551
  %v4553 = vpop.f32.mrf.mxu0
  %4554 = vmatprep.mubr.f32.mxu0 0.0
  %4555 = vmatmul.mubr.f32.gmra.mxu0 %v1985
  %v4556 = vpop.f32.mrf.mxu0
  %v4557 = vadd.f32 %v532, %v4556
  %v4558 = vpop.f32.mrf.mxu0
  %4559 = vmatprep.mubr.f32.mxu0 0.0
  %4560 = vmatmul.mubr.f32.gmra.mxu0 %v1988
  %v4561 = vpop.f32.mrf.mxu0
  %v4562 = vadd.f32 %v532, %v4561
  %v4563 = vpop.f32.mrf.mxu0
  %4564 = vmatprep.mubr.f32.mxu0 0.0
  %4565 = vmatmul.mubr.f32.gmra.mxu0 %v1991
  %v4566 = vpop.f32.mrf.mxu0
  %v4567 = vadd.f32 %v532, %v4566
  %v4568 = vpop.f32.mrf.mxu0
  %4569 = vmatprep.mubr.f32.mxu0 0.0
  %4570 = vmatmul.mubr.f32.gmra.mxu0 %v1994
  %v4571 = vpop.f32.mrf.mxu0
  %v4572 = vadd.f32 %v532, %v4571
  %v4573 = vpop.f32.mrf.mxu0
  %4574 = vmatprep.mubr.f32.mxu0 0.0
  %4575 = vmatmul.mubr.f32.gmra.mxu0 %v1997
  %v4576 = vpop.f32.mrf.mxu0
  %v4577 = vadd.f32 %v532, %v4576
  %v4578 = vpop.f32.mrf.mxu0
  %4579 = vmatprep.mubr.f32.mxu0 0.0
  %4580 = vmatmul.mubr.f32.gmra.mxu0 %v2000
  %v4581 = vpop.f32.mrf.mxu0
  %v4582 = vadd.f32 %v532, %v4581
  %v4583 = vpop.f32.mrf.mxu0
  %4584 = vmatprep.mubr.f32.mxu0 0.0
  %4585 = vmatmul.mubr.f32.gmra.mxu0 %v2003
  %v4586 = vpop.f32.mrf.mxu0
  %v4587 = vadd.f32 %v532, %v4586
  %v4588 = vpop.f32.mrf.mxu0
  %4589 = vmatprep.mubr.f32.mxu0 0.0
  %4590 = vmatmul.mubr.f32.gmra.mxu0 %v2006
  %v4591 = vpop.f32.mrf.mxu0
  %v4592 = vadd.f32 %v532, %v4591
  %v4593 = vpop.f32.mrf.mxu0
  %4594 = vmatprep.mubr.f32.mxu0 0.0
  %4595 = vmatmul.mubr.f32.gmra.mxu0 %v2009
  %v4596 = vpop.f32.mrf.mxu0
  %v4597 = vadd.f32 %v532, %v4596
  %v4598 = vpop.f32.mrf.mxu0
  %4599 = vmatprep.mubr.f32.mxu0 0.0
  %4600 = vmatmul.mubr.f32.gmra.mxu0 %v2012
  %v4601 = vpop.f32.mrf.mxu0
  %v4602 = vadd.f32 %v532, %v4601
  %v4603 = vpop.f32.mrf.mxu0
  %4604 = vmatprep.mubr.f32.mxu0 0.0
  %4605 = vmatmul.mubr.f32.gmra.mxu0 %v2015
  %v4606 = vpop.f32.mrf.mxu0
  %v4607 = vadd.f32 %v532, %v4606
  %v4608 = vpop.f32.mrf.mxu0
  %4609 = vmatprep.mubr.f32.mxu0 0.0
  %4610 = vmatmul.mubr.f32.gmra.mxu0 %v2018
  %v4611 = vpop.f32.mrf.mxu0
  %v4612 = vadd.f32 %v532, %v4611
  %v4613 = vpop.f32.mrf.mxu0
  %4614 = vmatprep.mubr.f32.mxu0 0.0
  %4615 = vmatmul.mubr.f32.gmra.mxu0 %v2021
  %v4616 = vpop.f32.mrf.mxu0
  %v4617 = vadd.f32 %v532, %v4616
  %v4618 = vpop.f32.mrf.mxu0
  %4619 = vmatprep.mubr.f32.mxu0 0.0
  %4620 = vmatmul.mubr.f32.gmra.mxu0 %v2024
  %v4621 = vpop.f32.mrf.mxu0
  %v4622 = vadd.f32 %v532, %v4621
  %v4623 = vpop.f32.mrf.mxu0
  %4624 = vmatprep.mubr.f32.mxu0 0.0
  %4625 = vmatmul.mubr.f32.gmra.mxu0 %v2027
  %v4626 = vpop.f32.mrf.mxu0
  %v4627 = vadd.f32 %v532, %v4626
  %v4628 = vpop.f32.mrf.mxu0
  %4629 = vmatprep.mubr.f32.mxu0 0.0
  %4630 = vmatmul.mubr.f32.gmra.mxu0 %v2030
  %v4631 = vpop.f32.mrf.mxu0
  %v4632 = vadd.f32 %v532, %v4631
  %v4633 = vpop.f32.mrf.mxu0
  %4634 = vmatprep.mubr.f32.mxu0 0.0
  %4635 = vmatmul.mubr.f32.gmra.mxu0 %v2033
  %v4636 = vpop.f32.mrf.mxu0
  %v4637 = vadd.f32 %v532, %v4636
  %v4638 = vpop.f32.mrf.mxu0
  %4639 = vmatprep.mubr.f32.mxu0 0.0
  %4640 = vmatmul.mubr.f32.gmra.mxu0 %v2036
  %v4641 = vpop.f32.mrf.mxu0
  %v4642 = vadd.f32 %v532, %v4641
  %v4643 = vpop.f32.mrf.mxu0
  %4644 = vmatprep.mubr.f32.mxu0 0.0
  %4645 = vmatmul.mubr.f32.gmra.mxu0 %v2039
  %v4646 = vpop.f32.mrf.mxu0
  %v4647 = vadd.f32 %v532, %v4646
  %v4648 = vpop.f32.mrf.mxu0
  %4649 = vmatprep.mubr.f32.mxu0 0.0
  %4650 = vmatmul.mubr.f32.gmra.mxu0 %v2042
  %v4651 = vpop.f32.mrf.mxu0
  %v4652 = vadd.f32 %v532, %v4651
  %v4653 = vpop.f32.mrf.mxu0
  %4654 = vmatprep.mubr.f32.mxu0 0.0
  %4655 = vmatmul.mubr.f32.gmra.mxu0 %v2045
  %v4656 = vpop.f32.mrf.mxu0
  %v4657 = vadd.f32 %v532, %v4656
  %v4658 = vpop.f32.mrf.mxu0
  %4659 = vmatprep.mubr.f32.mxu0 0.0
  %4660 = vmatmul.mubr.f32.gmra.mxu0 %v2048
  %v4661 = vpop.f32.mrf.mxu0
  %v4662 = vadd.f32 %v532, %v4661
  %v4663 = vpop.f32.mrf.mxu0
  %4664 = vmatprep.mubr.f32.mxu0 0.0
  %4665 = vmatmul.mubr.f32.gmra.mxu0 %v2051
  %v4666 = vpop.f32.mrf.mxu0
  %v4667 = vadd.f32 %v532, %v4666
  %v4668 = vpop.f32.mrf.mxu0
  %4669 = vmatprep.mubr.f32.mxu0 0.0
  %4670 = vmatmul.mubr.f32.gmra.mxu0 %v2054
  %v4671 = vpop.f32.mrf.mxu0
  %v4672 = vadd.f32 %v532, %v4671
  %v4673 = vpop.f32.mrf.mxu0
  %4674 = vmatprep.mubr.f32.mxu0 0.0
  %4675 = vmatmul.mubr.f32.gmra.mxu0 %v2057
  %v4676 = vpop.f32.mrf.mxu0
  %v4677 = vadd.f32 %v532, %v4676
  %v4678 = vpop.f32.mrf.mxu0
  %4679 = vmatprep.mubr.f32.mxu0 0.0
  %4680 = vmatmul.mubr.f32.gmra.mxu0 %v2060
  %v4681 = vpop.f32.mrf.mxu0
  %v4682 = vadd.f32 %v532, %v4681
  %v4683 = vpop.f32.mrf.mxu0
  %4684 = vmatprep.mubr.f32.mxu0 0.0
  %4685 = vmatmul.mubr.f32.gmra.mxu0 %v2063
  %v4686 = vpop.f32.mrf.mxu0
  %v4687 = vadd.f32 %v532, %v4686
  %v4688 = vpop.f32.mrf.mxu0
  %4689 = vmatprep.mubr.f32.mxu0 0.0
  %4690 = vmatmul.mubr.f32.gmra.mxu0 %v2066
  %v4691 = vpop.f32.mrf.mxu0
  %v4692 = vadd.f32 %v532, %v4691
  %v4693 = vpop.f32.mrf.mxu0
  %4694 = vmatprep.mubr.f32.mxu0 0.0
  %4695 = vmatmul.mubr.f32.gmra.mxu0 %v2069
  %v4696 = vpop.f32.mrf.mxu0
  %v4697 = vadd.f32 %v532, %v4696
  %v4698 = vpop.f32.mrf.mxu0
  %4699 = vdwg.mxu0
  %4700 = vst.msk [vmem:[%s3] sm:$0xff] %vm534, %v2142
  %4701 = vst.msk [vmem:[%s3 + $0x8] sm:$0xff] %vm534, %v2147
  %4702 = vst.msk [vmem:[%s3 + $0x10] sm:$0xff] %vm534, %v2152
  %4703 = vst.msk [vmem:[%s3 + $0x18] sm:$0xff] %vm534, %v2157
  %4704 = vst.msk [vmem:[%s3 + $0x20] sm:$0xff] %vm534, %v2162
  %4705 = vst.msk [vmem:[%s3 + $0x28] sm:$0xff] %vm534, %v2167
  %4706 = vst.msk [vmem:[%s3 + $0x30] sm:$0xff] %vm534, %v2172
  %4707 = vst.msk [vmem:[%s3 + $0x38] sm:$0xff] %vm534, %v2177
  %4708 = vst.msk [vmem:[%s3 + $0x40] sm:$0xff] %vm534, %v2182
  %4709 = vst.msk [vmem:[%s3 + $0x48] sm:$0xff] %vm534, %v2187
  %4710 = vst.msk [vmem:[%s3 + $0x50] sm:$0xff] %vm534, %v2192
  %4711 = vst.msk [vmem:[%s3 + $0x58] sm:$0xff] %vm534, %v2197
  %4712 = vst.msk [vmem:[%s3 + $0x60] sm:$0xff] %vm534, %v2202
  %4713 = vst.msk [vmem:[%s3 + $0x68] sm:$0xff] %vm534, %v2207
  %4714 = vst.msk [vmem:[%s3 + $0x70] sm:$0xff] %vm534, %v2212
  %4715 = vst.msk [vmem:[%s3 + $0x78] sm:$0xff] %vm534, %v2217
  %4716 = vst.msk [vmem:[%s3 + $0x80] sm:$0xff] %vm534, %v2222
  %4717 = vst.msk [vmem:[%s3 + $0x88] sm:$0xff] %vm534, %v2227
  %4718 = vst.msk [vmem:[%s3 + $0x90] sm:$0xff] %vm534, %v2232
  %4719 = vst.msk [vmem:[%s3 + $0x98] sm:$0xff] %vm534, %v2237
  %4720 = vst.msk [vmem:[%s3 + $0xa0] sm:$0xff] %vm534, %v2242
  %4721 = vst.msk [vmem:[%s3 + $0xa8] sm:$0xff] %vm534, %v2247
  %4722 = vst.msk [vmem:[%s3 + $0xb0] sm:$0xff] %vm534, %v2252
  %4723 = vst.msk [vmem:[%s3 + $0xb8] sm:$0xff] %vm534, %v2257
  %4724 = vst.msk [vmem:[%s3 + $0xc0] sm:$0xff] %vm534, %v2262
  %4725 = vst.msk [vmem:[%s3 + $0xc8] sm:$0xff] %vm534, %v2267
  %4726 = vst.msk [vmem:[%s3 + $0xd0] sm:$0xff] %vm534, %v2272
  %4727 = vst.msk [vmem:[%s3 + $0xd8] sm:$0xff] %vm534, %v2277
  %4728 = vst.msk [vmem:[%s3 + $0xe0] sm:$0xff] %vm534, %v2282
  %4729 = vst.msk [vmem:[%s3 + $0xe8] sm:$0xff] %vm534, %v2287
  %4730 = vst.msk [vmem:[%s3 + $0xf0] sm:$0xff] %vm534, %v2292
  %4731 = vst.msk [vmem:[%s3 + $0xf8] sm:$0xff] %vm534, %v2297
  %4732 = vst.msk [vmem:[%s3 + $0x100] sm:$0xff] %vm534, %v2302
  %4733 = vst.msk [vmem:[%s3 + $0x108] sm:$0xff] %vm534, %v2307
  %4734 = vst.msk [vmem:[%s3 + $0x110] sm:$0xff] %vm534, %v2312
  %4735 = vst.msk [vmem:[%s3 + $0x118] sm:$0xff] %vm534, %v2317
  %4736 = vst.msk [vmem:[%s3 + $0x120] sm:$0xff] %vm534, %v2322
  %4737 = vst.msk [vmem:[%s3 + $0x128] sm:$0xff] %vm534, %v2327
  %4738 = vst.msk [vmem:[%s3 + $0x130] sm:$0xff] %vm534, %v2332
  %4739 = vst.msk [vmem:[%s3 + $0x138] sm:$0xff] %vm534, %v2337
  %4740 = vst.msk [vmem:[%s3 + $0x140] sm:$0xff] %vm534, %v2342
  %4741 = vst.msk [vmem:[%s3 + $0x148] sm:$0xff] %vm534, %v2347
  %4742 = vst.msk [vmem:[%s3 + $0x150] sm:$0xff] %vm534, %v2352
  %4743 = vst.msk [vmem:[%s3 + $0x158] sm:$0xff] %vm534, %v2357
  %4744 = vst.msk [vmem:[%s3 + $0x160] sm:$0xff] %vm534, %v2362
  %4745 = vst.msk [vmem:[%s3 + $0x168] sm:$0xff] %vm534, %v2367
  %4746 = vst.msk [vmem:[%s3 + $0x170] sm:$0xff] %vm534, %v2372
  %4747 = vst.msk [vmem:[%s3 + $0x178] sm:$0xff] %vm534, %v2377
  %4748 = vst.msk [vmem:[%s3 + $0x180] sm:$0xff] %vm534, %v2382
  %4749 = vst.msk [vmem:[%s3 + $0x188] sm:$0xff] %vm534, %v2387
  %4750 = vst.msk [vmem:[%s3 + $0x190] sm:$0xff] %vm534, %v2392
  %4751 = vst.msk [vmem:[%s3 + $0x198] sm:$0xff] %vm534, %v2397
  %4752 = vst.msk [vmem:[%s3 + $0x1a0] sm:$0xff] %vm534, %v2402
  %4753 = vst.msk [vmem:[%s3 + $0x1a8] sm:$0xff] %vm534, %v2407
  %4754 = vst.msk [vmem:[%s3 + $0x1b0] sm:$0xff] %vm534, %v2412
  %4755 = vst.msk [vmem:[%s3 + $0x1b8] sm:$0xff] %vm534, %v2417
  %4756 = vst.msk [vmem:[%s3 + $0x1c0] sm:$0xff] %vm534, %v2422
  %4757 = vst.msk [vmem:[%s3 + $0x1c8] sm:$0xff] %vm534, %v2427
  %4758 = vst.msk [vmem:[%s3 + $0x1d0] sm:$0xff] %vm534, %v2432
  %4759 = vst.msk [vmem:[%s3 + $0x1d8] sm:$0xff] %vm534, %v2437
  %4760 = vst.msk [vmem:[%s3 + $0x1e0] sm:$0xff] %vm534, %v2442
  %4761 = vst.msk [vmem:[%s3 + $0x1e8] sm:$0xff] %vm534, %v2447
  %4762 = vst.msk [vmem:[%s3 + $0x1f0] sm:$0xff] %vm534, %v2452
  %4763 = vst.msk [vmem:[%s3 + $0x1f8] sm:$0xff] %vm534, %v2457
  %4764 = vst.msk [vmem:[%s3 + $0x200] sm:$0xff] %vm534, %v2462
  %4765 = vst.msk [vmem:[%s3 + $0x208] sm:$0xff] %vm534, %v2467
  %4766 = vst.msk [vmem:[%s3 + $0x210] sm:$0xff] %vm534, %v2472
  %4767 = vst.msk [vmem:[%s3 + $0x218] sm:$0xff] %vm534, %v2477
  %4768 = vst.msk [vmem:[%s3 + $0x220] sm:$0xff] %vm534, %v2482
  %4769 = vst.msk [vmem:[%s3 + $0x228] sm:$0xff] %vm534, %v2487
  %4770 = vst.msk [vmem:[%s3 + $0x230] sm:$0xff] %vm534, %v2492
  %4771 = vst.msk [vmem:[%s3 + $0x238] sm:$0xff] %vm534, %v2497
  %4772 = vst.msk [vmem:[%s3 + $0x240] sm:$0xff] %vm534, %v2502
  %4773 = vst.msk [vmem:[%s3 + $0x248] sm:$0xff] %vm534, %v2507
  %4774 = vst.msk [vmem:[%s3 + $0x250] sm:$0xff] %vm534, %v2512
  %4775 = vst.msk [vmem:[%s3 + $0x258] sm:$0xff] %vm534, %v2517
  %4776 = vst.msk [vmem:[%s3 + $0x260] sm:$0xff] %vm534, %v2522
  %4777 = vst.msk [vmem:[%s3 + $0x268] sm:$0xff] %vm534, %v2527
  %4778 = vst.msk [vmem:[%s3 + $0x270] sm:$0xff] %vm534, %v2532
  %4779 = vst.msk [vmem:[%s3 + $0x278] sm:$0xff] %vm534, %v2537
  %4780 = vst.msk [vmem:[%s3 + $0x280] sm:$0xff] %vm534, %v2542
  %4781 = vst.msk [vmem:[%s3 + $0x288] sm:$0xff] %vm534, %v2547
  %4782 = vst.msk [vmem:[%s3 + $0x290] sm:$0xff] %vm534, %v2552
  %4783 = vst.msk [vmem:[%s3 + $0x298] sm:$0xff] %vm534, %v2557
  %4784 = vst.msk [vmem:[%s3 + $0x2a0] sm:$0xff] %vm534, %v2562
  %4785 = vst.msk [vmem:[%s3 + $0x2a8] sm:$0xff] %vm534, %v2567
  %4786 = vst.msk [vmem:[%s3 + $0x2b0] sm:$0xff] %vm534, %v2572
  %4787 = vst.msk [vmem:[%s3 + $0x2b8] sm:$0xff] %vm534, %v2577
  %4788 = vst.msk [vmem:[%s3 + $0x2c0] sm:$0xff] %vm534, %v2582
  %4789 = vst.msk [vmem:[%s3 + $0x2c8] sm:$0xff] %vm534, %v2587
  %4790 = vst.msk [vmem:[%s3 + $0x2d0] sm:$0xff] %vm534, %v2592
  %4791 = vst.msk [vmem:[%s3 + $0x2d8] sm:$0xff] %vm534, %v2597
  %4792 = vst.msk [vmem:[%s3 + $0x2e0] sm:$0xff] %vm534, %v2602
  %4793 = vst.msk [vmem:[%s3 + $0x2e8] sm:$0xff] %vm534, %v2607
  %4794 = vst.msk [vmem:[%s3 + $0x2f0] sm:$0xff] %vm534, %v2612
  %4795 = vst.msk [vmem:[%s3 + $0x2f8] sm:$0xff] %vm534, %v2617
  %4796 = vst.msk [vmem:[%s3 + $0x300] sm:$0xff] %vm534, %v2622
  %4797 = vst.msk [vmem:[%s3 + $0x308] sm:$0xff] %vm534, %v2627
  %4798 = vst.msk [vmem:[%s3 + $0x310] sm:$0xff] %vm534, %v2632
  %4799 = vst.msk [vmem:[%s3 + $0x318] sm:$0xff] %vm534, %v2637
  %4800 = vst.msk [vmem:[%s3 + $0x320] sm:$0xff] %vm534, %v2642
  %4801 = vst.msk [vmem:[%s3 + $0x328] sm:$0xff] %vm534, %v2647
  %4802 = vst.msk [vmem:[%s3 + $0x330] sm:$0xff] %vm534, %v2652
  %4803 = vst.msk [vmem:[%s3 + $0x338] sm:$0xff] %vm534, %v2657
  %4804 = vst.msk [vmem:[%s3 + $0x340] sm:$0xff] %vm534, %v2662
  %4805 = vst.msk [vmem:[%s3 + $0x348] sm:$0xff] %vm534, %v2667
  %4806 = vst.msk [vmem:[%s3 + $0x350] sm:$0xff] %vm534, %v2672
  %4807 = vst.msk [vmem:[%s3 + $0x358] sm:$0xff] %vm534, %v2677
  %4808 = vst.msk [vmem:[%s3 + $0x360] sm:$0xff] %vm534, %v2682
  %4809 = vst.msk [vmem:[%s3 + $0x368] sm:$0xff] %vm534, %v2687
  %4810 = vst.msk [vmem:[%s3 + $0x370] sm:$0xff] %vm534, %v2692
  %4811 = vst.msk [vmem:[%s3 + $0x378] sm:$0xff] %vm534, %v2697
  %4812 = vst.msk [vmem:[%s3 + $0x380] sm:$0xff] %vm534, %v2702
  %4813 = vst.msk [vmem:[%s3 + $0x388] sm:$0xff] %vm534, %v2707
  %4814 = vst.msk [vmem:[%s3 + $0x390] sm:$0xff] %vm534, %v2712
  %4815 = vst.msk [vmem:[%s3 + $0x398] sm:$0xff] %vm534, %v2717
  %4816 = vst.msk [vmem:[%s3 + $0x3a0] sm:$0xff] %vm534, %v2722
  %4817 = vst.msk [vmem:[%s3 + $0x3a8] sm:$0xff] %vm534, %v2727
  %4818 = vst.msk [vmem:[%s3 + $0x3b0] sm:$0xff] %vm534, %v2732
  %4819 = vst.msk [vmem:[%s3 + $0x3b8] sm:$0xff] %vm534, %v2737
  %4820 = vst.msk [vmem:[%s3 + $0x3c0] sm:$0xff] %vm534, %v2742
  %4821 = vst.msk [vmem:[%s3 + $0x3c8] sm:$0xff] %vm534, %v2747
  %4822 = vst.msk [vmem:[%s3 + $0x3d0] sm:$0xff] %vm534, %v2752
  %4823 = vst.msk [vmem:[%s3 + $0x3d8] sm:$0xff] %vm534, %v2757
  %4824 = vst.msk [vmem:[%s3 + $0x3e0] sm:$0xff] %vm534, %v2762
  %4825 = vst.msk [vmem:[%s3 + $0x3e8] sm:$0xff] %vm534, %v2767
  %4826 = vst.msk [vmem:[%s3 + $0x3f0] sm:$0xff] %vm534, %v2772
  %4827 = vst.msk [vmem:[%s3 + $0x3f8] sm:$0xff] %vm534, %v2777
  %4828 = vst.msk [vmem:[%s3 + $0x400] sm:$0xff] %vm534, %v2782
  %4829 = vst.msk [vmem:[%s3 + $0x408] sm:$0xff] %vm534, %v2787
  %4830 = vst.msk [vmem:[%s3 + $0x410] sm:$0xff] %vm534, %v2792
  %4831 = vst.msk [vmem:[%s3 + $0x418] sm:$0xff] %vm534, %v2797
  %4832 = vst.msk [vmem:[%s3 + $0x420] sm:$0xff] %vm534, %v2802
  %4833 = vst.msk [vmem:[%s3 + $0x428] sm:$0xff] %vm534, %v2807
  %4834 = vst.msk [vmem:[%s3 + $0x430] sm:$0xff] %vm534, %v2812
  %4835 = vst.msk [vmem:[%s3 + $0x438] sm:$0xff] %vm534, %v2817
  %4836 = vst.msk [vmem:[%s3 + $0x440] sm:$0xff] %vm534, %v2822
  %4837 = vst.msk [vmem:[%s3 + $0x448] sm:$0xff] %vm534, %v2827
  %4838 = vst.msk [vmem:[%s3 + $0x450] sm:$0xff] %vm534, %v2832
  %4839 = vst.msk [vmem:[%s3 + $0x458] sm:$0xff] %vm534, %v2837
  %4840 = vst.msk [vmem:[%s3 + $0x460] sm:$0xff] %vm534, %v2842
  %4841 = vst.msk [vmem:[%s3 + $0x468] sm:$0xff] %vm534, %v2847
  %4842 = vst.msk [vmem:[%s3 + $0x470] sm:$0xff] %vm534, %v2852
  %4843 = vst.msk [vmem:[%s3 + $0x478] sm:$0xff] %vm534, %v2857
  %4844 = vst.msk [vmem:[%s3 + $0x480] sm:$0xff] %vm534, %v2862
  %4845 = vst.msk [vmem:[%s3 + $0x488] sm:$0xff] %vm534, %v2867
  %4846 = vst.msk [vmem:[%s3 + $0x490] sm:$0xff] %vm534, %v2872
  %4847 = vst.msk [vmem:[%s3 + $0x498] sm:$0xff] %vm534, %v2877
  %4848 = vst.msk [vmem:[%s3 + $0x4a0] sm:$0xff] %vm534, %v2882
  %4849 = vst.msk [vmem:[%s3 + $0x4a8] sm:$0xff] %vm534, %v2887
  %4850 = vst.msk [vmem:[%s3 + $0x4b0] sm:$0xff] %vm534, %v2892
  %4851 = vst.msk [vmem:[%s3 + $0x4b8] sm:$0xff] %vm534, %v2897
  %4852 = vst.msk [vmem:[%s3 + $0x4c0] sm:$0xff] %vm534, %v2902
  %4853 = vst.msk [vmem:[%s3 + $0x4c8] sm:$0xff] %vm534, %v2907
  %4854 = vst.msk [vmem:[%s3 + $0x4d0] sm:$0xff] %vm534, %v2912
  %4855 = vst.msk [vmem:[%s3 + $0x4d8] sm:$0xff] %vm534, %v2917
  %4856 = vst.msk [vmem:[%s3 + $0x4e0] sm:$0xff] %vm534, %v2922
  %4857 = vst.msk [vmem:[%s3 + $0x4e8] sm:$0xff] %vm534, %v2927
  %4858 = vst.msk [vmem:[%s3 + $0x4f0] sm:$0xff] %vm534, %v2932
  %4859 = vst.msk [vmem:[%s3 + $0x4f8] sm:$0xff] %vm534, %v2937
  %4860 = vst.msk [vmem:[%s3 + $0x500] sm:$0xff] %vm534, %v2942
  %4861 = vst.msk [vmem:[%s3 + $0x508] sm:$0xff] %vm534, %v2947
  %4862 = vst.msk [vmem:[%s3 + $0x510] sm:$0xff] %vm534, %v2952
  %4863 = vst.msk [vmem:[%s3 + $0x518] sm:$0xff] %vm534, %v2957
  %4864 = vst.msk [vmem:[%s3 + $0x520] sm:$0xff] %vm534, %v2962
  %4865 = vst.msk [vmem:[%s3 + $0x528] sm:$0xff] %vm534, %v2967
  %4866 = vst.msk [vmem:[%s3 + $0x530] sm:$0xff] %vm534, %v2972
  %4867 = vst.msk [vmem:[%s3 + $0x538] sm:$0xff] %vm534, %v2977
  %4868 = vst.msk [vmem:[%s3 + $0x540] sm:$0xff] %vm534, %v2982
  %4869 = vst.msk [vmem:[%s3 + $0x548] sm:$0xff] %vm534, %v2987
  %4870 = vst.msk [vmem:[%s3 + $0x550] sm:$0xff] %vm534, %v2992
  %4871 = vst.msk [vmem:[%s3 + $0x558] sm:$0xff] %vm534, %v2997
  %4872 = vst.msk [vmem:[%s3 + $0x560] sm:$0xff] %vm534, %v3002
  %4873 = vst.msk [vmem:[%s3 + $0x568] sm:$0xff] %vm534, %v3007
  %4874 = vst.msk [vmem:[%s3 + $0x570] sm:$0xff] %vm534, %v3012
  %4875 = vst.msk [vmem:[%s3 + $0x578] sm:$0xff] %vm534, %v3017
  %4876 = vst.msk [vmem:[%s3 + $0x580] sm:$0xff] %vm534, %v3022
  %4877 = vst.msk [vmem:[%s3 + $0x588] sm:$0xff] %vm534, %v3027
  %4878 = vst.msk [vmem:[%s3 + $0x590] sm:$0xff] %vm534, %v3032
  %4879 = vst.msk [vmem:[%s3 + $0x598] sm:$0xff] %vm534, %v3037
  %4880 = vst.msk [vmem:[%s3 + $0x5a0] sm:$0xff] %vm534, %v3042
  %4881 = vst.msk [vmem:[%s3 + $0x5a8] sm:$0xff] %vm534, %v3047
  %4882 = vst.msk [vmem:[%s3 + $0x5b0] sm:$0xff] %vm534, %v3052
  %4883 = vst.msk [vmem:[%s3 + $0x5b8] sm:$0xff] %vm534, %v3057
  %4884 = vst.msk [vmem:[%s3 + $0x5c0] sm:$0xff] %vm534, %v3062
  %4885 = vst.msk [vmem:[%s3 + $0x5c8] sm:$0xff] %vm534, %v3067
  %4886 = vst.msk [vmem:[%s3 + $0x5d0] sm:$0xff] %vm534, %v3072
  %4887 = vst.msk [vmem:[%s3 + $0x5d8] sm:$0xff] %vm534, %v3077
  %4888 = vst.msk [vmem:[%s3 + $0x5e0] sm:$0xff] %vm534, %v3082
  %4889 = vst.msk [vmem:[%s3 + $0x5e8] sm:$0xff] %vm534, %v3087
  %4890 = vst.msk [vmem:[%s3 + $0x5f0] sm:$0xff] %vm534, %v3092
  %4891 = vst.msk [vmem:[%s3 + $0x5f8] sm:$0xff] %vm534, %v3097
  %4892 = vst.msk [vmem:[%s3 + $0x600] sm:$0xff] %vm534, %v3102
  %4893 = vst.msk [vmem:[%s3 + $0x608] sm:$0xff] %vm534, %v3107
  %4894 = vst.msk [vmem:[%s3 + $0x610] sm:$0xff] %vm534, %v3112
  %4895 = vst.msk [vmem:[%s3 + $0x618] sm:$0xff] %vm534, %v3117
  %4896 = vst.msk [vmem:[%s3 + $0x620] sm:$0xff] %vm534, %v3122
  %4897 = vst.msk [vmem:[%s3 + $0x628] sm:$0xff] %vm534, %v3127
  %4898 = vst.msk [vmem:[%s3 + $0x630] sm:$0xff] %vm534, %v3132
  %4899 = vst.msk [vmem:[%s3 + $0x638] sm:$0xff] %vm534, %v3137
  %4900 = vst.msk [vmem:[%s3 + $0x640] sm:$0xff] %vm534, %v3142
  %4901 = vst.msk [vmem:[%s3 + $0x648] sm:$0xff] %vm534, %v3147
  %4902 = vst.msk [vmem:[%s3 + $0x650] sm:$0xff] %vm534, %v3152
  %4903 = vst.msk [vmem:[%s3 + $0x658] sm:$0xff] %vm534, %v3157
  %4904 = vst.msk [vmem:[%s3 + $0x660] sm:$0xff] %vm534, %v3162
  %4905 = vst.msk [vmem:[%s3 + $0x668] sm:$0xff] %vm534, %v3167
  %4906 = vst.msk [vmem:[%s3 + $0x670] sm:$0xff] %vm534, %v3172
  %4907 = vst.msk [vmem:[%s3 + $0x678] sm:$0xff] %vm534, %v3177
  %4908 = vst.msk [vmem:[%s3 + $0x680] sm:$0xff] %vm534, %v3182
  %4909 = vst.msk [vmem:[%s3 + $0x688] sm:$0xff] %vm534, %v3187
  %4910 = vst.msk [vmem:[%s3 + $0x690] sm:$0xff] %vm534, %v3192
  %4911 = vst.msk [vmem:[%s3 + $0x698] sm:$0xff] %vm534, %v3197
  %4912 = vst.msk [vmem:[%s3 + $0x6a0] sm:$0xff] %vm534, %v3202
  %4913 = vst.msk [vmem:[%s3 + $0x6a8] sm:$0xff] %vm534, %v3207
  %4914 = vst.msk [vmem:[%s3 + $0x6b0] sm:$0xff] %vm534, %v3212
  %4915 = vst.msk [vmem:[%s3 + $0x6b8] sm:$0xff] %vm534, %v3217
  %4916 = vst.msk [vmem:[%s3 + $0x6c0] sm:$0xff] %vm534, %v3222
  %4917 = vst.msk [vmem:[%s3 + $0x6c8] sm:$0xff] %vm534, %v3227
  %4918 = vst.msk [vmem:[%s3 + $0x6d0] sm:$0xff] %vm534, %v3232
  %4919 = vst.msk [vmem:[%s3 + $0x6d8] sm:$0xff] %vm534, %v3237
  %4920 = vst.msk [vmem:[%s3 + $0x6e0] sm:$0xff] %vm534, %v3242
  %4921 = vst.msk [vmem:[%s3 + $0x6e8] sm:$0xff] %vm534, %v3247
  %4922 = vst.msk [vmem:[%s3 + $0x6f0] sm:$0xff] %vm534, %v3252
  %4923 = vst.msk [vmem:[%s3 + $0x6f8] sm:$0xff] %vm534, %v3257
  %4924 = vst.msk [vmem:[%s3 + $0x700] sm:$0xff] %vm534, %v3262
  %4925 = vst.msk [vmem:[%s3 + $0x708] sm:$0xff] %vm534, %v3267
  %4926 = vst.msk [vmem:[%s3 + $0x710] sm:$0xff] %vm534, %v3272
  %4927 = vst.msk [vmem:[%s3 + $0x718] sm:$0xff] %vm534, %v3277
  %4928 = vst.msk [vmem:[%s3 + $0x720] sm:$0xff] %vm534, %v3282
  %4929 = vst.msk [vmem:[%s3 + $0x728] sm:$0xff] %vm534, %v3287
  %4930 = vst.msk [vmem:[%s3 + $0x730] sm:$0xff] %vm534, %v3292
  %4931 = vst.msk [vmem:[%s3 + $0x738] sm:$0xff] %vm534, %v3297
  %4932 = vst.msk [vmem:[%s3 + $0x740] sm:$0xff] %vm534, %v3302
  %4933 = vst.msk [vmem:[%s3 + $0x748] sm:$0xff] %vm534, %v3307
  %4934 = vst.msk [vmem:[%s3 + $0x750] sm:$0xff] %vm534, %v3312
  %4935 = vst.msk [vmem:[%s3 + $0x758] sm:$0xff] %vm534, %v3317
  %4936 = vst.msk [vmem:[%s3 + $0x760] sm:$0xff] %vm534, %v3322
  %4937 = vst.msk [vmem:[%s3 + $0x768] sm:$0xff] %vm534, %v3327
  %4938 = vst.msk [vmem:[%s3 + $0x770] sm:$0xff] %vm534, %v3332
  %4939 = vst.msk [vmem:[%s3 + $0x778] sm:$0xff] %vm534, %v3337
  %4940 = vst.msk [vmem:[%s3 + $0x780] sm:$0xff] %vm534, %v3342
  %4941 = vst.msk [vmem:[%s3 + $0x788] sm:$0xff] %vm534, %v3347
  %4942 = vst.msk [vmem:[%s3 + $0x790] sm:$0xff] %vm534, %v3352
  %4943 = vst.msk [vmem:[%s3 + $0x798] sm:$0xff] %vm534, %v3357
  %4944 = vst.msk [vmem:[%s3 + $0x7a0] sm:$0xff] %vm534, %v3362
  %4945 = vst.msk [vmem:[%s3 + $0x7a8] sm:$0xff] %vm534, %v3367
  %4946 = vst.msk [vmem:[%s3 + $0x7b0] sm:$0xff] %vm534, %v3372
  %4947 = vst.msk [vmem:[%s3 + $0x7b8] sm:$0xff] %vm534, %v3377
  %4948 = vst.msk [vmem:[%s3 + $0x7c0] sm:$0xff] %vm534, %v3382
  %4949 = vst.msk [vmem:[%s3 + $0x7c8] sm:$0xff] %vm534, %v3387
  %4950 = vst.msk [vmem:[%s3 + $0x7d0] sm:$0xff] %vm534, %v3392
  %4951 = vst.msk [vmem:[%s3 + $0x7d8] sm:$0xff] %vm534, %v3397
  %4952 = vst.msk [vmem:[%s3 + $0x7e0] sm:$0xff] %vm534, %v3402
  %4953 = vst.msk [vmem:[%s3 + $0x7e8] sm:$0xff] %vm534, %v3407
  %4954 = vst.msk [vmem:[%s3 + $0x7f0] sm:$0xff] %vm534, %v3412
  %4955 = vst.msk [vmem:[%s3 + $0x7f8] sm:$0xff] %vm534, %v3417
  %4956 = vst.msk [vmem:[%s3 + $0x800] sm:$0xff] %vm534, %v3422
  %4957 = vst.msk [vmem:[%s3 + $0x808] sm:$0xff] %vm534, %v3427
  %4958 = vst.msk [vmem:[%s3 + $0x810] sm:$0xff] %vm534, %v3432
  %4959 = vst.msk [vmem:[%s3 + $0x818] sm:$0xff] %vm534, %v3437
  %4960 = vst.msk [vmem:[%s3 + $0x820] sm:$0xff] %vm534, %v3442
  %4961 = vst.msk [vmem:[%s3 + $0x828] sm:$0xff] %vm534, %v3447
  %4962 = vst.msk [vmem:[%s3 + $0x830] sm:$0xff] %vm534, %v3452
  %4963 = vst.msk [vmem:[%s3 + $0x838] sm:$0xff] %vm534, %v3457
  %4964 = vst.msk [vmem:[%s3 + $0x840] sm:$0xff] %vm534, %v3462
  %4965 = vst.msk [vmem:[%s3 + $0x848] sm:$0xff] %vm534, %v3467
  %4966 = vst.msk [vmem:[%s3 + $0x850] sm:$0xff] %vm534, %v3472
  %4967 = vst.msk [vmem:[%s3 + $0x858] sm:$0xff] %vm534, %v3477
  %4968 = vst.msk [vmem:[%s3 + $0x860] sm:$0xff] %vm534, %v3482
  %4969 = vst.msk [vmem:[%s3 + $0x868] sm:$0xff] %vm534, %v3487
  %4970 = vst.msk [vmem:[%s3 + $0x870] sm:$0xff] %vm534, %v3492
  %4971 = vst.msk [vmem:[%s3 + $0x878] sm:$0xff] %vm534, %v3497
  %4972 = vst.msk [vmem:[%s3 + $0x880] sm:$0xff] %vm534, %v3502
  %4973 = vst.msk [vmem:[%s3 + $0x888] sm:$0xff] %vm534, %v3507
  %4974 = vst.msk [vmem:[%s3 + $0x890] sm:$0xff] %vm534, %v3512
  %4975 = vst.msk [vmem:[%s3 + $0x898] sm:$0xff] %vm534, %v3517
  %4976 = vst.msk [vmem:[%s3 + $0x8a0] sm:$0xff] %vm534, %v3522
  %4977 = vst.msk [vmem:[%s3 + $0x8a8] sm:$0xff] %vm534, %v3527
  %4978 = vst.msk [vmem:[%s3 + $0x8b0] sm:$0xff] %vm534, %v3532
  %4979 = vst.msk [vmem:[%s3 + $0x8b8] sm:$0xff] %vm534, %v3537
  %4980 = vst.msk [vmem:[%s3 + $0x8c0] sm:$0xff] %vm534, %v3542
  %4981 = vst.msk [vmem:[%s3 + $0x8c8] sm:$0xff] %vm534, %v3547
  %4982 = vst.msk [vmem:[%s3 + $0x8d0] sm:$0xff] %vm534, %v3552
  %4983 = vst.msk [vmem:[%s3 + $0x8d8] sm:$0xff] %vm534, %v3557
  %4984 = vst.msk [vmem:[%s3 + $0x8e0] sm:$0xff] %vm534, %v3562
  %4985 = vst.msk [vmem:[%s3 + $0x8e8] sm:$0xff] %vm534, %v3567
  %4986 = vst.msk [vmem:[%s3 + $0x8f0] sm:$0xff] %vm534, %v3572
  %4987 = vst.msk [vmem:[%s3 + $0x8f8] sm:$0xff] %vm534, %v3577
  %4988 = vst.msk [vmem:[%s3 + $0x900] sm:$0xff] %vm534, %v3582
  %4989 = vst.msk [vmem:[%s3 + $0x908] sm:$0xff] %vm534, %v3587
  %4990 = vst.msk [vmem:[%s3 + $0x910] sm:$0xff] %vm534, %v3592
  %4991 = vst.msk [vmem:[%s3 + $0x918] sm:$0xff] %vm534, %v3597
  %4992 = vst.msk [vmem:[%s3 + $0x920] sm:$0xff] %vm534, %v3602
  %4993 = vst.msk [vmem:[%s3 + $0x928] sm:$0xff] %vm534, %v3607
  %4994 = vst.msk [vmem:[%s3 + $0x930] sm:$0xff] %vm534, %v3612
  %4995 = vst.msk [vmem:[%s3 + $0x938] sm:$0xff] %vm534, %v3617
  %4996 = vst.msk [vmem:[%s3 + $0x940] sm:$0xff] %vm534, %v3622
  %4997 = vst.msk [vmem:[%s3 + $0x948] sm:$0xff] %vm534, %v3627
  %4998 = vst.msk [vmem:[%s3 + $0x950] sm:$0xff] %vm534, %v3632
  %4999 = vst.msk [vmem:[%s3 + $0x958] sm:$0xff] %vm534, %v3637
  %5000 = vst.msk [vmem:[%s3 + $0x960] sm:$0xff] %vm534, %v3642
  %5001 = vst.msk [vmem:[%s3 + $0x968] sm:$0xff] %vm534, %v3647
  %5002 = vst.msk [vmem:[%s3 + $0x970] sm:$0xff] %vm534, %v3652
  %5003 = vst.msk [vmem:[%s3 + $0x978] sm:$0xff] %vm534, %v3657
  %5004 = vst.msk [vmem:[%s3 + $0x980] sm:$0xff] %vm534, %v3662
  %5005 = vst.msk [vmem:[%s3 + $0x988] sm:$0xff] %vm534, %v3667
  %5006 = vst.msk [vmem:[%s3 + $0x990] sm:$0xff] %vm534, %v3672
  %5007 = vst.msk [vmem:[%s3 + $0x998] sm:$0xff] %vm534, %v3677
  %5008 = vst.msk [vmem:[%s3 + $0x9a0] sm:$0xff] %vm534, %v3682
  %5009 = vst.msk [vmem:[%s3 + $0x9a8] sm:$0xff] %vm534, %v3687
  %5010 = vst.msk [vmem:[%s3 + $0x9b0] sm:$0xff] %vm534, %v3692
  %5011 = vst.msk [vmem:[%s3 + $0x9b8] sm:$0xff] %vm534, %v3697
  %5012 = vst.msk [vmem:[%s3 + $0x9c0] sm:$0xff] %vm534, %v3702
  %5013 = vst.msk [vmem:[%s3 + $0x9c8] sm:$0xff] %vm534, %v3707
  %5014 = vst.msk [vmem:[%s3 + $0x9d0] sm:$0xff] %vm534, %v3712
  %5015 = vst.msk [vmem:[%s3 + $0x9d8] sm:$0xff] %vm534, %v3717
  %5016 = vst.msk [vmem:[%s3 + $0x9e0] sm:$0xff] %vm534, %v3722
  %5017 = vst.msk [vmem:[%s3 + $0x9e8] sm:$0xff] %vm534, %v3727
  %5018 = vst.msk [vmem:[%s3 + $0x9f0] sm:$0xff] %vm534, %v3732
  %5019 = vst.msk [vmem:[%s3 + $0x9f8] sm:$0xff] %vm534, %v3737
  %5020 = vst.msk [vmem:[%s3 + $0xa00] sm:$0xff] %vm534, %v3742
  %5021 = vst.msk [vmem:[%s3 + $0xa08] sm:$0xff] %vm534, %v3747
  %5022 = vst.msk [vmem:[%s3 + $0xa10] sm:$0xff] %vm534, %v3752
  %5023 = vst.msk [vmem:[%s3 + $0xa18] sm:$0xff] %vm534, %v3757
  %5024 = vst.msk [vmem:[%s3 + $0xa20] sm:$0xff] %vm534, %v3762
  %5025 = vst.msk [vmem:[%s3 + $0xa28] sm:$0xff] %vm534, %v3767
  %5026 = vst.msk [vmem:[%s3 + $0xa30] sm:$0xff] %vm534, %v3772
  %5027 = vst.msk [vmem:[%s3 + $0xa38] sm:$0xff] %vm534, %v3777
  %5028 = vst.msk [vmem:[%s3 + $0xa40] sm:$0xff] %vm534, %v3782
  %5029 = vst.msk [vmem:[%s3 + $0xa48] sm:$0xff] %vm534, %v3787
  %5030 = vst.msk [vmem:[%s3 + $0xa50] sm:$0xff] %vm534, %v3792
  %5031 = vst.msk [vmem:[%s3 + $0xa58] sm:$0xff] %vm534, %v3797
  %5032 = vst.msk [vmem:[%s3 + $0xa60] sm:$0xff] %vm534, %v3802
  %5033 = vst.msk [vmem:[%s3 + $0xa68] sm:$0xff] %vm534, %v3807
  %5034 = vst.msk [vmem:[%s3 + $0xa70] sm:$0xff] %vm534, %v3812
  %5035 = vst.msk [vmem:[%s3 + $0xa78] sm:$0xff] %vm534, %v3817
  %5036 = vst.msk [vmem:[%s3 + $0xa80] sm:$0xff] %vm534, %v3822
  %5037 = vst.msk [vmem:[%s3 + $0xa88] sm:$0xff] %vm534, %v3827
  %5038 = vst.msk [vmem:[%s3 + $0xa90] sm:$0xff] %vm534, %v3832
  %5039 = vst.msk [vmem:[%s3 + $0xa98] sm:$0xff] %vm534, %v3837
  %5040 = vst.msk [vmem:[%s3 + $0xaa0] sm:$0xff] %vm534, %v3842
  %5041 = vst.msk [vmem:[%s3 + $0xaa8] sm:$0xff] %vm534, %v3847
  %5042 = vst.msk [vmem:[%s3 + $0xab0] sm:$0xff] %vm534, %v3852
  %5043 = vst.msk [vmem:[%s3 + $0xab8] sm:$0xff] %vm534, %v3857
  %5044 = vst.msk [vmem:[%s3 + $0xac0] sm:$0xff] %vm534, %v3862
  %5045 = vst.msk [vmem:[%s3 + $0xac8] sm:$0xff] %vm534, %v3867
  %5046 = vst.msk [vmem:[%s3 + $0xad0] sm:$0xff] %vm534, %v3872
  %5047 = vst.msk [vmem:[%s3 + $0xad8] sm:$0xff] %vm534, %v3877
  %5048 = vst.msk [vmem:[%s3 + $0xae0] sm:$0xff] %vm534, %v3882
  %5049 = vst.msk [vmem:[%s3 + $0xae8] sm:$0xff] %vm534, %v3887
  %5050 = vst.msk [vmem:[%s3 + $0xaf0] sm:$0xff] %vm534, %v3892
  %5051 = vst.msk [vmem:[%s3 + $0xaf8] sm:$0xff] %vm534, %v3897
  %5052 = vst.msk [vmem:[%s3 + $0xb00] sm:$0xff] %vm534, %v3902
  %5053 = vst.msk [vmem:[%s3 + $0xb08] sm:$0xff] %vm534, %v3907
  %5054 = vst.msk [vmem:[%s3 + $0xb10] sm:$0xff] %vm534, %v3912
  %5055 = vst.msk [vmem:[%s3 + $0xb18] sm:$0xff] %vm534, %v3917
  %5056 = vst.msk [vmem:[%s3 + $0xb20] sm:$0xff] %vm534, %v3922
  %5057 = vst.msk [vmem:[%s3 + $0xb28] sm:$0xff] %vm534, %v3927
  %5058 = vst.msk [vmem:[%s3 + $0xb30] sm:$0xff] %vm534, %v3932
  %5059 = vst.msk [vmem:[%s3 + $0xb38] sm:$0xff] %vm534, %v3937
  %5060 = vst.msk [vmem:[%s3 + $0xb40] sm:$0xff] %vm534, %v3942
  %5061 = vst.msk [vmem:[%s3 + $0xb48] sm:$0xff] %vm534, %v3947
  %5062 = vst.msk [vmem:[%s3 + $0xb50] sm:$0xff] %vm534, %v3952
  %5063 = vst.msk [vmem:[%s3 + $0xb58] sm:$0xff] %vm534, %v3957
  %5064 = vst.msk [vmem:[%s3 + $0xb60] sm:$0xff] %vm534, %v3962
  %5065 = vst.msk [vmem:[%s3 + $0xb68] sm:$0xff] %vm534, %v3967
  %5066 = vst.msk [vmem:[%s3 + $0xb70] sm:$0xff] %vm534, %v3972
  %5067 = vst.msk [vmem:[%s3 + $0xb78] sm:$0xff] %vm534, %v3977
  %5068 = vst.msk [vmem:[%s3 + $0xb80] sm:$0xff] %vm534, %v3982
  %5069 = vst.msk [vmem:[%s3 + $0xb88] sm:$0xff] %vm534, %v3987
  %5070 = vst.msk [vmem:[%s3 + $0xb90] sm:$0xff] %vm534, %v3992
  %5071 = vst.msk [vmem:[%s3 + $0xb98] sm:$0xff] %vm534, %v3997
  %5072 = vst.msk [vmem:[%s3 + $0xba0] sm:$0xff] %vm534, %v4002
  %5073 = vst.msk [vmem:[%s3 + $0xba8] sm:$0xff] %vm534, %v4007
  %5074 = vst.msk [vmem:[%s3 + $0xbb0] sm:$0xff] %vm534, %v4012
  %5075 = vst.msk [vmem:[%s3 + $0xbb8] sm:$0xff] %vm534, %v4017
  %5076 = vst.msk [vmem:[%s3 + $0xbc0] sm:$0xff] %vm534, %v4022
  %5077 = vst.msk [vmem:[%s3 + $0xbc8] sm:$0xff] %vm534, %v4027
  %5078 = vst.msk [vmem:[%s3 + $0xbd0] sm:$0xff] %vm534, %v4032
  %5079 = vst.msk [vmem:[%s3 + $0xbd8] sm:$0xff] %vm534, %v4037
  %5080 = vst.msk [vmem:[%s3 + $0xbe0] sm:$0xff] %vm534, %v4042
  %5081 = vst.msk [vmem:[%s3 + $0xbe8] sm:$0xff] %vm534, %v4047
  %5082 = vst.msk [vmem:[%s3 + $0xbf0] sm:$0xff] %vm534, %v4052
  %5083 = vst.msk [vmem:[%s3 + $0xbf8] sm:$0xff] %vm534, %v4057
  %5084 = vst.msk [vmem:[%s3 + $0xc00] sm:$0xff] %vm534, %v4062
  %5085 = vst.msk [vmem:[%s3 + $0xc08] sm:$0xff] %vm534, %v4067
  %5086 = vst.msk [vmem:[%s3 + $0xc10] sm:$0xff] %vm534, %v4072
  %5087 = vst.msk [vmem:[%s3 + $0xc18] sm:$0xff] %vm534, %v4077
  %5088 = vst.msk [vmem:[%s3 + $0xc20] sm:$0xff] %vm534, %v4082
  %5089 = vst.msk [vmem:[%s3 + $0xc28] sm:$0xff] %vm534, %v4087
  %5090 = vst.msk [vmem:[%s3 + $0xc30] sm:$0xff] %vm534, %v4092
  %5091 = vst.msk [vmem:[%s3 + $0xc38] sm:$0xff] %vm534, %v4097
  %5092 = vst.msk [vmem:[%s3 + $0xc40] sm:$0xff] %vm534, %v4102
  %5093 = vst.msk [vmem:[%s3 + $0xc48] sm:$0xff] %vm534, %v4107
  %5094 = vst.msk [vmem:[%s3 + $0xc50] sm:$0xff] %vm534, %v4112
  %5095 = vst.msk [vmem:[%s3 + $0xc58] sm:$0xff] %vm534, %v4117
  %5096 = vst.msk [vmem:[%s3 + $0xc60] sm:$0xff] %vm534, %v4122
  %5097 = vst.msk [vmem:[%s3 + $0xc68] sm:$0xff] %vm534, %v4127
  %5098 = vst.msk [vmem:[%s3 + $0xc70] sm:$0xff] %vm534, %v4132
  %5099 = vst.msk [vmem:[%s3 + $0xc78] sm:$0xff] %vm534, %v4137
  %5100 = vst.msk [vmem:[%s3 + $0xc80] sm:$0xff] %vm534, %v4142
  %5101 = vst.msk [vmem:[%s3 + $0xc88] sm:$0xff] %vm534, %v4147
  %5102 = vst.msk [vmem:[%s3 + $0xc90] sm:$0xff] %vm534, %v4152
  %5103 = vst.msk [vmem:[%s3 + $0xc98] sm:$0xff] %vm534, %v4157
  %5104 = vst.msk [vmem:[%s3 + $0xca0] sm:$0xff] %vm534, %v4162
  %5105 = vst.msk [vmem:[%s3 + $0xca8] sm:$0xff] %vm534, %v4167
  %5106 = vst.msk [vmem:[%s3 + $0xcb0] sm:$0xff] %vm534, %v4172
  %5107 = vst.msk [vmem:[%s3 + $0xcb8] sm:$0xff] %vm534, %v4177
  %5108 = vst.msk [vmem:[%s3 + $0xcc0] sm:$0xff] %vm534, %v4182
  %5109 = vst.msk [vmem:[%s3 + $0xcc8] sm:$0xff] %vm534, %v4187
  %5110 = vst.msk [vmem:[%s3 + $0xcd0] sm:$0xff] %vm534, %v4192
  %5111 = vst.msk [vmem:[%s3 + $0xcd8] sm:$0xff] %vm534, %v4197
  %5112 = vst.msk [vmem:[%s3 + $0xce0] sm:$0xff] %vm534, %v4202
  %5113 = vst.msk [vmem:[%s3 + $0xce8] sm:$0xff] %vm534, %v4207
  %5114 = vst.msk [vmem:[%s3 + $0xcf0] sm:$0xff] %vm534, %v4212
  %5115 = vst.msk [vmem:[%s3 + $0xcf8] sm:$0xff] %vm534, %v4217
  %5116 = vst.msk [vmem:[%s3 + $0xd00] sm:$0xff] %vm534, %v4222
  %5117 = vst.msk [vmem:[%s3 + $0xd08] sm:$0xff] %vm534, %v4227
  %5118 = vst.msk [vmem:[%s3 + $0xd10] sm:$0xff] %vm534, %v4232
  %5119 = vst.msk [vmem:[%s3 + $0xd18] sm:$0xff] %vm534, %v4237
  %5120 = vst.msk [vmem:[%s3 + $0xd20] sm:$0xff] %vm534, %v4242
  %5121 = vst.msk [vmem:[%s3 + $0xd28] sm:$0xff] %vm534, %v4247
  %5122 = vst.msk [vmem:[%s3 + $0xd30] sm:$0xff] %vm534, %v4252
  %5123 = vst.msk [vmem:[%s3 + $0xd38] sm:$0xff] %vm534, %v4257
  %5124 = vst.msk [vmem:[%s3 + $0xd40] sm:$0xff] %vm534, %v4262
  %5125 = vst.msk [vmem:[%s3 + $0xd48] sm:$0xff] %vm534, %v4267
  %5126 = vst.msk [vmem:[%s3 + $0xd50] sm:$0xff] %vm534, %v4272
  %5127 = vst.msk [vmem:[%s3 + $0xd58] sm:$0xff] %vm534, %v4277
  %5128 = vst.msk [vmem:[%s3 + $0xd60] sm:$0xff] %vm534, %v4282
  %5129 = vst.msk [vmem:[%s3 + $0xd68] sm:$0xff] %vm534, %v4287
  %5130 = vst.msk [vmem:[%s3 + $0xd70] sm:$0xff] %vm534, %v4292
  %5131 = vst.msk [vmem:[%s3 + $0xd78] sm:$0xff] %vm534, %v4297
  %5132 = vst.msk [vmem:[%s3 + $0xd80] sm:$0xff] %vm534, %v4302
  %5133 = vst.msk [vmem:[%s3 + $0xd88] sm:$0xff] %vm534, %v4307
  %5134 = vst.msk [vmem:[%s3 + $0xd90] sm:$0xff] %vm534, %v4312
  %5135 = vst.msk [vmem:[%s3 + $0xd98] sm:$0xff] %vm534, %v4317
  %5136 = vst.msk [vmem:[%s3 + $0xda0] sm:$0xff] %vm534, %v4322
  %5137 = vst.msk [vmem:[%s3 + $0xda8] sm:$0xff] %vm534, %v4327
  %5138 = vst.msk [vmem:[%s3 + $0xdb0] sm:$0xff] %vm534, %v4332
  %5139 = vst.msk [vmem:[%s3 + $0xdb8] sm:$0xff] %vm534, %v4337
  %5140 = vst.msk [vmem:[%s3 + $0xdc0] sm:$0xff] %vm534, %v4342
  %5141 = vst.msk [vmem:[%s3 + $0xdc8] sm:$0xff] %vm534, %v4347
  %5142 = vst.msk [vmem:[%s3 + $0xdd0] sm:$0xff] %vm534, %v4352
  %5143 = vst.msk [vmem:[%s3 + $0xdd8] sm:$0xff] %vm534, %v4357
  %5144 = vst.msk [vmem:[%s3 + $0xde0] sm:$0xff] %vm534, %v4362
  %5145 = vst.msk [vmem:[%s3 + $0xde8] sm:$0xff] %vm534, %v4367
  %5146 = vst.msk [vmem:[%s3 + $0xdf0] sm:$0xff] %vm534, %v4372
  %5147 = vst.msk [vmem:[%s3 + $0xdf8] sm:$0xff] %vm534, %v4377
  %5148 = vst.msk [vmem:[%s3 + $0xe00] sm:$0xff] %vm534, %v4382
  %5149 = vst.msk [vmem:[%s3 + $0xe08] sm:$0xff] %vm534, %v4387
  %5150 = vst.msk [vmem:[%s3 + $0xe10] sm:$0xff] %vm534, %v4392
  %5151 = vst.msk [vmem:[%s3 + $0xe18] sm:$0xff] %vm534, %v4397
  %5152 = vst.msk [vmem:[%s3 + $0xe20] sm:$0xff] %vm534, %v4402
  %5153 = vst.msk [vmem:[%s3 + $0xe28] sm:$0xff] %vm534, %v4407
  %5154 = vst.msk [vmem:[%s3 + $0xe30] sm:$0xff] %vm534, %v4412
  %5155 = vst.msk [vmem:[%s3 + $0xe38] sm:$0xff] %vm534, %v4417
  %5156 = vst.msk [vmem:[%s3 + $0xe40] sm:$0xff] %vm534, %v4422
  %5157 = vst.msk [vmem:[%s3 + $0xe48] sm:$0xff] %vm534, %v4427
  %5158 = vst.msk [vmem:[%s3 + $0xe50] sm:$0xff] %vm534, %v4432
  %5159 = vst.msk [vmem:[%s3 + $0xe58] sm:$0xff] %vm534, %v4437
  %5160 = vst.msk [vmem:[%s3 + $0xe60] sm:$0xff] %vm534, %v4442
  %5161 = vst.msk [vmem:[%s3 + $0xe68] sm:$0xff] %vm534, %v4447
  %5162 = vst.msk [vmem:[%s3 + $0xe70] sm:$0xff] %vm534, %v4452
  %5163 = vst.msk [vmem:[%s3 + $0xe78] sm:$0xff] %vm534, %v4457
  %5164 = vst.msk [vmem:[%s3 + $0xe80] sm:$0xff] %vm534, %v4462
  %5165 = vst.msk [vmem:[%s3 + $0xe88] sm:$0xff] %vm534, %v4467
  %5166 = vst.msk [vmem:[%s3 + $0xe90] sm:$0xff] %vm534, %v4472
  %5167 = vst.msk [vmem:[%s3 + $0xe98] sm:$0xff] %vm534, %v4477
  %5168 = vst.msk [vmem:[%s3 + $0xea0] sm:$0xff] %vm534, %v4482
  %5169 = vst.msk [vmem:[%s3 + $0xea8] sm:$0xff] %vm534, %v4487
  %5170 = vst.msk [vmem:[%s3 + $0xeb0] sm:$0xff] %vm534, %v4492
  %5171 = vst.msk [vmem:[%s3 + $0xeb8] sm:$0xff] %vm534, %v4497
  %5172 = vst.msk [vmem:[%s3 + $0xec0] sm:$0xff] %vm534, %v4502
  %5173 = vst.msk [vmem:[%s3 + $0xec8] sm:$0xff] %vm534, %v4507
  %5174 = vst.msk [vmem:[%s3 + $0xed0] sm:$0xff] %vm534, %v4512
  %5175 = vst.msk [vmem:[%s3 + $0xed8] sm:$0xff] %vm534, %v4517
  %5176 = vst.msk [vmem:[%s3 + $0xee0] sm:$0xff] %vm534, %v4522
  %5177 = vst.msk [vmem:[%s3 + $0xee8] sm:$0xff] %vm534, %v4527
  %5178 = vst.msk [vmem:[%s3 + $0xef0] sm:$0xff] %vm534, %v4532
  %5179 = vst.msk [vmem:[%s3 + $0xef8] sm:$0xff] %vm534, %v4537
  %5180 = vst.msk [vmem:[%s3 + $0xf00] sm:$0xff] %vm534, %v4542
  %5181 = vst.msk [vmem:[%s3 + $0xf08] sm:$0xff] %vm534, %v4547
  %5182 = vst.msk [vmem:[%s3 + $0xf10] sm:$0xff] %vm534, %v4552
  %5183 = vst.msk [vmem:[%s3 + $0xf18] sm:$0xff] %vm534, %v4557
  %5184 = vst.msk [vmem:[%s3 + $0xf20] sm:$0xff] %vm534, %v4562
  %5185 = vst.msk [vmem:[%s3 + $0xf28] sm:$0xff] %vm534, %v4567
  %5186 = vst.msk [vmem:[%s3 + $0xf30] sm:$0xff] %vm534, %v4572
  %5187 = vst.msk [vmem:[%s3 + $0xf38] sm:$0xff] %vm534, %v4577
  %5188 = vst.msk [vmem:[%s3 + $0xf40] sm:$0xff] %vm534, %v4582
  %5189 = vst.msk [vmem:[%s3 + $0xf48] sm:$0xff] %vm534, %v4587
  %5190 = vst.msk [vmem:[%s3 + $0xf50] sm:$0xff] %vm534, %v4592
  %5191 = vst.msk [vmem:[%s3 + $0xf58] sm:$0xff] %vm534, %v4597
  %5192 = vst.msk [vmem:[%s3 + $0xf60] sm:$0xff] %vm534, %v4602
  %5193 = vst.msk [vmem:[%s3 + $0xf68] sm:$0xff] %vm534, %v4607
  %5194 = vst.msk [vmem:[%s3 + $0xf70] sm:$0xff] %vm534, %v4612
  %5195 = vst.msk [vmem:[%s3 + $0xf78] sm:$0xff] %vm534, %v4617
  %5196 = vst.msk [vmem:[%s3 + $0xf80] sm:$0xff] %vm534, %v4622
  %5197 = vst.msk [vmem:[%s3 + $0xf88] sm:$0xff] %vm534, %v4627
  %5198 = vst.msk [vmem:[%s3 + $0xf90] sm:$0xff] %vm534, %v4632
  %5199 = vst.msk [vmem:[%s3 + $0xf98] sm:$0xff] %vm534, %v4637
  %5200 = vst.msk [vmem:[%s3 + $0xfa0] sm:$0xff] %vm534, %v4642
  %5201 = vst.msk [vmem:[%s3 + $0xfa8] sm:$0xff] %vm534, %v4647
  %5202 = vst.msk [vmem:[%s3 + $0xfb0] sm:$0xff] %vm534, %v4652
  %5203 = vst.msk [vmem:[%s3 + $0xfb8] sm:$0xff] %vm534, %v4657
  %5204 = vst.msk [vmem:[%s3 + $0xfc0] sm:$0xff] %vm534, %v4662
  %5205 = vst.msk [vmem:[%s3 + $0xfc8] sm:$0xff] %vm534, %v4667
  %5206 = vst.msk [vmem:[%s3 + $0xfd0] sm:$0xff] %vm534, %v4672
  %5207 = vst.msk [vmem:[%s3 + $0xfd8] sm:$0xff] %vm534, %v4677
  %5208 = vst.msk [vmem:[%s3 + $0xfe0] sm:$0xff] %vm534, %v4682
  %5209 = vst.msk [vmem:[%s3 + $0xfe8] sm:$0xff] %vm534, %v4687
  %5210 = vst.msk [vmem:[%s3 + $0xff0] sm:$0xff] %vm534, %v4692
  %5211 = vst.msk [vmem:[%s3 + $0xff8] sm:$0xff] %vm534, %v4697
  // Predicated region
  $region14: #{tpu_custom_call.1} parent=0 // pred_check
    _
  $region15: #{tpu_custom_call.1} parent=0 // pred_check_branch
    %5213 = sbr.rel (0) target = $region17
  $region16: #{tpu_custom_call.1} parent=0 // pred_region
    _
  $region17: #{tpu_custom_call.1} parent=0 // pred_fallthru
    _
  // Predicated region
  $region18: #{tpu_custom_call.1} parent=0 // pred_check
    _
  $region19: #{tpu_custom_call.1} parent=0 // pred_check_branch
    %5215 = sbr.rel (0) target = $region21
  $region20: #{tpu_custom_call.1} parent=0 // pred_region
    _
  $region21: #{tpu_custom_call.1} parent=0 // pred_fallthru
    _

</llo_original>
